<compile_context>
chip_gen: v7x
topology: tpu7x:2x2x1
jax: 0.10.0
libtpu: 0.0.40
codegen_flags: <defaults>
</compile_context>

<pallas_src>
import math
import functools

import jax
import jax.numpy as jnp
from jax.experimental import pallas as pl
from jax.experimental.pallas import tpu as pltpu


PARAM_ORDER = [
    "win_x", "win_z",            # in_proj split into x-branch / z-gate slabs   (bf16)
    "convw", "convb",            # depthwise conv taps (K, DI) and bias (1, DI) (f32)
    "wx_all",                    # fused x_proj -> [dt | B | C] slab (DI, XP)   (f32)
    "wdt", "bdt",                # dt_proj weight (R_pad, DI) f32, bias f32
    "At", "Dp",                  # A^T (N, DI), D (1, DI)                       (f32)
    "wout",                      # out_proj (DI, D)                             (bf16)
    "ln1_w", "ln1_b",            # post-Mamba LayerNorm (1, D)                  (f32)
    "w1", "b1", "w2", "b2",      # FeedForward                                  (bf16/f32)
    "ln2_w", "ln2_b",            # FFN LayerNorm (1, D)                         (f32)
]


# ----------------------------------------------------------------------------
# Kernel: one batch-block (Bb sequences) per grid step.
# ----------------------------------------------------------------------------
def _mamba_layer_kernel(x_ref,
                        win_x_ref, win_z_ref, convw_ref, convb_ref,
                        wx_all_ref, wdt_ref, bdt_ref,
                        At_ref, Dp_ref, wout_ref,
                        ln1_w_ref, ln1_b_ref, w1_ref, b1_ref, w2_ref, b2_ref,
                        ln2_w_ref, ln2_b_ref,
                        o_ref,
                        xconv_s, dt_s, dtx_s, b_s, c_s, y_s,
                        *, bb, seq_len, y_block, num_layers):
    f32 = jnp.float32
    M, D = x_ref.shape                       # (Bb * L, d_model), batch-major rows
    Bb, L, YB = bb, seq_len, y_block
    N, DI = At_ref.shape                     # (d_state, d_inner)
    K = convw_ref.shape[0]                   # d_conv
    R_pad = wdt_ref.shape[0]                 # padded dt_rank

    def mm(a, w_ref):
        # bf16 x bf16 MXU matmul with f32 accumulation (big projections only).
        return jnp.dot(a.astype(jnp.bfloat16), w_ref[...],
                       preferred_element_type=f32)

    x = x_ref[...].astype(f32)               # (M, D)

    # ------------------------------ Mamba block ------------------------------
    # in_proj (bias=False); weight pre-split -> no lane-misaligned output slicing.
    xin = mm(x, win_x_ref)                   # (M, DI)
    z = mm(x, win_z_ref)                     # (M, DI)

    # Causal depthwise Conv1d along time + SiLU.
    # xin is staged in VMEM with K-1 history rows; each tap is a static-offset load;
    # rows that would cross a sequence boundary (or t<0) are masked to zero, which
    # reproduces PyTorch's zero padding (padding = K-1, output truncated to L).
    if K > 1:
        xconv_s[pl.ds(0, K - 1), :] = jnp.zeros((K - 1, DI), f32)
    xconv_s[pl.ds(K - 1, M), :] = xin
    t_in_seq = jax.lax.broadcasted_iota(jnp.int32, (M, 1), 0) % L
    acc = jnp.broadcast_to(convb_ref[...], (M, DI))
    for k in range(K):                       # d_conv is tiny -> static unroll
        shift = K - 1 - k
        tap = xconv_s[pl.ds(k, M), :]        # output row r reads xin[r - shift]
        if shift > 0:
            tap = jnp.where(t_in_seq >= shift, tap, 0.0)
        acc = acc + convw_ref[k:k + 1, :] * tap
    xc = acc * jax.nn.sigmoid(acc)           # SiLU, (M, DI)

    # Fused x_proj (bias=False): one MXU pass, dt/B/C sliced at fixed lane offsets.
    # dt path kept f32 (accuracy of softplus/exp downstream).
    xp = jnp.dot(xc, wx_all_ref[...], preferred_element_type=f32)   # (M, XP)
    dt_lr = xp[:, :R_pad]                                           # (M, R_pad)
    Ball = xp[:, R_pad:R_pad + N]                                   # (M, N)
    Call = xp[:, R_pad + N:R_pad + 2 * N]                           # (M, N)
    dt_raw = jnp.dot(dt_lr, wdt_ref[...], preferred_element_type=f32) + bdt_ref[...]
    dt = jnp.where(dt_raw > 20.0, dt_raw,
                   jnp.log1p(jnp.exp(jnp.minimum(dt_raw, 20.0))))   # softplus
    dtx = dt * xc                            # delta * u

    # Stage scan operands in VMEM scratch via FREE reshapes (last dim unchanged).
    dt_s[...] = dt.reshape(Bb, L, DI)
    dtx_s[...] = dtx.reshape(Bb, L, DI)
    b_s[...] = Ball.reshape(Bb, L, N)        # time-major: row t is a sublane slice
    c_s[...] = Call.reshape(Bb, L, N)

    At3 = At_ref[...][None]                  # (1, N, DI), loop-invariant
    # N x N identity used to flip a (Bb,1,N) row into a (Bb,N,1) column cheaply
    # (N=16 multiply+reduce per step instead of the old L-wide one-hot).
    eyeN = (jax.lax.broadcasted_iota(jnp.int32, (1, N, N), 1) ==
            jax.lax.broadcasted_iota(jnp.int32, (1, N, N), 2)).astype(f32)

    # Selective scan:
    #   h_t = exp(dt_t * A) * h_{t-1} + B_t (outer) (dt_t * u_t)
    #   y_t = sum_n C_t[n] * h_t[n, :]
    # Outer fori over YB-step blocks (h carried in vregs), inner 8 steps statically
    # unrolled; the YB output rows are stored as one full sublane-aligned tile.
    def chunk_body(c, h):
        t0 = pl.multiple_of(c * YB, YB)
        ys = []
        for j in range(YB):
            dt_t = dt_s[:, pl.ds(t0 + j, 1), :]            # (Bb, 1, DI)
            dtx_t = dtx_s[:, pl.ds(t0 + j, 1), :]          # (Bb, 1, DI)
            B_row = b_s[:, pl.ds(t0 + j, 1), :]            # (Bb, 1, N)
            C_row = c_s[:, pl.ds(t0 + j, 1), :]            # (Bb, 1, N)
            B_col = jnp.sum(B_row * eyeN, axis=2, keepdims=True)   # (Bb, N, 1)
            C_col = jnp.sum(C_row * eyeN, axis=2, keepdims=True)   # (Bb, N, 1)
            dA = jnp.exp(dt_t * At3)                       # (Bb, N, DI)  (EUP)
            h = dA * h + B_col * dtx_t                     # (Bb, N, DI)
            ys.append(jnp.sum(C_col * h, axis=1, keepdims=True))   # (Bb, 1, DI)
        y_s[:, pl.ds(t0, YB), :] = jnp.concatenate(ys, axis=1)     # full-tile store
        return h

    h0 = jnp.zeros((Bb, N, DI), f32)
    # TODO(synk): if Bb*N*DI spills at very large DI, chunk DI inside the scan.
    jax.lax.fori_loop(0, L // YB, chunk_body, h0)

    y = y_s[...].reshape(M, DI)                            # free reshape
    y = y + Dp_ref[...] * xc                               # + D * u
    y = y * (z * jax.nn.sigmoid(z))                        # gate with SiLU(z)
    mamba_out = mm(y, wout_ref)                            # (M, D)

    # ------------------- residual LayerNorm + FeedForward -------------------
    def layer_norm(v, w, b):
        # eps = 1e-12 matches the PyTorch module (nn.LayerNorm(d_model, eps=1e-12)).
        mu = jnp.mean(v, axis=-1, keepdims=True)
        var = jnp.mean((v - mu) ** 2, axis=-1, keepdims=True)
        return (v - mu) * jax.lax.rsqrt(var + 1e-12) * w + b

    # Dropout == identity (eval mode).
    if num_layers == 1:
        hs = layer_norm(mamba_out, ln1_w_ref[...], ln1_b_ref[...])
    else:
        hs = layer_norm(mamba_out + x, ln1_w_ref[...], ln1_b_ref[...])

    ff = mm(hs, w1_ref) + b1_ref[...]
    ff = 0.5 * ff * (1.0 + jax.lax.erf(ff * 0.7071067811865476))  # exact (erf) GELU
    ff = mm(ff, w2_ref) + b2_ref[...]
    out = layer_norm(ff + hs, ln2_w_ref[...], ln2_b_ref[...])

    o_ref[...] = out.astype(o_ref.dtype)


# ----------------------------------------------------------------------------
# Wrapper
# ----------------------------------------------------------------------------
def _vmem_budget():
    """Per-generation VMEM limit + row budget for block-batch selection."""
    try:
        cap = int(pltpu.get_tpu_info().vmem_capacity_bytes)
    except Exception:
        cap = 64 * 1024 * 1024                 # conservative (v7x-sized) default
    vmem_limit = max(32 * 1024 * 1024, (cap * 3) // 4)   # ~96MB on 128MB, ~48MB on 64MB
    max_rows = 2048 if cap >= 96 * 1024 * 1024 else 1024
    return vmem_limit, max_rows


def _pick_block_batch(batch, seq_len, max_rows):
    """Largest divisor of `batch` whose row block (bb*L) fits the budget, while
    keeping grid >= 2 so both TensorCores get work on v7x (harmless elsewhere)."""
    bb = 1
    for cand in range(1, batch + 1):
        if batch % cand == 0 and cand * seq_len <= max(seq_len, max_rows):
            bb = cand
    if batch // bb < 2:
        smaller = [d for d in range(1, batch) if batch % d == 0 and batch // d >= 2]
        if smaller:
            bb = max(smaller)
    return bb


def mamba_layer_forward(x, prep, num_layers, block_batch=None,
                        single_buffer_weights=True):
    B, L, D = x.shape
    N, DI = prep["At"].shape
    K = prep["convw"].shape[0]
    weights = [prep[k] for k in PARAM_ORDER]

    vmem_limit, max_rows = _vmem_budget()
    Bb = block_batch if block_batch is not None else _pick_block_batch(B, L, max_rows)
    assert B % Bb == 0
    M = Bb * L
    YB = next(d for d in (8, 4, 2, 1) if L % d == 0)   # y-store block (sublane tile)
    x2d = x.reshape(B * L, D)

    kernel = functools.partial(_mamba_layer_kernel, bb=Bb, seq_len=L,
                               y_block=YB, num_layers=num_layers)

    def build(buffered):
        # Constant-index weights: request single buffering to halve their VMEM cost.
        wkw = dict(pipeline_mode=pl.Buffered(1)) if buffered else {}
        in_specs = ([pl.BlockSpec((M, D), lambda i: (i, 0))] +
                    [pl.BlockSpec(w.shape, lambda i: (0, 0), **wkw)
                     for w in weights])
        return pl.pallas_call(
            kernel,
            out_shape=jax.ShapeDtypeStruct((B * L, D), jnp.float32),
            grid_spec=pltpu.PrefetchScalarGridSpec(
                num_scalar_prefetch=0,
                grid=(B // Bb,),
                in_specs=in_specs,
                out_specs=pl.BlockSpec((M, D), lambda i: (i, 0)),
                scratch_shapes=[
                    pltpu.VMEM((M + K - 1, DI), jnp.float32),   # conv staging
                    pltpu.VMEM((Bb, L, DI), jnp.float32),       # dt
                    pltpu.VMEM((Bb, L, DI), jnp.float32),       # dt * u
                    pltpu.VMEM((Bb, L, N), jnp.float32),        # B (time-major)
                    pltpu.VMEM((Bb, L, N), jnp.float32),        # C (time-major)
                    pltpu.VMEM((Bb, L, DI), jnp.float32),       # scan outputs y
                ],
            ),
            compiler_params=pltpu.CompilerParams(
                dimension_semantics=("parallel",),
                vmem_limit_bytes=vmem_limit,
            ),
        )

    try:
        out = jax.block_until_ready(build(single_buffer_weights)(x2d, *weights))
    except Exception:
        # Narrow fallback: ONLY the weight pipeline_mode differs (Buffered(1) vs
        # default double-buffering); numerics are identical, so no error is masked.
        out = jax.block_until_ready(build(False)(x2d, *weights))
    return out.reshape(B, L, D)


# ----------------------------------------------------------------------------
# Deterministic parameter init (shapes follow Mamba / MambaLayer __init__).
# ----------------------------------------------------------------------------
def init_params(key, d_model, d_state, d_conv, expand):
    DI = expand * d_model
    R = math.ceil(d_model / 16)
    ks = jax.random.split(key, 9)

    def rnd(k, shape, scale=0.05):
        return (scale * jax.random.normal(k, shape)).astype(jnp.float32)

    # A_log init = log(1..d_state) per channel  ->  A = -exp(A_log); store A^T (N, DI).
    At = -jnp.broadcast_to(
        jnp.arange(1, d_state + 1, dtype=jnp.float32)[:, None], (d_state, DI))

    return dict(
        win_t=rnd(ks[0], (d_model, 2 * DI)),          # in_proj.weight^T  (no bias)
        convw=rnd(ks[1], (d_conv, DI), 0.2),          # conv1d.weight[c,0,k] -> [k,c]
        convb=rnd(ks[2], (1, DI), 0.1),               # conv1d.bias
        wx_t=rnd(ks[3], (DI, R + 2 * d_state)),       # x_proj.weight^T   (no bias)
        wdt_t=rnd(ks[4], (R, DI), 0.2),               # dt_proj.weight^T
        bdt=rnd(ks[5], (1, DI), 0.1),                 # dt_proj.bias
        At=At,                                        # A^T (d_state, d_inner)
        Dp=jnp.ones((1, DI), jnp.float32),            # D
        wout_t=rnd(ks[6], (DI, d_model)),             # out_proj.weight^T (no bias)
        ln1_w=jnp.ones((1, d_model), jnp.float32),
        ln1_b=jnp.zeros((1, d_model), jnp.float32),
        w1_t=rnd(ks[7], (d_model, 4 * d_model)),      # ffn.w_1
        b1=jnp.zeros((1, 4 * d_model), jnp.float32),
        w2_t=rnd(ks[8], (4 * d_model, d_model)),      # ffn.w_2
        b2=jnp.zeros((1, d_model), jnp.float32),
        ln2_w=jnp.ones((1, d_model), jnp.float32),
        ln2_b=jnp.zeros((1, d_model), jnp.float32),
    )


def prepare_weights(p):
    """Split / pad / cast the torch-layout params into kernel operands.

    Big matmul weights go to bf16 (MXU-native, half the VMEM/DMA bytes); the dt path
    (x_proj / dt_proj), conv taps, A, D, biases and LayerNorm affine stay f32.
    x_proj is fused into a single 128-lane-padded slab laid out as [dt | B | C].
    """
    bf16 = jnp.bfloat16
    DI = p["Dp"].shape[1]
    N = p["At"].shape[0]
    R = p["wdt_t"].shape[0]
    R_pad = max(8, ((R + 7) // 8) * 8)                     # pad tiny dt_rank
    XP = ((R_pad + 2 * N + 127) // 128) * 128              # MXU-width-padded output

    wx_all = jnp.zeros((DI, XP), jnp.float32)
    wx_all = wx_all.at[:, :R].set(p["wx_t"][:, :R])
    wx_all = wx_all.at[:, R_pad:R_pad + N].set(p["wx_t"][:, R:R + N])
    wx_all = wx_all.at[:, R_pad + N:R_pad + 2 * N].set(p["wx_t"][:, R + N:R + 2 * N])
    wdt = jnp.zeros((R_pad, DI), jnp.float32).at[:R, :].set(p["wdt_t"])

    return dict(
        win_x=p["win_t"][:, :DI].astype(bf16),
        win_z=p["win_t"][:, DI:].astype(bf16),
        convw=p["convw"], convb=p["convb"],
        wx_all=wx_all,                        # f32
        wdt=wdt, bdt=p["bdt"],                # f32
        At=p["At"], Dp=p["Dp"],
        wout=p["wout_t"].astype(bf16),
        ln1_w=p["ln1_w"], ln1_b=p["ln1_b"],
        w1=p["w1_t"].astype(bf16), b1=p["b1"],
        w2=p["w2_t"].astype(bf16), b2=p["b2"],
        ln2_w=p["ln2_w"], ln2_b=p["ln2_b"],
    )


# ----------------------------------------------------------------------------
# Pure-JAX reference (f32 math, same bf16-rounded weight values) for sanity check.
# ----------------------------------------------------------------------------
def reference_forward(x, prep, num_layers):
    f32 = jnp.float32
    B, L, D = x.shape
    DI = prep["Dp"].shape[1]
    N = prep["At"].shape[0]
    K = prep["convw"].shape[0]
    R_pad = prep["wdt"].shape[0]

    def w(name):
        return prep[name].astype(f32)

    def ln(v, g, b):
        mu = v.mean(-1, keepdims=True)
        var = ((v - mu) ** 2).mean(-1, keepdims=True)
        return (v - mu) / jnp.sqrt(var + 1e-12) * g + b

    wx = w("wx_all")
    outs = []
    for bi in range(B):
        xb = x[bi].astype(f32)                               # (L, D)
        xin = xb @ w("win_x")
        z = xb @ w("win_z")
        xpad = jnp.concatenate([jnp.zeros((K - 1, DI), f32), xin], 0)
        acc = prep["convb"] + sum(prep["convw"][k:k + 1] * xpad[k:k + L]
                                  for k in range(K))
        xc = acc * jax.nn.sigmoid(acc)
        dt = jax.nn.softplus((xc @ wx[:, :R_pad]) @ w("wdt") + prep["bdt"])
        Ball = xc @ wx[:, R_pad:R_pad + N]
        Call = xc @ wx[:, R_pad + N:R_pad + 2 * N]
        A = prep["At"].T                                     # (DI, N)
        h = jnp.zeros((DI, N), f32)
        ys = []
        for t in range(L):
            dA = jnp.exp(dt[t][:, None] * A)
            dBx = (dt[t] * xc[t])[:, None] * Ball[t][None, :]
            h = dA * h + dBx
            ys.append(h @ Call[t])
        y = jnp.stack(ys, 0) + prep["Dp"] * xc
        y = y * (z * jax.nn.sigmoid(z))
        m = y @ w("wout")
        hs = ln(m if num_layers == 1 else m + xb, prep["ln1_w"], prep["ln1_b"])
        ff = jax.nn.gelu(hs @ w("w1") + prep["b1"], approximate=False)
        ff = ff @ w("w2") + prep["b2"]
        outs.append(ln(ff + hs, prep["ln2_w"], prep["ln2_b"]))
    return jnp.stack(outs, 0)


if __name__ == "__main__":
    B, L = 2, 8
    d_model, d_state, d_conv, expand = 32, 16, 4, 2
    num_layers = 2                                   # exercise the residual branch

    key = jax.random.PRNGKey(0)
    kx, kp = jax.random.split(key)
    x = jax.random.normal(kx, (B, L, d_model), dtype=jnp.float32)
    params = init_params(kp, d_model, d_state, d_conv, expand)
    prep = prepare_weights(params)

    out = mamba_layer_forward(x, prep, num_layers)
    out = jax.block_until_ready(out)

    assert out.shape == (B, L, d_model)
    assert bool(jnp.all(jnp.isfinite(out)))

    ref = reference_forward(x, prep, num_layers)
    err = float(jnp.max(jnp.abs(out - ref)))
    assert jnp.allclose(out, ref, rtol=5e-2, atol=5e-2), err

    print("KERNEL_OK")
</pallas_src>

<mosaic_0001>
module attributes {stable_mosaic.version = 11 : i64} {
  func.func @_mamba_layer_kernel(%arg0: i32, %arg1: memref<8x32xf32, #tpu.memory_space<vmem>>, %arg2: memref<32x64xbf16, #tpu.memory_space<vmem>>, %arg3: memref<32x64xbf16, #tpu.memory_space<vmem>>, %arg4: memref<4x64xf32, #tpu.memory_space<vmem>>, %arg5: memref<1x64xf32, #tpu.memory_space<vmem>>, %arg6: memref<64x128xf32, #tpu.memory_space<vmem>>, %arg7: memref<8x64xf32, #tpu.memory_space<vmem>>, %arg8: memref<1x64xf32, #tpu.memory_space<vmem>>, %arg9: memref<16x64xf32, #tpu.memory_space<vmem>>, %arg10: memref<1x64xf32, #tpu.memory_space<vmem>>, %arg11: memref<64x32xbf16, #tpu.memory_space<vmem>>, %arg12: memref<1x32xf32, #tpu.memory_space<vmem>>, %arg13: memref<1x32xf32, #tpu.memory_space<vmem>>, %arg14: memref<32x128xbf16, #tpu.memory_space<vmem>>, %arg15: memref<1x128xf32, #tpu.memory_space<vmem>>, %arg16: memref<128x32xbf16, #tpu.memory_space<vmem>>, %arg17: memref<1x32xf32, #tpu.memory_space<vmem>>, %arg18: memref<1x32xf32, #tpu.memory_space<vmem>>, %arg19: memref<1x32xf32, #tpu.memory_space<vmem>>, %arg20: memref<8x32xf32, #tpu.memory_space<vmem>>, %arg21: memref<11x64xf32, #tpu.memory_space<vmem>>, %arg22: memref<1x8x64xf32, #tpu.memory_space<vmem>>, %arg23: memref<1x8x64xf32, #tpu.memory_space<vmem>>, %arg24: memref<1x8x16xf32, #tpu.memory_space<vmem>>, %arg25: memref<1x8x16xf32, #tpu.memory_space<vmem>>, %arg26: memref<1x8x64xf32, #tpu.memory_space<vmem>>) attributes {dimension_semantics = [#tpu.dimension_semantics<parallel>], iteration_bounds = array<i64: 2>, scalar_prefetch = 0 : i64, scratch_operands = 6 : i64, tpu.core_type = #tpu.core_type<tc>, window_params = [{transform_indices = @transform_0, window_bounds = array<i64: 8, 32>}, {pipeline_mode = #tpu.pipeline_mode<synchronous>, transform_indices = @transform_1, window_bounds = array<i64: 32, 64>}, {pipeline_mode = #tpu.pipeline_mode<synchronous>, transform_indices = @transform_2, window_bounds = array<i64: 32, 64>}, {pipeline_mode = #tpu.pipeline_mode<synchronous>, transform_indices = @transform_3, window_bounds = array<i64: 4, 64>}, {pipeline_mode = #tpu.pipeline_mode<synchronous>, transform_indices = @transform_4, window_bounds = array<i64: 1, 64>}, {pipeline_mode = #tpu.pipeline_mode<synchronous>, transform_indices = @transform_5, window_bounds = array<i64: 64, 128>}, {pipeline_mode = #tpu.pipeline_mode<synchronous>, transform_indices = @transform_6, window_bounds = array<i64: 8, 64>}, {pipeline_mode = #tpu.pipeline_mode<synchronous>, transform_indices = @transform_7, window_bounds = array<i64: 1, 64>}, {pipeline_mode = #tpu.pipeline_mode<synchronous>, transform_indices = @transform_8, window_bounds = array<i64: 16, 64>}, {pipeline_mode = #tpu.pipeline_mode<synchronous>, transform_indices = @transform_9, window_bounds = array<i64: 1, 64>}, {pipeline_mode = #tpu.pipeline_mode<synchronous>, transform_indices = @transform_10, window_bounds = array<i64: 64, 32>}, {pipeline_mode = #tpu.pipeline_mode<synchronous>, transform_indices = @transform_11, window_bounds = array<i64: 1, 32>}, {pipeline_mode = #tpu.pipeline_mode<synchronous>, transform_indices = @transform_12, window_bounds = array<i64: 1, 32>}, {pipeline_mode = #tpu.pipeline_mode<synchronous>, transform_indices = @transform_13, window_bounds = array<i64: 32, 128>}, {pipeline_mode = #tpu.pipeline_mode<synchronous>, transform_indices = @transform_14, window_bounds = array<i64: 1, 128>}, {pipeline_mode = #tpu.pipeline_mode<synchronous>, transform_indices = @transform_15, window_bounds = array<i64: 128, 32>}, {pipeline_mode = #tpu.pipeline_mode<synchronous>, transform_indices = @transform_16, window_bounds = array<i64: 1, 32>}, {pipeline_mode = #tpu.pipeline_mode<synchronous>, transform_indices = @transform_17, window_bounds = array<i64: 1, 32>}, {pipeline_mode = #tpu.pipeline_mode<synchronous>, transform_indices = @transform_18, window_bounds = array<i64: 1, 32>}, {transform_indices = @transform_19, window_bounds = array<i64: 8, 32>}]} {
    %c0 = arith.constant 0 : index
    %c0_0 = arith.constant 0 : index
    %0 = vector.load %arg1[%c0, %c0_0] : memref<8x32xf32, #tpu.memory_space<vmem>>, vector<8x32xf32>
    %1 = arith.truncf %0 : vector<8x32xf32> to vector<8x32xbf16>
    %c0_1 = arith.constant 0 : index
    %c0_2 = arith.constant 0 : index
    %2 = vector.load %arg2[%c0_1, %c0_2] : memref<32x64xbf16, #tpu.memory_space<vmem>>, vector<32x64xbf16>
    %cst = arith.constant dense<0.000000e+00> : vector<8x64xf32>
    %3 = tpu.matmul %1, %2, %cst {dimension_numbers = #tpu.dot_dimension_numbers<[1], [0], [0], [1], [0, 0, 1, 1], [], []>} : vector<8x32xbf16>, vector<32x64xbf16>, vector<8x64xf32> -> vector<8x64xf32>
    %4 = arith.truncf %0 : vector<8x32xf32> to vector<8x32xbf16>
    %c0_3 = arith.constant 0 : index
    %c0_4 = arith.constant 0 : index
    %5 = vector.load %arg3[%c0_3, %c0_4] : memref<32x64xbf16, #tpu.memory_space<vmem>>, vector<32x64xbf16>
    %cst_5 = arith.constant dense<0.000000e+00> : vector<8x64xf32>
    %6 = tpu.matmul %4, %5, %cst_5 {dimension_numbers = #tpu.dot_dimension_numbers<[1], [0], [0], [1], [0, 0, 1, 1], [], []>} : vector<8x32xbf16>, vector<32x64xbf16>, vector<8x64xf32> -> vector<8x64xf32>
    %cst_6 = arith.constant 0.000000e+00 : f32
    %7 = vector.broadcast %cst_6 : f32 to vector<3x64xf32>
    %c0_7 = arith.constant 0 : index
    %c0_8 = arith.constant 0 : index
    %8 = vector.load %arg21[%c0_7, %c0_8] : memref<11x64xf32, #tpu.memory_space<vmem>>, vector<3x64xf32>
    tpu.vector_store %arg21[%c0_7, %c0_8], %7 {strides = array<i32>} : memref<11x64xf32, #tpu.memory_space<vmem>>, vector<3x64xf32>,
    %c3 = arith.constant 3 : index
    %c0_9 = arith.constant 0 : index
    %9 = vector.load %arg21[%c3, %c0_9] : memref<11x64xf32, #tpu.memory_space<vmem>>, vector<8x64xf32>
    tpu.vector_store %arg21[%c3, %c0_9], %3 {strides = array<i32>} : memref<11x64xf32, #tpu.memory_space<vmem>>, vector<8x64xf32>,
    %10 = tpu.iota {dimensions = array<i32: 0>} : vector<8x1xi32>
    %c8_i32 = arith.constant 8 : i32
    %c0_i32 = arith.constant 0 : i32
    %11 = arith.cmpi eq, %c8_i32, %c0_i32 : i32
    %c1_i32 = arith.constant 1 : i32
    %12 = arith.select %11, %c1_i32, %c8_i32 : i32
    %13 = vector.broadcast %12 : i32 to vector<8x1xi32>
    %14 = arith.remsi %10, %13 : vector<8x1xi32>
    %c0_i32_10 = arith.constant 0 : i32
    %15 = vector.broadcast %c0_i32_10 : i32 to vector<8x1xi32>
    %16 = arith.cmpi ne, %14, %15 : vector<8x1xi32>
    %c0_i32_11 = arith.constant 0 : i32
    %17 = vector.broadcast %c0_i32_11 : i32 to vector<8x1xi32>
    %18 = arith.cmpi slt, %14, %17 : vector<8x1xi32>
    %c0_i32_12 = arith.constant 0 : i32
    %19 = arith.cmpi slt, %12, %c0_i32_12 : i32
    %20 = vector.broadcast %19 : i1 to vector<8x1xi1>
    %21 = vector.broadcast %20 : vector<8x1xi1> to vector<8x1xi1>
    %22 = arith.xori %18, %21 : vector<8x1xi1>
    %23 = arith.andi %22, %16 : vector<8x1xi1>
    %24 = vector.broadcast %12 : i32 to vector<8x1xi32>
    %25 = arith.addi %14, %24 : vector<8x1xi32>
    %26 = arith.select %23, %25, %14 : vector<8x1xi1>, vector<8x1xi32>
    %c0_13 = arith.constant 0 : index
    %c0_14 = arith.constant 0 : index
    %27 = vector.load %arg5[%c0_13, %c0_14] : memref<1x64xf32, #tpu.memory_space<vmem>>, vector<1x64xf32>
    %28 = vector.shape_cast %27 : vector<1x64xf32> to vector<1x64xf32>
    %29 = vector.broadcast %28 : vector<1x64xf32> to vector<8x64xf32>
    %c0_15 = arith.constant 0 : index
    %c0_16 = arith.constant 0 : index
    %30 = vector.load %arg21[%c0_15, %c0_16] : memref<11x64xf32, #tpu.memory_space<vmem>>, vector<8x64xf32>
    %c3_i32 = arith.constant 3 : i32
    %31 = vector.broadcast %c3_i32 : i32 to vector<8x1xi32>
    %32 = arith.cmpi sge, %26, %31 : vector<8x1xi32>
    %cst_17 = arith.constant 0.000000e+00 : f32
    %33 = vector.shape_cast %32 : vector<8x1xi1> to vector<8x1xi1>
    %34 = vector.broadcast %33 : vector<8x1xi1> to vector<8x64xi1>
    %35 = vector.broadcast %cst_17 : f32 to vector<8x64xf32>
    %36 = arith.select %34, %30, %35 : vector<8x64xi1>, vector<8x64xf32>
    %c0_18 = arith.constant 0 : index
    %c0_19 = arith.constant 0 : index
    %37 = vector.load %arg4[%c0_18, %c0_19] : memref<4x64xf32, #tpu.memory_space<vmem>>, vector<1x64xf32>
    %38 = vector.broadcast %37 : vector<1x64xf32> to vector<8x64xf32>
    %39 = arith.mulf %38, %36 : vector<8x64xf32>
    %40 = arith.addf %29, %39 : vector<8x64xf32>
    %c1 = arith.constant 1 : index
    %c0_20 = arith.constant 0 : index
    %41 = vector.load %arg21[%c1, %c0_20] : memref<11x64xf32, #tpu.memory_space<vmem>>, vector<8x64xf32>
    %c2_i32 = arith.constant 2 : i32
    %42 = vector.broadcast %c2_i32 : i32 to vector<8x1xi32>
    %43 = arith.cmpi sge, %26, %42 : vector<8x1xi32>
    %cst_21 = arith.constant 0.000000e+00 : f32
    %44 = vector.shape_cast %43 : vector<8x1xi1> to vector<8x1xi1>
    %45 = vector.broadcast %44 : vector<8x1xi1> to vector<8x64xi1>
    %46 = vector.broadcast %cst_21 : f32 to vector<8x64xf32>
    %47 = arith.select %45, %41, %46 : vector<8x64xi1>, vector<8x64xf32>
    %c1_22 = arith.constant 1 : index
    %c0_23 = arith.constant 0 : index
    %48 = vector.load %arg4[%c1_22, %c0_23] : memref<4x64xf32, #tpu.memory_space<vmem>>, vector<1x64xf32>
    %49 = vector.broadcast %48 : vector<1x64xf32> to vector<8x64xf32>
    %50 = arith.mulf %49, %47 : vector<8x64xf32>
    %51 = arith.addf %40, %50 : vector<8x64xf32>
    %c2 = arith.constant 2 : index
    %c0_24 = arith.constant 0 : index
    %52 = vector.load %arg21[%c2, %c0_24] : memref<11x64xf32, #tpu.memory_space<vmem>>, vector<8x64xf32>
    %c1_i32_25 = arith.constant 1 : i32
    %53 = vector.broadcast %c1_i32_25 : i32 to vector<8x1xi32>
    %54 = arith.cmpi sge, %26, %53 : vector<8x1xi32>
    %cst_26 = arith.constant 0.000000e+00 : f32
    %55 = vector.shape_cast %54 : vector<8x1xi1> to vector<8x1xi1>
    %56 = vector.broadcast %55 : vector<8x1xi1> to vector<8x64xi1>
    %57 = vector.broadcast %cst_26 : f32 to vector<8x64xf32>
    %58 = arith.select %56, %52, %57 : vector<8x64xi1>, vector<8x64xf32>
    %c2_27 = arith.constant 2 : index
    %c0_28 = arith.constant 0 : index
    %59 = vector.load %arg4[%c2_27, %c0_28] : memref<4x64xf32, #tpu.memory_space<vmem>>, vector<1x64xf32>
    %60 = vector.broadcast %59 : vector<1x64xf32> to vector<8x64xf32>
    %61 = arith.mulf %60, %58 : vector<8x64xf32>
    %62 = arith.addf %51, %61 : vector<8x64xf32>
    %c3_29 = arith.constant 3 : index
    %c0_30 = arith.constant 0 : index
    %63 = vector.load %arg21[%c3_29, %c0_30] : memref<11x64xf32, #tpu.memory_space<vmem>>, vector<8x64xf32>
    %c3_31 = arith.constant 3 : index
    %c0_32 = arith.constant 0 : index
    %64 = vector.load %arg4[%c3_31, %c0_32] : memref<4x64xf32, #tpu.memory_space<vmem>>, vector<1x64xf32>
    %65 = vector.broadcast %64 : vector<1x64xf32> to vector<8x64xf32>
    %66 = arith.mulf %65, %63 : vector<8x64xf32>
    %67 = arith.addf %62, %66 : vector<8x64xf32>
    %68 = arith.negf %67 : vector<8x64xf32>
    %69 = math.exp %68 : vector<8x64xf32>
    %cst_33 = arith.constant 1.000000e+00 : f32
    %70 = vector.broadcast %cst_33 : f32 to vector<8x64xf32>
    %71 = arith.addf %70, %69 : vector<8x64xf32>
    %72 = arith.divf %70, %71 : vector<8x64xf32>
    %73 = arith.mulf %67, %72 : vector<8x64xf32>
    %c0_34 = arith.constant 0 : index
    %c0_35 = arith.constant 0 : index
    %74 = vector.load %arg6[%c0_34, %c0_35] : memref<64x128xf32, #tpu.memory_space<vmem>>, vector<64x128xf32>
    %cst_36 = arith.constant dense<0.000000e+00> : vector<8x128xf32>
    %75 = tpu.matmul %73, %74, %cst_36 {dimension_numbers = #tpu.dot_dimension_numbers<[1], [0], [0], [1], [0, 0, 1, 1], [], []>} : vector<8x64xf32>, vector<64x128xf32>, vector<8x128xf32> -> vector<8x128xf32>
    %76 = vector.extract_strided_slice %75 {offsets = [0, 0], sizes = [8, 8], strides = [1, 1]} : vector<8x128xf32> to vector<8x8xf32>
    %77 = vector.extract_strided_slice %75 {offsets = [0, 8], sizes = [8, 16], strides = [1, 1]} : vector<8x128xf32> to vector<8x16xf32>
    %78 = vector.extract_strided_slice %75 {offsets = [0, 24], sizes = [8, 16], strides = [1, 1]} : vector<8x128xf32> to vector<8x16xf32>
    %c0_37 = arith.constant 0 : index
    %c0_38 = arith.constant 0 : index
    %79 = vector.load %arg7[%c0_37, %c0_38] : memref<8x64xf32, #tpu.memory_space<vmem>>, vector<8x64xf32>
    %cst_39 = arith.constant dense<0.000000e+00> : vector<8x64xf32>
    %80 = tpu.matmul %76, %79, %cst_39 {dimension_numbers = #tpu.dot_dimension_numbers<[1], [0], [0], [1], [0, 0, 1, 1], [], []>} : vector<8x8xf32>, vector<8x64xf32>, vector<8x64xf32> -> vector<8x64xf32>
    %c0_40 = arith.constant 0 : index
    %c0_41 = arith.constant 0 : index
    %81 = vector.load %arg8[%c0_40, %c0_41] : memref<1x64xf32, #tpu.memory_space<vmem>>, vector<1x64xf32>
    %82 = vector.broadcast %81 : vector<1x64xf32> to vector<8x64xf32>
    %83 = arith.addf %80, %82 : vector<8x64xf32>
    %cst_42 = arith.constant 2.000000e+01 : f32
    %84 = vector.broadcast %cst_42 : f32 to vector<8x64xf32>
    %85 = arith.cmpf ogt, %83, %84 : vector<8x64xf32>
    %cst_43 = arith.constant 2.000000e+01 : f32
    %86 = vector.broadcast %cst_43 : f32 to vector<8x64xf32>
    %87 = arith.minimumf %83, %86 : vector<8x64xf32>
    %88 = math.exp %87 : vector<8x64xf32>
    %89 = math.log1p %88 : vector<8x64xf32>
    %90 = arith.select %85, %83, %89 : vector<8x64xi1>, vector<8x64xf32>
    %91 = arith.mulf %90, %73 : vector<8x64xf32>
    %92 = vector.shape_cast %90 : vector<8x64xf32> to vector<1x8x64xf32>
    %c0_44 = arith.constant 0 : index
    %c0_45 = arith.constant 0 : index
    %c0_46 = arith.constant 0 : index
    %93 = vector.load %arg22[%c0_44, %c0_45, %c0_46] : memref<1x8x64xf32, #tpu.memory_space<vmem>>, vector<1x8x64xf32>
    tpu.vector_store %arg22[%c0_44, %c0_45, %c0_46], %92 {strides = array<i32>} : memref<1x8x64xf32, #tpu.memory_space<vmem>>, vector<1x8x64xf32>,
    %94 = vector.shape_cast %91 : vector<8x64xf32> to vector<1x8x64xf32>
    %c0_47 = arith.constant 0 : index
    %c0_48 = arith.constant 0 : index
    %c0_49 = arith.constant 0 : index
    %95 = vector.load %arg23[%c0_47, %c0_48, %c0_49] : memref<1x8x64xf32, #tpu.memory_space<vmem>>, vector<1x8x64xf32>
    tpu.vector_store %arg23[%c0_47, %c0_48, %c0_49], %94 {strides = array<i32>} : memref<1x8x64xf32, #tpu.memory_space<vmem>>, vector<1x8x64xf32>,
    %96 = vector.shape_cast %77 : vector<8x16xf32> to vector<1x8x16xf32>
    %c0_50 = arith.constant 0 : index
    %c0_51 = arith.constant 0 : index
    %c0_52 = arith.constant 0 : index
    %97 = vector.load %arg24[%c0_50, %c0_51, %c0_52] : memref<1x8x16xf32, #tpu.memory_space<vmem>>, vector<1x8x16xf32>
    tpu.vector_store %arg24[%c0_50, %c0_51, %c0_52], %96 {strides = array<i32>} : memref<1x8x16xf32, #tpu.memory_space<vmem>>, vector<1x8x16xf32>,
    %98 = vector.shape_cast %78 : vector<8x16xf32> to vector<1x8x16xf32>
    %c0_53 = arith.constant 0 : index
    %c0_54 = arith.constant 0 : index
    %c0_55 = arith.constant 0 : index
    %99 = vector.load %arg25[%c0_53, %c0_54, %c0_55] : memref<1x8x16xf32, #tpu.memory_space<vmem>>, vector<1x8x16xf32>
    tpu.vector_store %arg25[%c0_53, %c0_54, %c0_55], %98 {strides = array<i32>} : memref<1x8x16xf32, #tpu.memory_space<vmem>>, vector<1x8x16xf32>,
    %c0_56 = arith.constant 0 : index
    %c0_57 = arith.constant 0 : index
    %100 = vector.load %arg9[%c0_56, %c0_57] : memref<16x64xf32, #tpu.memory_space<vmem>>, vector<16x64xf32>
    %101 = vector.shape_cast %100 : vector<16x64xf32> to vector<1x16x64xf32>
    %102 = tpu.iota {dimensions = array<i32: 1>} : vector<1x16x16xi32>
    %103 = tpu.iota {dimensions = array<i32: 2>} : vector<1x16x16xi32>
    %104 = arith.cmpi eq, %102, %103 : vector<1x16x16xi32>
    %105 = arith.extui %104 : vector<1x16x16xi1> to vector<1x16x16xi32>
    %106 = arith.sitofp %105 : vector<1x16x16xi32> to vector<1x16x16xf32>
    %cst_58 = arith.constant 0.000000e+00 : f32
    %107 = vector.broadcast %cst_58 : f32 to vector<1x16x64xf32>
    %c0_i32_59 = arith.constant 0 : i32
    %c8_i32_60 = arith.constant 8 : i32
    %108 = arith.muli %c0_i32_59, %c8_i32_60 : i32
    %109 = tpu.assume_multiple %108, 8 : i32
    %c0_i32_61 = arith.constant 0 : i32
    %110 = arith.addi %109, %c0_i32_61 : i32
    %c0_62 = arith.constant 0 : index
    %111 = arith.index_cast %110 : i32 to index
    %c0_63 = arith.constant 0 : index
    %112 = vector.load %arg22[%c0_62, %111, %c0_63] : memref<1x8x64xf32, #tpu.memory_space<vmem>>, vector<1x1x64xf32>
    %c0_i32_64 = arith.constant 0 : i32
    %113 = arith.addi %109, %c0_i32_64 : i32
    %c0_65 = arith.constant 0 : index
    %114 = arith.index_cast %113 : i32 to index
    %c0_66 = arith.constant 0 : index
    %115 = vector.load %arg23[%c0_65, %114, %c0_66] : memref<1x8x64xf32, #tpu.memory_space<vmem>>, vector<1x1x64xf32>
    %c0_i32_67 = arith.constant 0 : i32
    %116 = arith.addi %109, %c0_i32_67 : i32
    %c0_68 = arith.constant 0 : index
    %117 = arith.index_cast %116 : i32 to index
    %c0_69 = arith.constant 0 : index
    %118 = vector.load %arg24[%c0_68, %117, %c0_69] : memref<1x8x16xf32, #tpu.memory_space<vmem>>, vector<1x1x16xf32>
    %c0_i32_70 = arith.constant 0 : i32
    %119 = arith.addi %109, %c0_i32_70 : i32
    %c0_71 = arith.constant 0 : index
    %120 = arith.index_cast %119 : i32 to index
    %c0_72 = arith.constant 0 : index
    %121 = vector.load %arg25[%c0_71, %120, %c0_72] : memref<1x8x16xf32, #tpu.memory_space<vmem>>, vector<1x1x16xf32>
    %122 = vector.broadcast %118 : vector<1x1x16xf32> to vector<1x16x16xf32>
    %123 = arith.mulf %122, %106 : vector<1x16x16xf32>
    %cst_73 = arith.constant dense<0.000000e+00> : vector<1x16xf32>
    %124 = vector.multi_reduction <add>, %123, %cst_73 [2] : vector<1x16x16xf32> to vector<1x16xf32>
    %125 = vector.shape_cast %124 : vector<1x16xf32> to vector<1x16x1xf32>
    %126 = vector.broadcast %121 : vector<1x1x16xf32> to vector<1x16x16xf32>
    %127 = arith.mulf %126, %106 : vector<1x16x16xf32>
    %cst_74 = arith.constant dense<0.000000e+00> : vector<1x16xf32>
    %128 = vector.multi_reduction <add>, %127, %cst_74 [2] : vector<1x16x16xf32> to vector<1x16xf32>
    %129 = vector.shape_cast %128 : vector<1x16xf32> to vector<1x16x1xf32>
    %130 = vector.broadcast %112 : vector<1x1x64xf32> to vector<1x16x64xf32>
    %131 = arith.mulf %130, %101 : vector<1x16x64xf32>
    %132 = math.exp %131 : vector<1x16x64xf32>
    %133 = arith.mulf %132, %107 : vector<1x16x64xf32>
    %134 = vector.broadcast %125 : vector<1x16x1xf32> to vector<1x16x64xf32>
    %135 = vector.broadcast %115 : vector<1x1x64xf32> to vector<1x16x64xf32>
    %136 = arith.mulf %134, %135 : vector<1x16x64xf32>
    %137 = arith.addf %133, %136 : vector<1x16x64xf32>
    %138 = vector.broadcast %129 : vector<1x16x1xf32> to vector<1x16x64xf32>
    %139 = arith.mulf %138, %137 : vector<1x16x64xf32>
    %cst_75 = arith.constant dense<0.000000e+00> : vector<1x64xf32>
    %140 = vector.multi_reduction <add>, %139, %cst_75 [1] : vector<1x16x64xf32> to vector<1x64xf32>
    %141 = vector.shape_cast %140 : vector<1x64xf32> to vector<1x1x64xf32>
    %c1_i32_76 = arith.constant 1 : i32
    %142 = arith.addi %109, %c1_i32_76 : i32
    %c0_77 = arith.constant 0 : index
    %143 = arith.index_cast %142 : i32 to index
    %c0_78 = arith.constant 0 : index
    %144 = vector.load %arg22[%c0_77, %143, %c0_78] : memref<1x8x64xf32, #tpu.memory_space<vmem>>, vector<1x1x64xf32>
    %c1_i32_79 = arith.constant 1 : i32
    %145 = arith.addi %109, %c1_i32_79 : i32
    %c0_80 = arith.constant 0 : index
    %146 = arith.index_cast %145 : i32 to index
    %c0_81 = arith.constant 0 : index
    %147 = vector.load %arg23[%c0_80, %146, %c0_81] : memref<1x8x64xf32, #tpu.memory_space<vmem>>, vector<1x1x64xf32>
    %c1_i32_82 = arith.constant 1 : i32
    %148 = arith.addi %109, %c1_i32_82 : i32
    %c0_83 = arith.constant 0 : index
    %149 = arith.index_cast %148 : i32 to index
    %c0_84 = arith.constant 0 : index
    %150 = vector.load %arg24[%c0_83, %149, %c0_84] : memref<1x8x16xf32, #tpu.memory_space<vmem>>, vector<1x1x16xf32>
    %c1_i32_85 = arith.constant 1 : i32
    %151 = arith.addi %109, %c1_i32_85 : i32
    %c0_86 = arith.constant 0 : index
    %152 = arith.index_cast %151 : i32 to index
    %c0_87 = arith.constant 0 : index
    %153 = vector.load %arg25[%c0_86, %152, %c0_87] : memref<1x8x16xf32, #tpu.memory_space<vmem>>, vector<1x1x16xf32>
    %154 = vector.broadcast %150 : vector<1x1x16xf32> to vector<1x16x16xf32>
    %155 = arith.mulf %154, %106 : vector<1x16x16xf32>
    %cst_88 = arith.constant dense<0.000000e+00> : vector<1x16xf32>
    %156 = vector.multi_reduction <add>, %155, %cst_88 [2] : vector<1x16x16xf32> to vector<1x16xf32>
    %157 = vector.shape_cast %156 : vector<1x16xf32> to vector<1x16x1xf32>
    %158 = vector.broadcast %153 : vector<1x1x16xf32> to vector<1x16x16xf32>
    %159 = arith.mulf %158, %106 : vector<1x16x16xf32>
    %cst_89 = arith.constant dense<0.000000e+00> : vector<1x16xf32>
    %160 = vector.multi_reduction <add>, %159, %cst_89 [2] : vector<1x16x16xf32> to vector<1x16xf32>
    %161 = vector.shape_cast %160 : vector<1x16xf32> to vector<1x16x1xf32>
    %162 = vector.broadcast %144 : vector<1x1x64xf32> to vector<1x16x64xf32>
    %163 = arith.mulf %162, %101 : vector<1x16x64xf32>
    %164 = math.exp %163 : vector<1x16x64xf32>
    %165 = arith.mulf %164, %137 : vector<1x16x64xf32>
    %166 = vector.broadcast %157 : vector<1x16x1xf32> to vector<1x16x64xf32>
    %167 = vector.broadcast %147 : vector<1x1x64xf32> to vector<1x16x64xf32>
    %168 = arith.mulf %166, %167 : vector<1x16x64xf32>
    %169 = arith.addf %165, %168 : vector<1x16x64xf32>
    %170 = vector.broadcast %161 : vector<1x16x1xf32> to vector<1x16x64xf32>
    %171 = arith.mulf %170, %169 : vector<1x16x64xf32>
    %cst_90 = arith.constant dense<0.000000e+00> : vector<1x64xf32>
    %172 = vector.multi_reduction <add>, %171, %cst_90 [1] : vector<1x16x64xf32> to vector<1x64xf32>
    %173 = vector.shape_cast %172 : vector<1x64xf32> to vector<1x1x64xf32>
    %c2_i32_91 = arith.constant 2 : i32
    %174 = arith.addi %109, %c2_i32_91 : i32
    %c0_92 = arith.constant 0 : index
    %175 = arith.index_cast %174 : i32 to index
    %c0_93 = arith.constant 0 : index
    %176 = vector.load %arg22[%c0_92, %175, %c0_93] : memref<1x8x64xf32, #tpu.memory_space<vmem>>, vector<1x1x64xf32>
    %c2_i32_94 = arith.constant 2 : i32
    %177 = arith.addi %109, %c2_i32_94 : i32
    %c0_95 = arith.constant 0 : index
    %178 = arith.index_cast %177 : i32 to index
    %c0_96 = arith.constant 0 : index
    %179 = vector.load %arg23[%c0_95, %178, %c0_96] : memref<1x8x64xf32, #tpu.memory_space<vmem>>, vector<1x1x64xf32>
    %c2_i32_97 = arith.constant 2 : i32
    %180 = arith.addi %109, %c2_i32_97 : i32
    %c0_98 = arith.constant 0 : index
    %181 = arith.index_cast %180 : i32 to index
    %c0_99 = arith.constant 0 : index
    %182 = vector.load %arg24[%c0_98, %181, %c0_99] : memref<1x8x16xf32, #tpu.memory_space<vmem>>, vector<1x1x16xf32>
    %c2_i32_100 = arith.constant 2 : i32
    %183 = arith.addi %109, %c2_i32_100 : i32
    %c0_101 = arith.constant 0 : index
    %184 = arith.index_cast %183 : i32 to index
    %c0_102 = arith.constant 0 : index
    %185 = vector.load %arg25[%c0_101, %184, %c0_102] : memref<1x8x16xf32, #tpu.memory_space<vmem>>, vector<1x1x16xf32>
    %186 = vector.broadcast %182 : vector<1x1x16xf32> to vector<1x16x16xf32>
    %187 = arith.mulf %186, %106 : vector<1x16x16xf32>
    %cst_103 = arith.constant dense<0.000000e+00> : vector<1x16xf32>
    %188 = vector.multi_reduction <add>, %187, %cst_103 [2] : vector<1x16x16xf32> to vector<1x16xf32>
    %189 = vector.shape_cast %188 : vector<1x16xf32> to vector<1x16x1xf32>
    %190 = vector.broadcast %185 : vector<1x1x16xf32> to vector<1x16x16xf32>
    %191 = arith.mulf %190, %106 : vector<1x16x16xf32>
    %cst_104 = arith.constant dense<0.000000e+00> : vector<1x16xf32>
    %192 = vector.multi_reduction <add>, %191, %cst_104 [2] : vector<1x16x16xf32> to vector<1x16xf32>
    %193 = vector.shape_cast %192 : vector<1x16xf32> to vector<1x16x1xf32>
    %194 = vector.broadcast %176 : vector<1x1x64xf32> to vector<1x16x64xf32>
    %195 = arith.mulf %194, %101 : vector<1x16x64xf32>
    %196 = math.exp %195 : vector<1x16x64xf32>
    %197 = arith.mulf %196, %169 : vector<1x16x64xf32>
    %198 = vector.broadcast %189 : vector<1x16x1xf32> to vector<1x16x64xf32>
    %199 = vector.broadcast %179 : vector<1x1x64xf32> to vector<1x16x64xf32>
    %200 = arith.mulf %198, %199 : vector<1x16x64xf32>
    %201 = arith.addf %197, %200 : vector<1x16x64xf32>
    %202 = vector.broadcast %193 : vector<1x16x1xf32> to vector<1x16x64xf32>
    %203 = arith.mulf %202, %201 : vector<1x16x64xf32>
    %cst_105 = arith.constant dense<0.000000e+00> : vector<1x64xf32>
    %204 = vector.multi_reduction <add>, %203, %cst_105 [1] : vector<1x16x64xf32> to vector<1x64xf32>
    %205 = vector.shape_cast %204 : vector<1x64xf32> to vector<1x1x64xf32>
    %c3_i32_106 = arith.constant 3 : i32
    %206 = arith.addi %109, %c3_i32_106 : i32
    %c0_107 = arith.constant 0 : index
    %207 = arith.index_cast %206 : i32 to index
    %c0_108 = arith.constant 0 : index
    %208 = vector.load %arg22[%c0_107, %207, %c0_108] : memref<1x8x64xf32, #tpu.memory_space<vmem>>, vector<1x1x64xf32>
    %c3_i32_109 = arith.constant 3 : i32
    %209 = arith.addi %109, %c3_i32_109 : i32
    %c0_110 = arith.constant 0 : index
    %210 = arith.index_cast %209 : i32 to index
    %c0_111 = arith.constant 0 : index
    %211 = vector.load %arg23[%c0_110, %210, %c0_111] : memref<1x8x64xf32, #tpu.memory_space<vmem>>, vector<1x1x64xf32>
    %c3_i32_112 = arith.constant 3 : i32
    %212 = arith.addi %109, %c3_i32_112 : i32
    %c0_113 = arith.constant 0 : index
    %213 = arith.index_cast %212 : i32 to index
    %c0_114 = arith.constant 0 : index
    %214 = vector.load %arg24[%c0_113, %213, %c0_114] : memref<1x8x16xf32, #tpu.memory_space<vmem>>, vector<1x1x16xf32>
    %c3_i32_115 = arith.constant 3 : i32
    %215 = arith.addi %109, %c3_i32_115 : i32
    %c0_116 = arith.constant 0 : index
    %216 = arith.index_cast %215 : i32 to index
    %c0_117 = arith.constant 0 : index
    %217 = vector.load %arg25[%c0_116, %216, %c0_117] : memref<1x8x16xf32, #tpu.memory_space<vmem>>, vector<1x1x16xf32>
    %218 = vector.broadcast %214 : vector<1x1x16xf32> to vector<1x16x16xf32>
    %219 = arith.mulf %218, %106 : vector<1x16x16xf32>
    %cst_118 = arith.constant dense<0.000000e+00> : vector<1x16xf32>
    %220 = vector.multi_reduction <add>, %219, %cst_118 [2] : vector<1x16x16xf32> to vector<1x16xf32>
    %221 = vector.shape_cast %220 : vector<1x16xf32> to vector<1x16x1xf32>
    %222 = vector.broadcast %217 : vector<1x1x16xf32> to vector<1x16x16xf32>
    %223 = arith.mulf %222, %106 : vector<1x16x16xf32>
    %cst_119 = arith.constant dense<0.000000e+00> : vector<1x16xf32>
    %224 = vector.multi_reduction <add>, %223, %cst_119 [2] : vector<1x16x16xf32> to vector<1x16xf32>
    %225 = vector.shape_cast %224 : vector<1x16xf32> to vector<1x16x1xf32>
    %226 = vector.broadcast %208 : vector<1x1x64xf32> to vector<1x16x64xf32>
    %227 = arith.mulf %226, %101 : vector<1x16x64xf32>
    %228 = math.exp %227 : vector<1x16x64xf32>
    %229 = arith.mulf %228, %201 : vector<1x16x64xf32>
    %230 = vector.broadcast %221 : vector<1x16x1xf32> to vector<1x16x64xf32>
    %231 = vector.broadcast %211 : vector<1x1x64xf32> to vector<1x16x64xf32>
    %232 = arith.mulf %230, %231 : vector<1x16x64xf32>
    %233 = arith.addf %229, %232 : vector<1x16x64xf32>
    %234 = vector.broadcast %225 : vector<1x16x1xf32> to vector<1x16x64xf32>
    %235 = arith.mulf %234, %233 : vector<1x16x64xf32>
    %cst_120 = arith.constant dense<0.000000e+00> : vector<1x64xf32>
    %236 = vector.multi_reduction <add>, %235, %cst_120 [1] : vector<1x16x64xf32> to vector<1x64xf32>
    %237 = vector.shape_cast %236 : vector<1x64xf32> to vector<1x1x64xf32>
    %c4_i32 = arith.constant 4 : i32
    %238 = arith.addi %109, %c4_i32 : i32
    %c0_121 = arith.constant 0 : index
    %239 = arith.index_cast %238 : i32 to index
    %c0_122 = arith.constant 0 : index
    %240 = vector.load %arg22[%c0_121, %239, %c0_122] : memref<1x8x64xf32, #tpu.memory_space<vmem>>, vector<1x1x64xf32>
    %c4_i32_123 = arith.constant 4 : i32
    %241 = arith.addi %109, %c4_i32_123 : i32
    %c0_124 = arith.constant 0 : index
    %242 = arith.index_cast %241 : i32 to index
    %c0_125 = arith.constant 0 : index
    %243 = vector.load %arg23[%c0_124, %242, %c0_125] : memref<1x8x64xf32, #tpu.memory_space<vmem>>, vector<1x1x64xf32>
    %c4_i32_126 = arith.constant 4 : i32
    %244 = arith.addi %109, %c4_i32_126 : i32
    %c0_127 = arith.constant 0 : index
    %245 = arith.index_cast %244 : i32 to index
    %c0_128 = arith.constant 0 : index
    %246 = vector.load %arg24[%c0_127, %245, %c0_128] : memref<1x8x16xf32, #tpu.memory_space<vmem>>, vector<1x1x16xf32>
    %c4_i32_129 = arith.constant 4 : i32
    %247 = arith.addi %109, %c4_i32_129 : i32
    %c0_130 = arith.constant 0 : index
    %248 = arith.index_cast %247 : i32 to index
    %c0_131 = arith.constant 0 : index
    %249 = vector.load %arg25[%c0_130, %248, %c0_131] : memref<1x8x16xf32, #tpu.memory_space<vmem>>, vector<1x1x16xf32>
    %250 = vector.broadcast %246 : vector<1x1x16xf32> to vector<1x16x16xf32>
    %251 = arith.mulf %250, %106 : vector<1x16x16xf32>
    %cst_132 = arith.constant dense<0.000000e+00> : vector<1x16xf32>
    %252 = vector.multi_reduction <add>, %251, %cst_132 [2] : vector<1x16x16xf32> to vector<1x16xf32>
    %253 = vector.shape_cast %252 : vector<1x16xf32> to vector<1x16x1xf32>
    %254 = vector.broadcast %249 : vector<1x1x16xf32> to vector<1x16x16xf32>
    %255 = arith.mulf %254, %106 : vector<1x16x16xf32>
    %cst_133 = arith.constant dense<0.000000e+00> : vector<1x16xf32>
    %256 = vector.multi_reduction <add>, %255, %cst_133 [2] : vector<1x16x16xf32> to vector<1x16xf32>
    %257 = vector.shape_cast %256 : vector<1x16xf32> to vector<1x16x1xf32>
    %258 = vector.broadcast %240 : vector<1x1x64xf32> to vector<1x16x64xf32>
    %259 = arith.mulf %258, %101 : vector<1x16x64xf32>
    %260 = math.exp %259 : vector<1x16x64xf32>
    %261 = arith.mulf %260, %233 : vector<1x16x64xf32>
    %262 = vector.broadcast %253 : vector<1x16x1xf32> to vector<1x16x64xf32>
    %263 = vector.broadcast %243 : vector<1x1x64xf32> to vector<1x16x64xf32>
    %264 = arith.mulf %262, %263 : vector<1x16x64xf32>
    %265 = arith.addf %261, %264 : vector<1x16x64xf32>
    %266 = vector.broadcast %257 : vector<1x16x1xf32> to vector<1x16x64xf32>
    %267 = arith.mulf %266, %265 : vector<1x16x64xf32>
    %cst_134 = arith.constant dense<0.000000e+00> : vector<1x64xf32>
    %268 = vector.multi_reduction <add>, %267, %cst_134 [1] : vector<1x16x64xf32> to vector<1x64xf32>
    %269 = vector.shape_cast %268 : vector<1x64xf32> to vector<1x1x64xf32>
    %c5_i32 = arith.constant 5 : i32
    %270 = arith.addi %109, %c5_i32 : i32
    %c0_135 = arith.constant 0 : index
    %271 = arith.index_cast %270 : i32 to index
    %c0_136 = arith.constant 0 : index
    %272 = vector.load %arg22[%c0_135, %271, %c0_136] : memref<1x8x64xf32, #tpu.memory_space<vmem>>, vector<1x1x64xf32>
    %c5_i32_137 = arith.constant 5 : i32
    %273 = arith.addi %109, %c5_i32_137 : i32
    %c0_138 = arith.constant 0 : index
    %274 = arith.index_cast %273 : i32 to index
    %c0_139 = arith.constant 0 : index
    %275 = vector.load %arg23[%c0_138, %274, %c0_139] : memref<1x8x64xf32, #tpu.memory_space<vmem>>, vector<1x1x64xf32>
    %c5_i32_140 = arith.constant 5 : i32
    %276 = arith.addi %109, %c5_i32_140 : i32
    %c0_141 = arith.constant 0 : index
    %277 = arith.index_cast %276 : i32 to index
    %c0_142 = arith.constant 0 : index
    %278 = vector.load %arg24[%c0_141, %277, %c0_142] : memref<1x8x16xf32, #tpu.memory_space<vmem>>, vector<1x1x16xf32>
    %c5_i32_143 = arith.constant 5 : i32
    %279 = arith.addi %109, %c5_i32_143 : i32
    %c0_144 = arith.constant 0 : index
    %280 = arith.index_cast %279 : i32 to index
    %c0_145 = arith.constant 0 : index
    %281 = vector.load %arg25[%c0_144, %280, %c0_145] : memref<1x8x16xf32, #tpu.memory_space<vmem>>, vector<1x1x16xf32>
    %282 = vector.broadcast %278 : vector<1x1x16xf32> to vector<1x16x16xf32>
    %283 = arith.mulf %282, %106 : vector<1x16x16xf32>
    %cst_146 = arith.constant dense<0.000000e+00> : vector<1x16xf32>
    %284 = vector.multi_reduction <add>, %283, %cst_146 [2] : vector<1x16x16xf32> to vector<1x16xf32>
    %285 = vector.shape_cast %284 : vector<1x16xf32> to vector<1x16x1xf32>
    %286 = vector.broadcast %281 : vector<1x1x16xf32> to vector<1x16x16xf32>
    %287 = arith.mulf %286, %106 : vector<1x16x16xf32>
    %cst_147 = arith.constant dense<0.000000e+00> : vector<1x16xf32>
    %288 = vector.multi_reduction <add>, %287, %cst_147 [2] : vector<1x16x16xf32> to vector<1x16xf32>
    %289 = vector.shape_cast %288 : vector<1x16xf32> to vector<1x16x1xf32>
    %290 = vector.broadcast %272 : vector<1x1x64xf32> to vector<1x16x64xf32>
    %291 = arith.mulf %290, %101 : vector<1x16x64xf32>
    %292 = math.exp %291 : vector<1x16x64xf32>
    %293 = arith.mulf %292, %265 : vector<1x16x64xf32>
    %294 = vector.broadcast %285 : vector<1x16x1xf32> to vector<1x16x64xf32>
    %295 = vector.broadcast %275 : vector<1x1x64xf32> to vector<1x16x64xf32>
    %296 = arith.mulf %294, %295 : vector<1x16x64xf32>
    %297 = arith.addf %293, %296 : vector<1x16x64xf32>
    %298 = vector.broadcast %289 : vector<1x16x1xf32> to vector<1x16x64xf32>
    %299 = arith.mulf %298, %297 : vector<1x16x64xf32>
    %cst_148 = arith.constant dense<0.000000e+00> : vector<1x64xf32>
    %300 = vector.multi_reduction <add>, %299, %cst_148 [1] : vector<1x16x64xf32> to vector<1x64xf32>
    %301 = vector.shape_cast %300 : vector<1x64xf32> to vector<1x1x64xf32>
    %c6_i32 = arith.constant 6 : i32
    %302 = arith.addi %109, %c6_i32 : i32
    %c0_149 = arith.constant 0 : index
    %303 = arith.index_cast %302 : i32 to index
    %c0_150 = arith.constant 0 : index
    %304 = vector.load %arg22[%c0_149, %303, %c0_150] : memref<1x8x64xf32, #tpu.memory_space<vmem>>, vector<1x1x64xf32>
    %c6_i32_151 = arith.constant 6 : i32
    %305 = arith.addi %109, %c6_i32_151 : i32
    %c0_152 = arith.constant 0 : index
    %306 = arith.index_cast %305 : i32 to index
    %c0_153 = arith.constant 0 : index
    %307 = vector.load %arg23[%c0_152, %306, %c0_153] : memref<1x8x64xf32, #tpu.memory_space<vmem>>, vector<1x1x64xf32>
    %c6_i32_154 = arith.constant 6 : i32
    %308 = arith.addi %109, %c6_i32_154 : i32
    %c0_155 = arith.constant 0 : index
    %309 = arith.index_cast %308 : i32 to index
    %c0_156 = arith.constant 0 : index
    %310 = vector.load %arg24[%c0_155, %309, %c0_156] : memref<1x8x16xf32, #tpu.memory_space<vmem>>, vector<1x1x16xf32>
    %c6_i32_157 = arith.constant 6 : i32
    %311 = arith.addi %109, %c6_i32_157 : i32
    %c0_158 = arith.constant 0 : index
    %312 = arith.index_cast %311 : i32 to index
    %c0_159 = arith.constant 0 : index
    %313 = vector.load %arg25[%c0_158, %312, %c0_159] : memref<1x8x16xf32, #tpu.memory_space<vmem>>, vector<1x1x16xf32>
    %314 = vector.broadcast %310 : vector<1x1x16xf32> to vector<1x16x16xf32>
    %315 = arith.mulf %314, %106 : vector<1x16x16xf32>
    %cst_160 = arith.constant dense<0.000000e+00> : vector<1x16xf32>
    %316 = vector.multi_reduction <add>, %315, %cst_160 [2] : vector<1x16x16xf32> to vector<1x16xf32>
    %317 = vector.shape_cast %316 : vector<1x16xf32> to vector<1x16x1xf32>
    %318 = vector.broadcast %313 : vector<1x1x16xf32> to vector<1x16x16xf32>
    %319 = arith.mulf %318, %106 : vector<1x16x16xf32>
    %cst_161 = arith.constant dense<0.000000e+00> : vector<1x16xf32>
    %320 = vector.multi_reduction <add>, %319, %cst_161 [2] : vector<1x16x16xf32> to vector<1x16xf32>
    %321 = vector.shape_cast %320 : vector<1x16xf32> to vector<1x16x1xf32>
    %322 = vector.broadcast %304 : vector<1x1x64xf32> to vector<1x16x64xf32>
    %323 = arith.mulf %322, %101 : vector<1x16x64xf32>
    %324 = math.exp %323 : vector<1x16x64xf32>
    %325 = arith.mulf %324, %297 : vector<1x16x64xf32>
    %326 = vector.broadcast %317 : vector<1x16x1xf32> to vector<1x16x64xf32>
    %327 = vector.broadcast %307 : vector<1x1x64xf32> to vector<1x16x64xf32>
    %328 = arith.mulf %326, %327 : vector<1x16x64xf32>
    %329 = arith.addf %325, %328 : vector<1x16x64xf32>
    %330 = vector.broadcast %321 : vector<1x16x1xf32> to vector<1x16x64xf32>
    %331 = arith.mulf %330, %329 : vector<1x16x64xf32>
    %cst_162 = arith.constant dense<0.000000e+00> : vector<1x64xf32>
    %332 = vector.multi_reduction <add>, %331, %cst_162 [1] : vector<1x16x64xf32> to vector<1x64xf32>
    %333 = vector.shape_cast %332 : vector<1x64xf32> to vector<1x1x64xf32>
    %c7_i32 = arith.constant 7 : i32
    %334 = arith.addi %109, %c7_i32 : i32
    %c0_163 = arith.constant 0 : index
    %335 = arith.index_cast %334 : i32 to index
    %c0_164 = arith.constant 0 : index
    %336 = vector.load %arg22[%c0_163, %335, %c0_164] : memref<1x8x64xf32, #tpu.memory_space<vmem>>, vector<1x1x64xf32>
    %c7_i32_165 = arith.constant 7 : i32
    %337 = arith.addi %109, %c7_i32_165 : i32
    %c0_166 = arith.constant 0 : index
    %338 = arith.index_cast %337 : i32 to index
    %c0_167 = arith.constant 0 : index
    %339 = vector.load %arg23[%c0_166, %338, %c0_167] : memref<1x8x64xf32, #tpu.memory_space<vmem>>, vector<1x1x64xf32>
    %c7_i32_168 = arith.constant 7 : i32
    %340 = arith.addi %109, %c7_i32_168 : i32
    %c0_169 = arith.constant 0 : index
    %341 = arith.index_cast %340 : i32 to index
    %c0_170 = arith.constant 0 : index
    %342 = vector.load %arg24[%c0_169, %341, %c0_170] : memref<1x8x16xf32, #tpu.memory_space<vmem>>, vector<1x1x16xf32>
    %c7_i32_171 = arith.constant 7 : i32
    %343 = arith.addi %109, %c7_i32_171 : i32
    %c0_172 = arith.constant 0 : index
    %344 = arith.index_cast %343 : i32 to index
    %c0_173 = arith.constant 0 : index
    %345 = vector.load %arg25[%c0_172, %344, %c0_173] : memref<1x8x16xf32, #tpu.memory_space<vmem>>, vector<1x1x16xf32>
    %346 = vector.broadcast %342 : vector<1x1x16xf32> to vector<1x16x16xf32>
    %347 = arith.mulf %346, %106 : vector<1x16x16xf32>
    %cst_174 = arith.constant dense<0.000000e+00> : vector<1x16xf32>
    %348 = vector.multi_reduction <add>, %347, %cst_174 [2] : vector<1x16x16xf32> to vector<1x16xf32>
    %349 = vector.shape_cast %348 : vector<1x16xf32> to vector<1x16x1xf32>
    %350 = vector.broadcast %345 : vector<1x1x16xf32> to vector<1x16x16xf32>
    %351 = arith.mulf %350, %106 : vector<1x16x16xf32>
    %cst_175 = arith.constant dense<0.000000e+00> : vector<1x16xf32>
    %352 = vector.multi_reduction <add>, %351, %cst_175 [2] : vector<1x16x16xf32> to vector<1x16xf32>
    %353 = vector.shape_cast %352 : vector<1x16xf32> to vector<1x16x1xf32>
    %354 = vector.broadcast %336 : vector<1x1x64xf32> to vector<1x16x64xf32>
    %355 = arith.mulf %354, %101 : vector<1x16x64xf32>
    %356 = math.exp %355 : vector<1x16x64xf32>
    %357 = arith.mulf %356, %329 : vector<1x16x64xf32>
    %358 = vector.broadcast %349 : vector<1x16x1xf32> to vector<1x16x64xf32>
    %359 = vector.broadcast %339 : vector<1x1x64xf32> to vector<1x16x64xf32>
    %360 = arith.mulf %358, %359 : vector<1x16x64xf32>
    %361 = arith.addf %357, %360 : vector<1x16x64xf32>
    %362 = vector.broadcast %353 : vector<1x16x1xf32> to vector<1x16x64xf32>
    %363 = arith.mulf %362, %361 : vector<1x16x64xf32>
    %cst_176 = arith.constant dense<0.000000e+00> : vector<1x64xf32>
    %364 = vector.multi_reduction <add>, %363, %cst_176 [1] : vector<1x16x64xf32> to vector<1x64xf32>
    %365 = vector.shape_cast %364 : vector<1x64xf32> to vector<1x1x64xf32>
    %366 = tpu.concatenate %141, %173, %205, %237, %269, %301, %333, %365 in 1 : vector<1x1x64xf32>, vector<1x1x64xf32>, vector<1x1x64xf32>, vector<1x1x64xf32>, vector<1x1x64xf32>, vector<1x1x64xf32>, vector<1x1x64xf32>, vector<1x1x64xf32> -> vector<1x8x64xf32>
    %c0_177 = arith.constant 0 : index
    %367 = arith.index_cast %109 : i32 to index
    %c0_178 = arith.constant 0 : index
    %368 = vector.load %arg26[%c0_177, %367, %c0_178] : memref<1x8x64xf32, #tpu.memory_space<vmem>>, vector<1x8x64xf32>
    tpu.vector_store %arg26[%c0_177, %367, %c0_178], %366 {strides = array<i32>} : memref<1x8x64xf32, #tpu.memory_space<vmem>>, vector<1x8x64xf32>,
    %c1_i32_179 = arith.constant 1 : i32
    %c0_180 = arith.constant 0 : index
    %c0_181 = arith.constant 0 : index
    %c0_182 = arith.constant 0 : index
    %369 = vector.load %arg26[%c0_180, %c0_181, %c0_182] : memref<1x8x64xf32, #tpu.memory_space<vmem>>, vector<1x8x64xf32>
    %370 = vector.shape_cast %369 : vector<1x8x64xf32> to vector<8x64xf32>
    %c0_183 = arith.constant 0 : index
    %c0_184 = arith.constant 0 : index
    %371 = vector.load %arg10[%c0_183, %c0_184] : memref<1x64xf32, #tpu.memory_space<vmem>>, vector<1x64xf32>
    %372 = vector.broadcast %371 : vector<1x64xf32> to vector<8x64xf32>
    %373 = arith.mulf %372, %73 : vector<8x64xf32>
    %374 = arith.addf %370, %373 : vector<8x64xf32>
    %375 = arith.negf %6 : vector<8x64xf32>
    %376 = math.exp %375 : vector<8x64xf32>
    %cst_185 = arith.constant 1.000000e+00 : f32
    %377 = vector.broadcast %cst_185 : f32 to vector<8x64xf32>
    %378 = arith.addf %377, %376 : vector<8x64xf32>
    %379 = arith.divf %377, %378 : vector<8x64xf32>
    %380 = arith.mulf %6, %379 : vector<8x64xf32>
    %381 = arith.mulf %374, %380 : vector<8x64xf32>
    %382 = arith.truncf %381 : vector<8x64xf32> to vector<8x64xbf16>
    %c0_186 = arith.constant 0 : index
    %c0_187 = arith.constant 0 : index
    %383 = vector.load %arg11[%c0_186, %c0_187] : memref<64x32xbf16, #tpu.memory_space<vmem>>, vector<64x32xbf16>
    %cst_188 = arith.constant dense<0.000000e+00> : vector<8x32xf32>
    %384 = tpu.matmul %382, %383, %cst_188 {dimension_numbers = #tpu.dot_dimension_numbers<[1], [0], [0], [1], [0, 0, 1, 1], [], []>} : vector<8x64xbf16>, vector<64x32xbf16>, vector<8x32xf32> -> vector<8x32xf32>
    %385 = arith.addf %384, %0 : vector<8x32xf32>
    %c0_189 = arith.constant 0 : index
    %c0_190 = arith.constant 0 : index
    %386 = vector.load %arg12[%c0_189, %c0_190] : memref<1x32xf32, #tpu.memory_space<vmem>>, vector<1x32xf32>
    %c0_191 = arith.constant 0 : index
    %c0_192 = arith.constant 0 : index
    %387 = vector.load %arg13[%c0_191, %c0_192] : memref<1x32xf32, #tpu.memory_space<vmem>>, vector<1x32xf32>
    %cst_193 = arith.constant dense<0.000000e+00> : vector<8xf32>
    %388 = vector.multi_reduction <add>, %385, %cst_193 [1] : vector<8x32xf32> to vector<8xf32>
    %389 = vector.shape_cast %388 : vector<8xf32> to vector<8x1xf32>
    %cst_194 = arith.constant 3.200000e+01 : f32
    %390 = vector.broadcast %cst_194 : f32 to vector<8x1xf32>
    %391 = arith.divf %389, %390 : vector<8x1xf32>
    %392 = vector.broadcast %391 : vector<8x1xf32> to vector<8x32xf32>
    %393 = arith.subf %385, %392 : vector<8x32xf32>
    %394 = arith.mulf %393, %393 : vector<8x32xf32>
    %cst_195 = arith.constant dense<0.000000e+00> : vector<8xf32>
    %395 = vector.multi_reduction <add>, %394, %cst_195 [1] : vector<8x32xf32> to vector<8xf32>
    %396 = vector.shape_cast %395 : vector<8xf32> to vector<8x1xf32>
    %cst_196 = arith.constant 3.200000e+01 : f32
    %397 = vector.broadcast %cst_196 : f32 to vector<8x1xf32>
    %398 = arith.divf %396, %397 : vector<8x1xf32>
    %399 = vector.broadcast %391 : vector<8x1xf32> to vector<8x32xf32>
    %400 = arith.subf %385, %399 : vector<8x32xf32>
    %cst_197 = arith.constant 9.99999996E-13 : f32
    %401 = vector.broadcast %cst_197 : f32 to vector<8x1xf32>
    %402 = arith.addf %398, %401 : vector<8x1xf32>
    %403 = math.rsqrt %402 : vector<8x1xf32>
    %404 = vector.broadcast %403 : vector<8x1xf32> to vector<8x32xf32>
    %405 = arith.mulf %400, %404 : vector<8x32xf32>
    %406 = vector.broadcast %386 : vector<1x32xf32> to vector<8x32xf32>
    %407 = arith.mulf %405, %406 : vector<8x32xf32>
    %408 = vector.broadcast %387 : vector<1x32xf32> to vector<8x32xf32>
    %409 = arith.addf %407, %408 : vector<8x32xf32>
    %410 = arith.truncf %409 : vector<8x32xf32> to vector<8x32xbf16>
    %c0_198 = arith.constant 0 : index
    %c0_199 = arith.constant 0 : index
    %411 = vector.load %arg14[%c0_198, %c0_199] : memref<32x128xbf16, #tpu.memory_space<vmem>>, vector<32x128xbf16>
    %cst_200 = arith.constant dense<0.000000e+00> : vector<8x128xf32>
    %412 = tpu.matmul %410, %411, %cst_200 {dimension_numbers = #tpu.dot_dimension_numbers<[1], [0], [0], [1], [0, 0, 1, 1], [], []>} : vector<8x32xbf16>, vector<32x128xbf16>, vector<8x128xf32> -> vector<8x128xf32>
    %c0_201 = arith.constant 0 : index
    %c0_202 = arith.constant 0 : index
    %413 = vector.load %arg15[%c0_201, %c0_202] : memref<1x128xf32, #tpu.memory_space<vmem>>, vector<1x128xf32>
    %414 = vector.broadcast %413 : vector<1x128xf32> to vector<8x128xf32>
    %415 = arith.addf %412, %414 : vector<8x128xf32>
    %cst_203 = arith.constant 5.000000e-01 : f32
    %416 = vector.broadcast %cst_203 : f32 to vector<8x128xf32>
    %417 = arith.mulf %416, %415 : vector<8x128xf32>
    %cst_204 = arith.constant 0.707106769 : f32
    %418 = vector.broadcast %cst_204 : f32 to vector<8x128xf32>
    %419 = arith.mulf %415, %418 : vector<8x128xf32>
    %420 = math.erf %419 : vector<8x128xf32>
    %cst_205 = arith.constant 1.000000e+00 : f32
    %421 = vector.broadcast %cst_205 : f32 to vector<8x128xf32>
    %422 = arith.addf %421, %420 : vector<8x128xf32>
    %423 = arith.mulf %417, %422 : vector<8x128xf32>
    %424 = arith.truncf %423 : vector<8x128xf32> to vector<8x128xbf16>
    %c0_206 = arith.constant 0 : index
    %c0_207 = arith.constant 0 : index
    %425 = vector.load %arg16[%c0_206, %c0_207] : memref<128x32xbf16, #tpu.memory_space<vmem>>, vector<128x32xbf16>
    %cst_208 = arith.constant dense<0.000000e+00> : vector<8x32xf32>
    %426 = tpu.matmul %424, %425, %cst_208 {dimension_numbers = #tpu.dot_dimension_numbers<[1], [0], [0], [1], [0, 0, 1, 1], [], []>} : vector<8x128xbf16>, vector<128x32xbf16>, vector<8x32xf32> -> vector<8x32xf32>
    %c0_209 = arith.constant 0 : index
    %c0_210 = arith.constant 0 : index
    %427 = vector.load %arg17[%c0_209, %c0_210] : memref<1x32xf32, #tpu.memory_space<vmem>>, vector<1x32xf32>
    %428 = vector.broadcast %427 : vector<1x32xf32> to vector<8x32xf32>
    %429 = arith.addf %426, %428 : vector<8x32xf32>
    %430 = arith.addf %429, %409 : vector<8x32xf32>
    %c0_211 = arith.constant 0 : index
    %c0_212 = arith.constant 0 : index
    %431 = vector.load %arg18[%c0_211, %c0_212] : memref<1x32xf32, #tpu.memory_space<vmem>>, vector<1x32xf32>
    %c0_213 = arith.constant 0 : index
    %c0_214 = arith.constant 0 : index
    %432 = vector.load %arg19[%c0_213, %c0_214] : memref<1x32xf32, #tpu.memory_space<vmem>>, vector<1x32xf32>
    %cst_215 = arith.constant dense<0.000000e+00> : vector<8xf32>
    %433 = vector.multi_reduction <add>, %430, %cst_215 [1] : vector<8x32xf32> to vector<8xf32>
    %434 = vector.shape_cast %433 : vector<8xf32> to vector<8x1xf32>
    %cst_216 = arith.constant 3.200000e+01 : f32
    %435 = vector.broadcast %cst_216 : f32 to vector<8x1xf32>
    %436 = arith.divf %434, %435 : vector<8x1xf32>
    %437 = vector.broadcast %436 : vector<8x1xf32> to vector<8x32xf32>
    %438 = arith.subf %430, %437 : vector<8x32xf32>
    %439 = arith.mulf %438, %438 : vector<8x32xf32>
    %cst_217 = arith.constant dense<0.000000e+00> : vector<8xf32>
    %440 = vector.multi_reduction <add>, %439, %cst_217 [1] : vector<8x32xf32> to vector<8xf32>
    %441 = vector.shape_cast %440 : vector<8xf32> to vector<8x1xf32>
    %cst_218 = arith.constant 3.200000e+01 : f32
    %442 = vector.broadcast %cst_218 : f32 to vector<8x1xf32>
    %443 = arith.divf %441, %442 : vector<8x1xf32>
    %444 = vector.broadcast %436 : vector<8x1xf32> to vector<8x32xf32>
    %445 = arith.subf %430, %444 : vector<8x32xf32>
    %cst_219 = arith.constant 9.99999996E-13 : f32
    %446 = vector.broadcast %cst_219 : f32 to vector<8x1xf32>
    %447 = arith.addf %443, %446 : vector<8x1xf32>
    %448 = math.rsqrt %447 : vector<8x1xf32>
    %449 = vector.broadcast %448 : vector<8x1xf32> to vector<8x32xf32>
    %450 = arith.mulf %445, %449 : vector<8x32xf32>
    %451 = vector.broadcast %431 : vector<1x32xf32> to vector<8x32xf32>
    %452 = arith.mulf %450, %451 : vector<8x32xf32>
    %453 = vector.broadcast %432 : vector<1x32xf32> to vector<8x32xf32>
    %454 = arith.addf %452, %453 : vector<8x32xf32>
    %c0_220 = arith.constant 0 : index
    %c0_221 = arith.constant 0 : index
    %455 = vector.load %arg20[%c0_220, %c0_221] : memref<8x32xf32, #tpu.memory_space<vmem>>, vector<8x32xf32>
    tpu.vector_store %arg20[%c0_220, %c0_221], %454 {strides = array<i32>} : memref<8x32xf32, #tpu.memory_space<vmem>>, vector<8x32xf32>,
    return
  }
  func.func @transform_0(%arg0: i32) -> (i32, i32) {
    %c0_i32 = arith.constant 0 : i32
    %c0_i32_0 = arith.constant 0 : i32
    return %arg0, %c0_i32 : i32, i32
  }
  func.func @transform_1(%arg0: i32) -> (i32, i32) {
    %c0_i32 = arith.constant 0 : i32
    %c0_i32_0 = arith.constant 0 : i32
    %c0_i32_1 = arith.constant 0 : i32
    return %c0_i32, %c0_i32_0 : i32, i32
  }
  func.func @transform_2(%arg0: i32) -> (i32, i32) {
    %c0_i32 = arith.constant 0 : i32
    %c0_i32_0 = arith.constant 0 : i32
    %c0_i32_1 = arith.constant 0 : i32
    return %c0_i32, %c0_i32_0 : i32, i32
  }
  func.func @transform_3(%arg0: i32) -> (i32, i32) {
    %c0_i32 = arith.constant 0 : i32
    %c0_i32_0 = arith.constant 0 : i32
    %c0_i32_1 = arith.constant 0 : i32
    return %c0_i32, %c0_i32_0 : i32, i32
  }
  func.func @transform_4(%arg0: i32) -> (i32, i32) {
    %c0_i32 = arith.constant 0 : i32
    %c0_i32_0 = arith.constant 0 : i32
    %c0_i32_1 = arith.constant 0 : i32
    return %c0_i32, %c0_i32_0 : i32, i32
  }
  func.func @transform_5(%arg0: i32) -> (i32, i32) {
    %c0_i32 = arith.constant 0 : i32
    %c0_i32_0 = arith.constant 0 : i32
    %c0_i32_1 = arith.constant 0 : i32
    return %c0_i32, %c0_i32_0 : i32, i32
  }
  func.func @transform_6(%arg0: i32) -> (i32, i32) {
    %c0_i32 = arith.constant 0 : i32
    %c0_i32_0 = arith.constant 0 : i32
    %c0_i32_1 = arith.constant 0 : i32
    return %c0_i32, %c0_i32_0 : i32, i32
  }
  func.func @transform_7(%arg0: i32) -> (i32, i32) {
    %c0_i32 = arith.constant 0 : i32
    %c0_i32_0 = arith.constant 0 : i32
    %c0_i32_1 = arith.constant 0 : i32
    return %c0_i32, %c0_i32_0 : i32, i32
  }
  func.func @transform_8(%arg0: i32) -> (i32, i32) {
    %c0_i32 = arith.constant 0 : i32
    %c0_i32_0 = arith.constant 0 : i32
    %c0_i32_1 = arith.constant 0 : i32
    return %c0_i32, %c0_i32_0 : i32, i32
  }
  func.func @transform_9(%arg0: i32) -> (i32, i32) {
    %c0_i32 = arith.constant 0 : i32
    %c0_i32_0 = arith.constant 0 : i32
    %c0_i32_1 = arith.constant 0 : i32
    return %c0_i32, %c0_i32_0 : i32, i32
  }
  func.func @transform_10(%arg0: i32) -> (i32, i32) {
    %c0_i32 = arith.constant 0 : i32
    %c0_i32_0 = arith.constant 0 : i32
    %c0_i32_1 = arith.constant 0 : i32
    return %c0_i32, %c0_i32_0 : i32, i32
  }
  func.func @transform_11(%arg0: i32) -> (i32, i32) {
    %c0_i32 = arith.constant 0 : i32
    %c0_i32_0 = arith.constant 0 : i32
    %c0_i32_1 = arith.constant 0 : i32
    return %c0_i32, %c0_i32_0 : i32, i32
  }
  func.func @transform_12(%arg0: i32) -> (i32, i32) {
    %c0_i32 = arith.constant 0 : i32
    %c0_i32_0 = arith.constant 0 : i32
    %c0_i32_1 = arith.constant 0 : i32
    return %c0_i32, %c0_i32_0 : i32, i32
  }
  func.func @transform_13(%arg0: i32) -> (i32, i32) {
    %c0_i32 = arith.constant 0 : i32
    %c0_i32_0 = arith.constant 0 : i32
    %c0_i32_1 = arith.constant 0 : i32
    return %c0_i32, %c0_i32_0 : i32, i32
  }
  func.func @transform_14(%arg0: i32) -> (i32, i32) {
    %c0_i32 = arith.constant 0 : i32
    %c0_i32_0 = arith.constant 0 : i32
    %c0_i32_1 = arith.constant 0 : i32
    return %c0_i32, %c0_i32_0 : i32, i32
  }
  func.func @transform_15(%arg0: i32) -> (i32, i32) {
    %c0_i32 = arith.constant 0 : i32
    %c0_i32_0 = arith.constant 0 : i32
    %c0_i32_1 = arith.constant 0 : i32
    return %c0_i32, %c0_i32_0 : i32, i32
  }
  func.func @transform_16(%arg0: i32) -> (i32, i32) {
    %c0_i32 = arith.constant 0 : i32
    %c0_i32_0 = arith.constant 0 : i32
    %c0_i32_1 = arith.constant 0 : i32
    return %c0_i32, %c0_i32_0 : i32, i32
  }
  func.func @transform_17(%arg0: i32) -> (i32, i32) {
    %c0_i32 = arith.constant 0 : i32
    %c0_i32_0 = arith.constant 0 : i32
    %c0_i32_1 = arith.constant 0 : i32
    return %c0_i32, %c0_i32_0 : i32, i32
  }
  func.func @transform_18(%arg0: i32) -> (i32, i32) {
    %c0_i32 = arith.constant 0 : i32
    %c0_i32_0 = arith.constant 0 : i32
    %c0_i32_1 = arith.constant 0 : i32
    return %c0_i32, %c0_i32_0 : i32, i32
  }
  func.func @transform_19(%arg0: i32) -> (i32, i32) {
    %c0_i32 = arith.constant 0 : i32
    %c0_i32_0 = arith.constant 0 : i32
    return %arg0, %c0_i32 : i32, i32
  }
}

module attributes {stable_mosaic.version = 11 : i64} {
  func.func @_mamba_layer_kernel(%arg0: i32, %arg1: memref<8x32xf32, #tpu.memory_space<vmem>>, %arg2: memref<32x64xbf16, #tpu.memory_space<vmem>>, %arg3: memref<32x64xbf16, #tpu.memory_space<vmem>>, %arg4: memref<4x64xf32, #tpu.memory_space<vmem>>, %arg5: memref<1x64xf32, #tpu.memory_space<vmem>>, %arg6: memref<64x128xf32, #tpu.memory_space<vmem>>, %arg7: memref<8x64xf32, #tpu.memory_space<vmem>>, %arg8: memref<1x64xf32, #tpu.memory_space<vmem>>, %arg9: memref<16x64xf32, #tpu.memory_space<vmem>>, %arg10: memref<1x64xf32, #tpu.memory_space<vmem>>, %arg11: memref<64x32xbf16, #tpu.memory_space<vmem>>, %arg12: memref<1x32xf32, #tpu.memory_space<vmem>>, %arg13: memref<1x32xf32, #tpu.memory_space<vmem>>, %arg14: memref<32x128xbf16, #tpu.memory_space<vmem>>, %arg15: memref<1x128xf32, #tpu.memory_space<vmem>>, %arg16: memref<128x32xbf16, #tpu.memory_space<vmem>>, %arg17: memref<1x32xf32, #tpu.memory_space<vmem>>, %arg18: memref<1x32xf32, #tpu.memory_space<vmem>>, %arg19: memref<1x32xf32, #tpu.memory_space<vmem>>, %arg20: memref<8x32xf32, #tpu.memory_space<vmem>>, %arg21: memref<11x64xf32, #tpu.memory_space<vmem>>, %arg22: memref<1x8x64xf32, #tpu.memory_space<vmem>>, %arg23: memref<1x8x64xf32, #tpu.memory_space<vmem>>, %arg24: memref<1x8x16xf32, #tpu.memory_space<vmem>>, %arg25: memref<1x8x16xf32, #tpu.memory_space<vmem>>, %arg26: memref<1x8x64xf32, #tpu.memory_space<vmem>>) attributes {dimension_semantics = [#tpu.dimension_semantics<parallel>], iteration_bounds = array<i64: 2>, scalar_prefetch = 0 : i64, scratch_operands = 6 : i64, tpu.core_type = #tpu.core_type<tc>, window_params = [{transform_indices = @transform_0, window_bounds = array<i64: 8, 32>}, {pipeline_mode = #tpu.pipeline_mode<synchronous>, transform_indices = @transform_1, window_bounds = array<i64: 32, 64>}, {pipeline_mode = #tpu.pipeline_mode<synchronous>, transform_indices = @transform_2, window_bounds = array<i64: 32, 64>}, {pipeline_mode = #tpu.pipeline_mode<synchronous>, transform_indices = @transform_3, window_bounds = array<i64: 4, 64>}, {pipeline_mode = #tpu.pipeline_mode<synchronous>, transform_indices = @transform_4, window_bounds = array<i64: 1, 64>}, {pipeline_mode = #tpu.pipeline_mode<synchronous>, transform_indices = @transform_5, window_bounds = array<i64: 64, 128>}, {pipeline_mode = #tpu.pipeline_mode<synchronous>, transform_indices = @transform_6, window_bounds = array<i64: 8, 64>}, {pipeline_mode = #tpu.pipeline_mode<synchronous>, transform_indices = @transform_7, window_bounds = array<i64: 1, 64>}, {pipeline_mode = #tpu.pipeline_mode<synchronous>, transform_indices = @transform_8, window_bounds = array<i64: 16, 64>}, {pipeline_mode = #tpu.pipeline_mode<synchronous>, transform_indices = @transform_9, window_bounds = array<i64: 1, 64>}, {pipeline_mode = #tpu.pipeline_mode<synchronous>, transform_indices = @transform_10, window_bounds = array<i64: 64, 32>}, {pipeline_mode = #tpu.pipeline_mode<synchronous>, transform_indices = @transform_11, window_bounds = array<i64: 1, 32>}, {pipeline_mode = #tpu.pipeline_mode<synchronous>, transform_indices = @transform_12, window_bounds = array<i64: 1, 32>}, {pipeline_mode = #tpu.pipeline_mode<synchronous>, transform_indices = @transform_13, window_bounds = array<i64: 32, 128>}, {pipeline_mode = #tpu.pipeline_mode<synchronous>, transform_indices = @transform_14, window_bounds = array<i64: 1, 128>}, {pipeline_mode = #tpu.pipeline_mode<synchronous>, transform_indices = @transform_15, window_bounds = array<i64: 128, 32>}, {pipeline_mode = #tpu.pipeline_mode<synchronous>, transform_indices = @transform_16, window_bounds = array<i64: 1, 32>}, {pipeline_mode = #tpu.pipeline_mode<synchronous>, transform_indices = @transform_17, window_bounds = array<i64: 1, 32>}, {pipeline_mode = #tpu.pipeline_mode<synchronous>, transform_indices = @transform_18, window_bounds = array<i64: 1, 32>}, {transform_indices = @transform_19, window_bounds = array<i64: 8, 32>}]} {
    %c0 = arith.constant 0 : index
    %c0_0 = arith.constant 0 : index
    %0 = vector.load %arg1[%c0, %c0_0] : memref<8x32xf32, #tpu.memory_space<vmem>>, vector<8x32xf32>
    %1 = arith.truncf %0 : vector<8x32xf32> to vector<8x32xbf16>
    %c0_1 = arith.constant 0 : index
    %c0_2 = arith.constant 0 : index
    %2 = vector.load %arg2[%c0_1, %c0_2] : memref<32x64xbf16, #tpu.memory_space<vmem>>, vector<32x64xbf16>
    %cst = arith.constant dense<0.000000e+00> : vector<8x64xf32>
    %3 = tpu.matmul %1, %2, %cst {dimension_numbers = #tpu.dot_dimension_numbers<[1], [0], [0], [1], [0, 0, 1, 1], [], []>} : vector<8x32xbf16>, vector<32x64xbf16>, vector<8x64xf32> -> vector<8x64xf32>
    %4 = arith.truncf %0 : vector<8x32xf32> to vector<8x32xbf16>
    %c0_3 = arith.constant 0 : index
    %c0_4 = arith.constant 0 : index
    %5 = vector.load %arg3[%c0_3, %c0_4] : memref<32x64xbf16, #tpu.memory_space<vmem>>, vector<32x64xbf16>
    %cst_5 = arith.constant dense<0.000000e+00> : vector<8x64xf32>
    %6 = tpu.matmul %4, %5, %cst_5 {dimension_numbers = #tpu.dot_dimension_numbers<[1], [0], [0], [1], [0, 0, 1, 1], [], []>} : vector<8x32xbf16>, vector<32x64xbf16>, vector<8x64xf32> -> vector<8x64xf32>
    %cst_6 = arith.constant 0.000000e+00 : f32
    %7 = vector.broadcast %cst_6 : f32 to vector<3x64xf32>
    %c0_7 = arith.constant 0 : index
    %c0_8 = arith.constant 0 : index
    %8 = vector.load %arg21[%c0_7, %c0_8] : memref<11x64xf32, #tpu.memory_space<vmem>>, vector<3x64xf32>
    tpu.vector_store %arg21[%c0_7, %c0_8], %7 {strides = array<i32>} : memref<11x64xf32, #tpu.memory_space<vmem>>, vector<3x64xf32>,
    %c3 = arith.constant 3 : index
    %c0_9 = arith.constant 0 : index
    %9 = vector.load %arg21[%c3, %c0_9] : memref<11x64xf32, #tpu.memory_space<vmem>>, vector<8x64xf32>
    tpu.vector_store %arg21[%c3, %c0_9], %3 {strides = array<i32>} : memref<11x64xf32, #tpu.memory_space<vmem>>, vector<8x64xf32>,
    %10 = tpu.iota {dimensions = array<i32: 0>} : vector<8x1xi32>
    %c8_i32 = arith.constant 8 : i32
    %c0_i32 = arith.constant 0 : i32
    %11 = arith.cmpi eq, %c8_i32, %c0_i32 : i32
    %c1_i32 = arith.constant 1 : i32
    %12 = arith.select %11, %c1_i32, %c8_i32 : i32
    %13 = vector.broadcast %12 : i32 to vector<8x1xi32>
    %14 = arith.remsi %10, %13 : vector<8x1xi32>
    %c0_i32_10 = arith.constant 0 : i32
    %15 = vector.broadcast %c0_i32_10 : i32 to vector<8x1xi32>
    %16 = arith.cmpi ne, %14, %15 : vector<8x1xi32>
    %c0_i32_11 = arith.constant 0 : i32
    %17 = vector.broadcast %c0_i32_11 : i32 to vector<8x1xi32>
    %18 = arith.cmpi slt, %14, %17 : vector<8x1xi32>
    %c0_i32_12 = arith.constant 0 : i32
    %19 = arith.cmpi slt, %12, %c0_i32_12 : i32
    %20 = vector.broadcast %19 : i1 to vector<8x1xi1>
    %21 = vector.broadcast %20 : vector<8x1xi1> to vector<8x1xi1>
    %22 = arith.xori %18, %21 : vector<8x1xi1>
    %23 = arith.andi %22, %16 : vector<8x1xi1>
    %24 = vector.broadcast %12 : i32 to vector<8x1xi32>
    %25 = arith.addi %14, %24 : vector<8x1xi32>
    %26 = arith.select %23, %25, %14 : vector<8x1xi1>, vector<8x1xi32>
    %c0_13 = arith.constant 0 : index
    %c0_14 = arith.constant 0 : index
    %27 = vector.load %arg5[%c0_13, %c0_14] : memref<1x64xf32, #tpu.memory_space<vmem>>, vector<1x64xf32>
    %28 = vector.shape_cast %27 : vector<1x64xf32> to vector<1x64xf32>
    %29 = vector.broadcast %28 : vector<1x64xf32> to vector<8x64xf32>
    %c0_15 = arith.constant 0 : index
    %c0_16 = arith.constant 0 : index
    %30 = vector.load %arg21[%c0_15, %c0_16] : memref<11x64xf32, #tpu.memory_space<vmem>>, vector<8x64xf32>
    %c3_i32 = arith.constant 3 : i32
    %31 = vector.broadcast %c3_i32 : i32 to vector<8x1xi32>
    %32 = arith.cmpi sge, %26, %31 : vector<8x1xi32>
    %cst_17 = arith.constant 0.000000e+00 : f32
    %33 = vector.shape_cast %32 : vector<8x1xi1> to vector<8x1xi1>
    %34 = vector.broadcast %33 : vector<8x1xi1> to vector<8x64xi1>
    %35 = vector.broadcast %cst_17 : f32 to vector<8x64xf32>
    %36 = arith.select %34, %30, %35 : vector<8x64xi1>, vector<8x64xf32>
    %c0_18 = arith.constant 0 : index
    %c0_19 = arith.constant 0 : index
    %37 = vector.load %arg4[%c0_18, %c0_19] : memref<4x64xf32, #tpu.memory_space<vmem>>, vector<1x64xf32>
    %38 = vector.broadcast %37 : vector<1x64xf32> to vector<8x64xf32>
    %39 = arith.mulf %38, %36 : vector<8x64xf32>
    %40 = arith.addf %29, %39 : vector<8x64xf32>
    %c1 = arith.constant 1 : index
    %c0_20 = arith.constant 0 : index
    %41 = vector.load %arg21[%c1, %c0_20] : memref<11x64xf32, #tpu.memory_space<vmem>>, vector<8x64xf32>
    %c2_i32 = arith.constant 2 : i32
    %42 = vector.broadcast %c2_i32 : i32 to vector<8x1xi32>
    %43 = arith.cmpi sge, %26, %42 : vector<8x1xi32>
    %cst_21 = arith.constant 0.000000e+00 : f32
    %44 = vector.shape_cast %43 : vector<8x1xi1> to vector<8x1xi1>
    %45 = vector.broadcast %44 : vector<8x1xi1> to vector<8x64xi1>
    %46 = vector.broadcast %cst_21 : f32 to vector<8x64xf32>
    %47 = arith.select %45, %41, %46 : vector<8x64xi1>, vector<8x64xf32>
    %c1_22 = arith.constant 1 : index
    %c0_23 = arith.constant 0 : index
    %48 = vector.load %arg4[%c1_22, %c0_23] : memref<4x64xf32, #tpu.memory_space<vmem>>, vector<1x64xf32>
    %49 = vector.broadcast %48 : vector<1x64xf32> to vector<8x64xf32>
    %50 = arith.mulf %49, %47 : vector<8x64xf32>
    %51 = arith.addf %40, %50 : vector<8x64xf32>
    %c2 = arith.constant 2 : index
    %c0_24 = arith.constant 0 : index
    %52 = vector.load %arg21[%c2, %c0_24] : memref<11x64xf32, #tpu.memory_space<vmem>>, vector<8x64xf32>
    %c1_i32_25 = arith.constant 1 : i32
    %53 = vector.broadcast %c1_i32_25 : i32 to vector<8x1xi32>
    %54 = arith.cmpi sge, %26, %53 : vector<8x1xi32>
    %cst_26 = arith.constant 0.000000e+00 : f32
    %55 = vector.shape_cast %54 : vector<8x1xi1> to vector<8x1xi1>
    %56 = vector.broadcast %55 : vector<8x1xi1> to vector<8x64xi1>
    %57 = vector.broadcast %cst_26 : f32 to vector<8x64xf32>
    %58 = arith.select %56, %52, %57 : vector<8x64xi1>, vector<8x64xf32>
    %c2_27 = arith.constant 2 : index
    %c0_28 = arith.constant 0 : index
    %59 = vector.load %arg4[%c2_27, %c0_28] : memref<4x64xf32, #tpu.memory_space<vmem>>, vector<1x64xf32>
    %60 = vector.broadcast %59 : vector<1x64xf32> to vector<8x64xf32>
    %61 = arith.mulf %60, %58 : vector<8x64xf32>
    %62 = arith.addf %51, %61 : vector<8x64xf32>
    %c3_29 = arith.constant 3 : index
    %c0_30 = arith.constant 0 : index
    %63 = vector.load %arg21[%c3_29, %c0_30] : memref<11x64xf32, #tpu.memory_space<vmem>>, vector<8x64xf32>
    %c3_31 = arith.constant 3 : index
    %c0_32 = arith.constant 0 : index
    %64 = vector.load %arg4[%c3_31, %c0_32] : memref<4x64xf32, #tpu.memory_space<vmem>>, vector<1x64xf32>
    %65 = vector.broadcast %64 : vector<1x64xf32> to vector<8x64xf32>
    %66 = arith.mulf %65, %63 : vector<8x64xf32>
    %67 = arith.addf %62, %66 : vector<8x64xf32>
    %68 = arith.negf %67 : vector<8x64xf32>
    %69 = math.exp %68 : vector<8x64xf32>
    %cst_33 = arith.constant 1.000000e+00 : f32
    %70 = vector.broadcast %cst_33 : f32 to vector<8x64xf32>
    %71 = arith.addf %70, %69 : vector<8x64xf32>
    %72 = arith.divf %70, %71 : vector<8x64xf32>
    %73 = arith.mulf %67, %72 : vector<8x64xf32>
    %c0_34 = arith.constant 0 : index
    %c0_35 = arith.constant 0 : index
    %74 = vector.load %arg6[%c0_34, %c0_35] : memref<64x128xf32, #tpu.memory_space<vmem>>, vector<64x128xf32>
    %cst_36 = arith.constant dense<0.000000e+00> : vector<8x128xf32>
    %75 = tpu.matmul %73, %74, %cst_36 {dimension_numbers = #tpu.dot_dimension_numbers<[1], [0], [0], [1], [0, 0, 1, 1], [], []>} : vector<8x64xf32>, vector<64x128xf32>, vector<8x128xf32> -> vector<8x128xf32>
    %76 = vector.extract_strided_slice %75 {offsets = [0, 0], sizes = [8, 8], strides = [1, 1]} : vector<8x128xf32> to vector<8x8xf32>
    %77 = vector.extract_strided_slice %75 {offsets = [0, 8], sizes = [8, 16], strides = [1, 1]} : vector<8x128xf32> to vector<8x16xf32>
    %78 = vector.extract_strided_slice %75 {offsets = [0, 24], sizes = [8, 16], strides = [1, 1]} : vector<8x128xf32> to vector<8x16xf32>
    %c0_37 = arith.constant 0 : index
    %c0_38 = arith.constant 0 : index
    %79 = vector.load %arg7[%c0_37, %c0_38] : memref<8x64xf32, #tpu.memory_space<vmem>>, vector<8x64xf32>
    %cst_39 = arith.constant dense<0.000000e+00> : vector<8x64xf32>
    %80 = tpu.matmul %76, %79, %cst_39 {dimension_numbers = #tpu.dot_dimension_numbers<[1], [0], [0], [1], [0, 0, 1, 1], [], []>} : vector<8x8xf32>, vector<8x64xf32>, vector<8x64xf32> -> vector<8x64xf32>
    %c0_40 = arith.constant 0 : index
    %c0_41 = arith.constant 0 : index
    %81 = vector.load %arg8[%c0_40, %c0_41] : memref<1x64xf32, #tpu.memory_space<vmem>>, vector<1x64xf32>
    %82 = vector.broadcast %81 : vector<1x64xf32> to vector<8x64xf32>
    %83 = arith.addf %80, %82 : vector<8x64xf32>
    %cst_42 = arith.constant 2.000000e+01 : f32
    %84 = vector.broadcast %cst_42 : f32 to vector<8x64xf32>
    %85 = arith.cmpf ogt, %83, %84 : vector<8x64xf32>
    %cst_43 = arith.constant 2.000000e+01 : f32
    %86 = vector.broadcast %cst_43 : f32 to vector<8x64xf32>
    %87 = arith.minimumf %83, %86 : vector<8x64xf32>
    %88 = math.exp %87 : vector<8x64xf32>
    %89 = math.log1p %88 : vector<8x64xf32>
    %90 = arith.select %85, %83, %89 : vector<8x64xi1>, vector<8x64xf32>
    %91 = arith.mulf %90, %73 : vector<8x64xf32>
    %92 = vector.shape_cast %90 : vector<8x64xf32> to vector<1x8x64xf32>
    %c0_44 = arith.constant 0 : index
    %c0_45 = arith.constant 0 : index
    %c0_46 = arith.constant 0 : index
    %93 = vector.load %arg22[%c0_44, %c0_45, %c0_46] : memref<1x8x64xf32, #tpu.memory_space<vmem>>, vector<1x8x64xf32>
    tpu.vector_store %arg22[%c0_44, %c0_45, %c0_46], %92 {strides = array<i32>} : memref<1x8x64xf32, #tpu.memory_space<vmem>>, vector<1x8x64xf32>,
    %94 = vector.shape_cast %91 : vector<8x64xf32> to vector<1x8x64xf32>
    %c0_47 = arith.constant 0 : index
    %c0_48 = arith.constant 0 : index
    %c0_49 = arith.constant 0 : index
    %95 = vector.load %arg23[%c0_47, %c0_48, %c0_49] : memref<1x8x64xf32, #tpu.memory_space<vmem>>, vector<1x8x64xf32>
    tpu.vector_store %arg23[%c0_47, %c0_48, %c0_49], %94 {strides = array<i32>} : memref<1x8x64xf32, #tpu.memory_space<vmem>>, vector<1x8x64xf32>,
    %96 = vector.shape_cast %77 : vector<8x16xf32> to vector<1x8x16xf32>
    %c0_50 = arith.constant 0 : index
    %c0_51 = arith.constant 0 : index
    %c0_52 = arith.constant 0 : index
    %97 = vector.load %arg24[%c0_50, %c0_51, %c0_52] : memref<1x8x16xf32, #tpu.memory_space<vmem>>, vector<1x8x16xf32>
    tpu.vector_store %arg24[%c0_50, %c0_51, %c0_52], %96 {strides = array<i32>} : memref<1x8x16xf32, #tpu.memory_space<vmem>>, vector<1x8x16xf32>,
    %98 = vector.shape_cast %78 : vector<8x16xf32> to vector<1x8x16xf32>
    %c0_53 = arith.constant 0 : index
    %c0_54 = arith.constant 0 : index
    %c0_55 = arith.constant 0 : index
    %99 = vector.load %arg25[%c0_53, %c0_54, %c0_55] : memref<1x8x16xf32, #tpu.memory_space<vmem>>, vector<1x8x16xf32>
    tpu.vector_store %arg25[%c0_53, %c0_54, %c0_55], %98 {strides = array<i32>} : memref<1x8x16xf32, #tpu.memory_space<vmem>>, vector<1x8x16xf32>,
    %c0_56 = arith.constant 0 : index
    %c0_57 = arith.constant 0 : index
    %100 = vector.load %arg9[%c0_56, %c0_57] : memref<16x64xf32, #tpu.memory_space<vmem>>, vector<16x64xf32>
    %101 = vector.shape_cast %100 : vector<16x64xf32> to vector<1x16x64xf32>
    %102 = tpu.iota {dimensions = array<i32: 1>} : vector<1x16x16xi32>
    %103 = tpu.iota {dimensions = array<i32: 2>} : vector<1x16x16xi32>
    %104 = arith.cmpi eq, %102, %103 : vector<1x16x16xi32>
    %105 = arith.extui %104 : vector<1x16x16xi1> to vector<1x16x16xi32>
    %106 = arith.sitofp %105 : vector<1x16x16xi32> to vector<1x16x16xf32>
    %cst_58 = arith.constant 0.000000e+00 : f32
    %107 = vector.broadcast %cst_58 : f32 to vector<1x16x64xf32>
    %c0_i32_59 = arith.constant 0 : i32
    %c8_i32_60 = arith.constant 8 : i32
    %108 = arith.muli %c0_i32_59, %c8_i32_60 : i32
    %109 = tpu.assume_multiple %108, 8 : i32
    %c0_i32_61 = arith.constant 0 : i32
    %110 = arith.addi %109, %c0_i32_61 : i32
    %c0_62 = arith.constant 0 : index
    %111 = arith.index_cast %110 : i32 to index
    %c0_63 = arith.constant 0 : index
    %112 = vector.load %arg22[%c0_62, %111, %c0_63] : memref<1x8x64xf32, #tpu.memory_space<vmem>>, vector<1x1x64xf32>
    %c0_i32_64 = arith.constant 0 : i32
    %113 = arith.addi %109, %c0_i32_64 : i32
    %c0_65 = arith.constant 0 : index
    %114 = arith.index_cast %113 : i32 to index
    %c0_66 = arith.constant 0 : index
    %115 = vector.load %arg23[%c0_65, %114, %c0_66] : memref<1x8x64xf32, #tpu.memory_space<vmem>>, vector<1x1x64xf32>
    %c0_i32_67 = arith.constant 0 : i32
    %116 = arith.addi %109, %c0_i32_67 : i32
    %c0_68 = arith.constant 0 : index
    %117 = arith.index_cast %116 : i32 to index
    %c0_69 = arith.constant 0 : index
    %118 = vector.load %arg24[%c0_68, %117, %c0_69] : memref<1x8x16xf32, #tpu.memory_space<vmem>>, vector<1x1x16xf32>
    %c0_i32_70 = arith.constant 0 : i32
    %119 = arith.addi %109, %c0_i32_70 : i32
    %c0_71 = arith.constant 0 : index
    %120 = arith.index_cast %119 : i32 to index
    %c0_72 = arith.constant 0 : index
    %121 = vector.load %arg25[%c0_71, %120, %c0_72] : memref<1x8x16xf32, #tpu.memory_space<vmem>>, vector<1x1x16xf32>
    %122 = vector.broadcast %118 : vector<1x1x16xf32> to vector<1x16x16xf32>
    %123 = arith.mulf %122, %106 : vector<1x16x16xf32>
    %cst_73 = arith.constant dense<0.000000e+00> : vector<1x16xf32>
    %124 = vector.multi_reduction <add>, %123, %cst_73 [2] : vector<1x16x16xf32> to vector<1x16xf32>
    %125 = vector.shape_cast %124 : vector<1x16xf32> to vector<1x16x1xf32>
    %126 = vector.broadcast %121 : vector<1x1x16xf32> to vector<1x16x16xf32>
    %127 = arith.mulf %126, %106 : vector<1x16x16xf32>
    %cst_74 = arith.constant dense<0.000000e+00> : vector<1x16xf32>
    %128 = vector.multi_reduction <add>, %127, %cst_74 [2] : vector<1x16x16xf32> to vector<1x16xf32>
    %129 = vector.shape_cast %128 : vector<1x16xf32> to vector<1x16x1xf32>
    %130 = vector.broadcast %112 : vector<1x1x64xf32> to vector<1x16x64xf32>
    %131 = arith.mulf %130, %101 : vector<1x16x64xf32>
    %132 = math.exp %131 : vector<1x16x64xf32>
    %133 = arith.mulf %132, %107 : vector<1x16x64xf32>
    %134 = vector.broadcast %125 : vector<1x16x1xf32> to vector<1x16x64xf32>
    %135 = vector.broadcast %115 : vector<1x1x64xf32> to vector<1x16x64xf32>
    %136 = arith.mulf %134, %135 : vector<1x16x64xf32>
    %137 = arith.addf %133, %136 : vector<1x16x64xf32>
    %138 = vector.broadcast %129 : vector<1x16x1xf32> to vector<1x16x64xf32>
    %139 = arith.mulf %138, %137 : vector<1x16x64xf32>
    %cst_75 = arith.constant dense<0.000000e+00> : vector<1x64xf32>
    %140 = vector.multi_reduction <add>, %139, %cst_75 [1] : vector<1x16x64xf32> to vector<1x64xf32>
    %141 = vector.shape_cast %140 : vector<1x64xf32> to vector<1x1x64xf32>
    %c1_i32_76 = arith.constant 1 : i32
    %142 = arith.addi %109, %c1_i32_76 : i32
    %c0_77 = arith.constant 0 : index
    %143 = arith.index_cast %142 : i32 to index
    %c0_78 = arith.constant 0 : index
    %144 = vector.load %arg22[%c0_77, %143, %c0_78] : memref<1x8x64xf32, #tpu.memory_space<vmem>>, vector<1x1x64xf32>
    %c1_i32_79 = arith.constant 1 : i32
    %145 = arith.addi %109, %c1_i32_79 : i32
    %c0_80 = arith.constant 0 : index
    %146 = arith.index_cast %145 : i32 to index
    %c0_81 = arith.constant 0 : index
    %147 = vector.load %arg23[%c0_80, %146, %c0_81] : memref<1x8x64xf32, #tpu.memory_space<vmem>>, vector<1x1x64xf32>
    %c1_i32_82 = arith.constant 1 : i32
    %148 = arith.addi %109, %c1_i32_82 : i32
    %c0_83 = arith.constant 0 : index
    %149 = arith.index_cast %148 : i32 to index
    %c0_84 = arith.constant 0 : index
    %150 = vector.load %arg24[%c0_83, %149, %c0_84] : memref<1x8x16xf32, #tpu.memory_space<vmem>>, vector<1x1x16xf32>
    %c1_i32_85 = arith.constant 1 : i32
    %151 = arith.addi %109, %c1_i32_85 : i32
    %c0_86 = arith.constant 0 : index
    %152 = arith.index_cast %151 : i32 to index
    %c0_87 = arith.constant 0 : index
    %153 = vector.load %arg25[%c0_86, %152, %c0_87] : memref<1x8x16xf32, #tpu.memory_space<vmem>>, vector<1x1x16xf32>
    %154 = vector.broadcast %150 : vector<1x1x16xf32> to vector<1x16x16xf32>
    %155 = arith.mulf %154, %106 : vector<1x16x16xf32>
    %cst_88 = arith.constant dense<0.000000e+00> : vector<1x16xf32>
    %156 = vector.multi_reduction <add>, %155, %cst_88 [2] : vector<1x16x16xf32> to vector<1x16xf32>
    %157 = vector.shape_cast %156 : vector<1x16xf32> to vector<1x16x1xf32>
    %158 = vector.broadcast %153 : vector<1x1x16xf32> to vector<1x16x16xf32>
    %159 = arith.mulf %158, %106 : vector<1x16x16xf32>
    %cst_89 = arith.constant dense<0.000000e+00> : vector<1x16xf32>
    %160 = vector.multi_reduction <add>, %159, %cst_89 [2] : vector<1x16x16xf32> to vector<1x16xf32>
    %161 = vector.shape_cast %160 : vector<1x16xf32> to vector<1x16x1xf32>
    %162 = vector.broadcast %144 : vector<1x1x64xf32> to vector<1x16x64xf32>
    %163 = arith.mulf %162, %101 : vector<1x16x64xf32>
    %164 = math.exp %163 : vector<1x16x64xf32>
    %165 = arith.mulf %164, %137 : vector<1x16x64xf32>
    %166 = vector.broadcast %157 : vector<1x16x1xf32> to vector<1x16x64xf32>
    %167 = vector.broadcast %147 : vector<1x1x64xf32> to vector<1x16x64xf32>
    %168 = arith.mulf %166, %167 : vector<1x16x64xf32>
    %169 = arith.addf %165, %168 : vector<1x16x64xf32>
    %170 = vector.broadcast %161 : vector<1x16x1xf32> to vector<1x16x64xf32>
    %171 = arith.mulf %170, %169 : vector<1x16x64xf32>
    %cst_90 = arith.constant dense<0.000000e+00> : vector<1x64xf32>
    %172 = vector.multi_reduction <add>, %171, %cst_90 [1] : vector<1x16x64xf32> to vector<1x64xf32>
    %173 = vector.shape_cast %172 : vector<1x64xf32> to vector<1x1x64xf32>
    %c2_i32_91 = arith.constant 2 : i32
    %174 = arith.addi %109, %c2_i32_91 : i32
    %c0_92 = arith.constant 0 : index
    %175 = arith.index_cast %174 : i32 to index
    %c0_93 = arith.constant 0 : index
    %176 = vector.load %arg22[%c0_92, %175, %c0_93] : memref<1x8x64xf32, #tpu.memory_space<vmem>>, vector<1x1x64xf32>
    %c2_i32_94 = arith.constant 2 : i32
    %177 = arith.addi %109, %c2_i32_94 : i32
    %c0_95 = arith.constant 0 : index
    %178 = arith.index_cast %177 : i32 to index
    %c0_96 = arith.constant 0 : index
    %179 = vector.load %arg23[%c0_95, %178, %c0_96] : memref<1x8x64xf32, #tpu.memory_space<vmem>>, vector<1x1x64xf32>
    %c2_i32_97 = arith.constant 2 : i32
    %180 = arith.addi %109, %c2_i32_97 : i32
    %c0_98 = arith.constant 0 : index
    %181 = arith.index_cast %180 : i32 to index
    %c0_99 = arith.constant 0 : index
    %182 = vector.load %arg24[%c0_98, %181, %c0_99] : memref<1x8x16xf32, #tpu.memory_space<vmem>>, vector<1x1x16xf32>
    %c2_i32_100 = arith.constant 2 : i32
    %183 = arith.addi %109, %c2_i32_100 : i32
    %c0_101 = arith.constant 0 : index
    %184 = arith.index_cast %183 : i32 to index
    %c0_102 = arith.constant 0 : index
    %185 = vector.load %arg25[%c0_101, %184, %c0_102] : memref<1x8x16xf32, #tpu.memory_space<vmem>>, vector<1x1x16xf32>
    %186 = vector.broadcast %182 : vector<1x1x16xf32> to vector<1x16x16xf32>
    %187 = arith.mulf %186, %106 : vector<1x16x16xf32>
    %cst_103 = arith.constant dense<0.000000e+00> : vector<1x16xf32>
    %188 = vector.multi_reduction <add>, %187, %cst_103 [2] : vector<1x16x16xf32> to vector<1x16xf32>
    %189 = vector.shape_cast %188 : vector<1x16xf32> to vector<1x16x1xf32>
    %190 = vector.broadcast %185 : vector<1x1x16xf32> to vector<1x16x16xf32>
    %191 = arith.mulf %190, %106 : vector<1x16x16xf32>
    %cst_104 = arith.constant dense<0.000000e+00> : vector<1x16xf32>
    %192 = vector.multi_reduction <add>, %191, %cst_104 [2] : vector<1x16x16xf32> to vector<1x16xf32>
    %193 = vector.shape_cast %192 : vector<1x16xf32> to vector<1x16x1xf32>
    %194 = vector.broadcast %176 : vector<1x1x64xf32> to vector<1x16x64xf32>
    %195 = arith.mulf %194, %101 : vector<1x16x64xf32>
    %196 = math.exp %195 : vector<1x16x64xf32>
    %197 = arith.mulf %196, %169 : vector<1x16x64xf32>
    %198 = vector.broadcast %189 : vector<1x16x1xf32> to vector<1x16x64xf32>
    %199 = vector.broadcast %179 : vector<1x1x64xf32> to vector<1x16x64xf32>
    %200 = arith.mulf %198, %199 : vector<1x16x64xf32>
    %201 = arith.addf %197, %200 : vector<1x16x64xf32>
    %202 = vector.broadcast %193 : vector<1x16x1xf32> to vector<1x16x64xf32>
    %203 = arith.mulf %202, %201 : vector<1x16x64xf32>
    %cst_105 = arith.constant dense<0.000000e+00> : vector<1x64xf32>
    %204 = vector.multi_reduction <add>, %203, %cst_105 [1] : vector<1x16x64xf32> to vector<1x64xf32>
    %205 = vector.shape_cast %204 : vector<1x64xf32> to vector<1x1x64xf32>
    %c3_i32_106 = arith.constant 3 : i32
    %206 = arith.addi %109, %c3_i32_106 : i32
    %c0_107 = arith.constant 0 : index
    %207 = arith.index_cast %206 : i32 to index
    %c0_108 = arith.constant 0 : index
    %208 = vector.load %arg22[%c0_107, %207, %c0_108] : memref<1x8x64xf32, #tpu.memory_space<vmem>>, vector<1x1x64xf32>
    %c3_i32_109 = arith.constant 3 : i32
    %209 = arith.addi %109, %c3_i32_109 : i32
    %c0_110 = arith.constant 0 : index
    %210 = arith.index_cast %209 : i32 to index
    %c0_111 = arith.constant 0 : index
    %211 = vector.load %arg23[%c0_110, %210, %c0_111] : memref<1x8x64xf32, #tpu.memory_space<vmem>>, vector<1x1x64xf32>
    %c3_i32_112 = arith.constant 3 : i32
    %212 = arith.addi %109, %c3_i32_112 : i32
    %c0_113 = arith.constant 0 : index
    %213 = arith.index_cast %212 : i32 to index
    %c0_114 = arith.constant 0 : index
    %214 = vector.load %arg24[%c0_113, %213, %c0_114] : memref<1x8x16xf32, #tpu.memory_space<vmem>>, vector<1x1x16xf32>
    %c3_i32_115 = arith.constant 3 : i32
    %215 = arith.addi %109, %c3_i32_115 : i32
    %c0_116 = arith.constant 0 : index
    %216 = arith.index_cast %215 : i32 to index
    %c0_117 = arith.constant 0 : index
    %217 = vector.load %arg25[%c0_116, %216, %c0_117] : memref<1x8x16xf32, #tpu.memory_space<vmem>>, vector<1x1x16xf32>
    %218 = vector.broadcast %214 : vector<1x1x16xf32> to vector<1x16x16xf32>
    %219 = arith.mulf %218, %106 : vector<1x16x16xf32>
    %cst_118 = arith.constant dense<0.000000e+00> : vector<1x16xf32>
    %220 = vector.multi_reduction <add>, %219, %cst_118 [2] : vector<1x16x16xf32> to vector<1x16xf32>
    %221 = vector.shape_cast %220 : vector<1x16xf32> to vector<1x16x1xf32>
    %222 = vector.broadcast %217 : vector<1x1x16xf32> to vector<1x16x16xf32>
    %223 = arith.mulf %222, %106 : vector<1x16x16xf32>
    %cst_119 = arith.constant dense<0.000000e+00> : vector<1x16xf32>
    %224 = vector.multi_reduction <add>, %223, %cst_119 [2] : vector<1x16x16xf32> to vector<1x16xf32>
    %225 = vector.shape_cast %224 : vector<1x16xf32> to vector<1x16x1xf32>
    %226 = vector.broadcast %208 : vector<1x1x64xf32> to vector<1x16x64xf32>
    %227 = arith.mulf %226, %101 : vector<1x16x64xf32>
    %228 = math.exp %227 : vector<1x16x64xf32>
    %229 = arith.mulf %228, %201 : vector<1x16x64xf32>
    %230 = vector.broadcast %221 : vector<1x16x1xf32> to vector<1x16x64xf32>
    %231 = vector.broadcast %211 : vector<1x1x64xf32> to vector<1x16x64xf32>
    %232 = arith.mulf %230, %231 : vector<1x16x64xf32>
    %233 = arith.addf %229, %232 : vector<1x16x64xf32>
    %234 = vector.broadcast %225 : vector<1x16x1xf32> to vector<1x16x64xf32>
    %235 = arith.mulf %234, %233 : vector<1x16x64xf32>
    %cst_120 = arith.constant dense<0.000000e+00> : vector<1x64xf32>
    %236 = vector.multi_reduction <add>, %235, %cst_120 [1] : vector<1x16x64xf32> to vector<1x64xf32>
    %237 = vector.shape_cast %236 : vector<1x64xf32> to vector<1x1x64xf32>
    %c4_i32 = arith.constant 4 : i32
    %238 = arith.addi %109, %c4_i32 : i32
    %c0_121 = arith.constant 0 : index
    %239 = arith.index_cast %238 : i32 to index
    %c0_122 = arith.constant 0 : index
    %240 = vector.load %arg22[%c0_121, %239, %c0_122] : memref<1x8x64xf32, #tpu.memory_space<vmem>>, vector<1x1x64xf32>
    %c4_i32_123 = arith.constant 4 : i32
    %241 = arith.addi %109, %c4_i32_123 : i32
    %c0_124 = arith.constant 0 : index
    %242 = arith.index_cast %241 : i32 to index
    %c0_125 = arith.constant 0 : index
    %243 = vector.load %arg23[%c0_124, %242, %c0_125] : memref<1x8x64xf32, #tpu.memory_space<vmem>>, vector<1x1x64xf32>
    %c4_i32_126 = arith.constant 4 : i32
    %244 = arith.addi %109, %c4_i32_126 : i32
    %c0_127 = arith.constant 0 : index
    %245 = arith.index_cast %244 : i32 to index
    %c0_128 = arith.constant 0 : index
    %246 = vector.load %arg24[%c0_127, %245, %c0_128] : memref<1x8x16xf32, #tpu.memory_space<vmem>>, vector<1x1x16xf32>
    %c4_i32_129 = arith.constant 4 : i32
    %247 = arith.addi %109, %c4_i32_129 : i32
    %c0_130 = arith.constant 0 : index
    %248 = arith.index_cast %247 : i32 to index
    %c0_131 = arith.constant 0 : index
    %249 = vector.load %arg25[%c0_130, %248, %c0_131] : memref<1x8x16xf32, #tpu.memory_space<vmem>>, vector<1x1x16xf32>
    %250 = vector.broadcast %246 : vector<1x1x16xf32> to vector<1x16x16xf32>
    %251 = arith.mulf %250, %106 : vector<1x16x16xf32>
    %cst_132 = arith.constant dense<0.000000e+00> : vector<1x16xf32>
    %252 = vector.multi_reduction <add>, %251, %cst_132 [2] : vector<1x16x16xf32> to vector<1x16xf32>
    %253 = vector.shape_cast %252 : vector<1x16xf32> to vector<1x16x1xf32>
    %254 = vector.broadcast %249 : vector<1x1x16xf32> to vector<1x16x16xf32>
    %255 = arith.mulf %254, %106 : vector<1x16x16xf32>
    %cst_133 = arith.constant dense<0.000000e+00> : vector<1x16xf32>
    %256 = vector.multi_reduction <add>, %255, %cst_133 [2] : vector<1x16x16xf32> to vector<1x16xf32>
    %257 = vector.shape_cast %256 : vector<1x16xf32> to vector<1x16x1xf32>
    %258 = vector.broadcast %240 : vector<1x1x64xf32> to vector<1x16x64xf32>
    %259 = arith.mulf %258, %101 : vector<1x16x64xf32>
    %260 = math.exp %259 : vector<1x16x64xf32>
    %261 = arith.mulf %260, %233 : vector<1x16x64xf32>
    %262 = vector.broadcast %253 : vector<1x16x1xf32> to vector<1x16x64xf32>
    %263 = vector.broadcast %243 : vector<1x1x64xf32> to vector<1x16x64xf32>
    %264 = arith.mulf %262, %263 : vector<1x16x64xf32>
    %265 = arith.addf %261, %264 : vector<1x16x64xf32>
    %266 = vector.broadcast %257 : vector<1x16x1xf32> to vector<1x16x64xf32>
    %267 = arith.mulf %266, %265 : vector<1x16x64xf32>
    %cst_134 = arith.constant dense<0.000000e+00> : vector<1x64xf32>
    %268 = vector.multi_reduction <add>, %267, %cst_134 [1] : vector<1x16x64xf32> to vector<1x64xf32>
    %269 = vector.shape_cast %268 : vector<1x64xf32> to vector<1x1x64xf32>
    %c5_i32 = arith.constant 5 : i32
    %270 = arith.addi %109, %c5_i32 : i32
    %c0_135 = arith.constant 0 : index
    %271 = arith.index_cast %270 : i32 to index
    %c0_136 = arith.constant 0 : index
    %272 = vector.load %arg22[%c0_135, %271, %c0_136] : memref<1x8x64xf32, #tpu.memory_space<vmem>>, vector<1x1x64xf32>
    %c5_i32_137 = arith.constant 5 : i32
    %273 = arith.addi %109, %c5_i32_137 : i32
    %c0_138 = arith.constant 0 : index
    %274 = arith.index_cast %273 : i32 to index
    %c0_139 = arith.constant 0 : index
    %275 = vector.load %arg23[%c0_138, %274, %c0_139] : memref<1x8x64xf32, #tpu.memory_space<vmem>>, vector<1x1x64xf32>
    %c5_i32_140 = arith.constant 5 : i32
    %276 = arith.addi %109, %c5_i32_140 : i32
    %c0_141 = arith.constant 0 : index
    %277 = arith.index_cast %276 : i32 to index
    %c0_142 = arith.constant 0 : index
    %278 = vector.load %arg24[%c0_141, %277, %c0_142] : memref<1x8x16xf32, #tpu.memory_space<vmem>>, vector<1x1x16xf32>
    %c5_i32_143 = arith.constant 5 : i32
    %279 = arith.addi %109, %c5_i32_143 : i32
    %c0_144 = arith.constant 0 : index
    %280 = arith.index_cast %279 : i32 to index
    %c0_145 = arith.constant 0 : index
    %281 = vector.load %arg25[%c0_144, %280, %c0_145] : memref<1x8x16xf32, #tpu.memory_space<vmem>>, vector<1x1x16xf32>
    %282 = vector.broadcast %278 : vector<1x1x16xf32> to vector<1x16x16xf32>
    %283 = arith.mulf %282, %106 : vector<1x16x16xf32>
    %cst_146 = arith.constant dense<0.000000e+00> : vector<1x16xf32>
    %284 = vector.multi_reduction <add>, %283, %cst_146 [2] : vector<1x16x16xf32> to vector<1x16xf32>
    %285 = vector.shape_cast %284 : vector<1x16xf32> to vector<1x16x1xf32>
    %286 = vector.broadcast %281 : vector<1x1x16xf32> to vector<1x16x16xf32>
    %287 = arith.mulf %286, %106 : vector<1x16x16xf32>
    %cst_147 = arith.constant dense<0.000000e+00> : vector<1x16xf32>
    %288 = vector.multi_reduction <add>, %287, %cst_147 [2] : vector<1x16x16xf32> to vector<1x16xf32>
    %289 = vector.shape_cast %288 : vector<1x16xf32> to vector<1x16x1xf32>
    %290 = vector.broadcast %272 : vector<1x1x64xf32> to vector<1x16x64xf32>
    %291 = arith.mulf %290, %101 : vector<1x16x64xf32>
    %292 = math.exp %291 : vector<1x16x64xf32>
    %293 = arith.mulf %292, %265 : vector<1x16x64xf32>
    %294 = vector.broadcast %285 : vector<1x16x1xf32> to vector<1x16x64xf32>
    %295 = vector.broadcast %275 : vector<1x1x64xf32> to vector<1x16x64xf32>
    %296 = arith.mulf %294, %295 : vector<1x16x64xf32>
    %297 = arith.addf %293, %296 : vector<1x16x64xf32>
    %298 = vector.broadcast %289 : vector<1x16x1xf32> to vector<1x16x64xf32>
    %299 = arith.mulf %298, %297 : vector<1x16x64xf32>
    %cst_148 = arith.constant dense<0.000000e+00> : vector<1x64xf32>
    %300 = vector.multi_reduction <add>, %299, %cst_148 [1] : vector<1x16x64xf32> to vector<1x64xf32>
    %301 = vector.shape_cast %300 : vector<1x64xf32> to vector<1x1x64xf32>
    %c6_i32 = arith.constant 6 : i32
    %302 = arith.addi %109, %c6_i32 : i32
    %c0_149 = arith.constant 0 : index
    %303 = arith.index_cast %302 : i32 to index
    %c0_150 = arith.constant 0 : index
    %304 = vector.load %arg22[%c0_149, %303, %c0_150] : memref<1x8x64xf32, #tpu.memory_space<vmem>>, vector<1x1x64xf32>
    %c6_i32_151 = arith.constant 6 : i32
    %305 = arith.addi %109, %c6_i32_151 : i32
    %c0_152 = arith.constant 0 : index
    %306 = arith.index_cast %305 : i32 to index
    %c0_153 = arith.constant 0 : index
    %307 = vector.load %arg23[%c0_152, %306, %c0_153] : memref<1x8x64xf32, #tpu.memory_space<vmem>>, vector<1x1x64xf32>
    %c6_i32_154 = arith.constant 6 : i32
    %308 = arith.addi %109, %c6_i32_154 : i32
    %c0_155 = arith.constant 0 : index
    %309 = arith.index_cast %308 : i32 to index
    %c0_156 = arith.constant 0 : index
    %310 = vector.load %arg24[%c0_155, %309, %c0_156] : memref<1x8x16xf32, #tpu.memory_space<vmem>>, vector<1x1x16xf32>
    %c6_i32_157 = arith.constant 6 : i32
    %311 = arith.addi %109, %c6_i32_157 : i32
    %c0_158 = arith.constant 0 : index
    %312 = arith.index_cast %311 : i32 to index
    %c0_159 = arith.constant 0 : index
    %313 = vector.load %arg25[%c0_158, %312, %c0_159] : memref<1x8x16xf32, #tpu.memory_space<vmem>>, vector<1x1x16xf32>
    %314 = vector.broadcast %310 : vector<1x1x16xf32> to vector<1x16x16xf32>
    %315 = arith.mulf %314, %106 : vector<1x16x16xf32>
    %cst_160 = arith.constant dense<0.000000e+00> : vector<1x16xf32>
    %316 = vector.multi_reduction <add>, %315, %cst_160 [2] : vector<1x16x16xf32> to vector<1x16xf32>
    %317 = vector.shape_cast %316 : vector<1x16xf32> to vector<1x16x1xf32>
    %318 = vector.broadcast %313 : vector<1x1x16xf32> to vector<1x16x16xf32>
    %319 = arith.mulf %318, %106 : vector<1x16x16xf32>
    %cst_161 = arith.constant dense<0.000000e+00> : vector<1x16xf32>
    %320 = vector.multi_reduction <add>, %319, %cst_161 [2] : vector<1x16x16xf32> to vector<1x16xf32>
    %321 = vector.shape_cast %320 : vector<1x16xf32> to vector<1x16x1xf32>
    %322 = vector.broadcast %304 : vector<1x1x64xf32> to vector<1x16x64xf32>
    %323 = arith.mulf %322, %101 : vector<1x16x64xf32>
    %324 = math.exp %323 : vector<1x16x64xf32>
    %325 = arith.mulf %324, %297 : vector<1x16x64xf32>
    %326 = vector.broadcast %317 : vector<1x16x1xf32> to vector<1x16x64xf32>
    %327 = vector.broadcast %307 : vector<1x1x64xf32> to vector<1x16x64xf32>
    %328 = arith.mulf %326, %327 : vector<1x16x64xf32>
    %329 = arith.addf %325, %328 : vector<1x16x64xf32>
    %330 = vector.broadcast %321 : vector<1x16x1xf32> to vector<1x16x64xf32>
    %331 = arith.mulf %330, %329 : vector<1x16x64xf32>
    %cst_162 = arith.constant dense<0.000000e+00> : vector<1x64xf32>
    %332 = vector.multi_reduction <add>, %331, %cst_162 [1] : vector<1x16x64xf32> to vector<1x64xf32>
    %333 = vector.shape_cast %332 : vector<1x64xf32> to vector<1x1x64xf32>
    %c7_i32 = arith.constant 7 : i32
    %334 = arith.addi %109, %c7_i32 : i32
    %c0_163 = arith.constant 0 : index
    %335 = arith.index_cast %334 : i32 to index
    %c0_164 = arith.constant 0 : index
    %336 = vector.load %arg22[%c0_163, %335, %c0_164] : memref<1x8x64xf32, #tpu.memory_space<vmem>>, vector<1x1x64xf32>
    %c7_i32_165 = arith.constant 7 : i32
    %337 = arith.addi %109, %c7_i32_165 : i32
    %c0_166 = arith.constant 0 : index
    %338 = arith.index_cast %337 : i32 to index
    %c0_167 = arith.constant 0 : index
    %339 = vector.load %arg23[%c0_166, %338, %c0_167] : memref<1x8x64xf32, #tpu.memory_space<vmem>>, vector<1x1x64xf32>
    %c7_i32_168 = arith.constant 7 : i32
    %340 = arith.addi %109, %c7_i32_168 : i32
    %c0_169 = arith.constant 0 : index
    %341 = arith.index_cast %340 : i32 to index
    %c0_170 = arith.constant 0 : index
    %342 = vector.load %arg24[%c0_169, %341, %c0_170] : memref<1x8x16xf32, #tpu.memory_space<vmem>>, vector<1x1x16xf32>
    %c7_i32_171 = arith.constant 7 : i32
    %343 = arith.addi %109, %c7_i32_171 : i32
    %c0_172 = arith.constant 0 : index
    %344 = arith.index_cast %343 : i32 to index
    %c0_173 = arith.constant 0 : index
    %345 = vector.load %arg25[%c0_172, %344, %c0_173] : memref<1x8x16xf32, #tpu.memory_space<vmem>>, vector<1x1x16xf32>
    %346 = vector.broadcast %342 : vector<1x1x16xf32> to vector<1x16x16xf32>
    %347 = arith.mulf %346, %106 : vector<1x16x16xf32>
    %cst_174 = arith.constant dense<0.000000e+00> : vector<1x16xf32>
    %348 = vector.multi_reduction <add>, %347, %cst_174 [2] : vector<1x16x16xf32> to vector<1x16xf32>
    %349 = vector.shape_cast %348 : vector<1x16xf32> to vector<1x16x1xf32>
    %350 = vector.broadcast %345 : vector<1x1x16xf32> to vector<1x16x16xf32>
    %351 = arith.mulf %350, %106 : vector<1x16x16xf32>
    %cst_175 = arith.constant dense<0.000000e+00> : vector<1x16xf32>
    %352 = vector.multi_reduction <add>, %351, %cst_175 [2] : vector<1x16x16xf32> to vector<1x16xf32>
    %353 = vector.shape_cast %352 : vector<1x16xf32> to vector<1x16x1xf32>
    %354 = vector.broadcast %336 : vector<1x1x64xf32> to vector<1x16x64xf32>
    %355 = arith.mulf %354, %101 : vector<1x16x64xf32>
    %356 = math.exp %355 : vector<1x16x64xf32>
    %357 = arith.mulf %356, %329 : vector<1x16x64xf32>
    %358 = vector.broadcast %349 : vector<1x16x1xf32> to vector<1x16x64xf32>
    %359 = vector.broadcast %339 : vector<1x1x64xf32> to vector<1x16x64xf32>
    %360 = arith.mulf %358, %359 : vector<1x16x64xf32>
    %361 = arith.addf %357, %360 : vector<1x16x64xf32>
    %362 = vector.broadcast %353 : vector<1x16x1xf32> to vector<1x16x64xf32>
    %363 = arith.mulf %362, %361 : vector<1x16x64xf32>
    %cst_176 = arith.constant dense<0.000000e+00> : vector<1x64xf32>
    %364 = vector.multi_reduction <add>, %363, %cst_176 [1] : vector<1x16x64xf32> to vector<1x64xf32>
    %365 = vector.shape_cast %364 : vector<1x64xf32> to vector<1x1x64xf32>
    %366 = tpu.concatenate %141, %173, %205, %237, %269, %301, %333, %365 in 1 : vector<1x1x64xf32>, vector<1x1x64xf32>, vector<1x1x64xf32>, vector<1x1x64xf32>, vector<1x1x64xf32>, vector<1x1x64xf32>, vector<1x1x64xf32>, vector<1x1x64xf32> -> vector<1x8x64xf32>
    %c0_177 = arith.constant 0 : index
    %367 = arith.index_cast %109 : i32 to index
    %c0_178 = arith.constant 0 : index
    %368 = vector.load %arg26[%c0_177, %367, %c0_178] : memref<1x8x64xf32, #tpu.memory_space<vmem>>, vector<1x8x64xf32>
    tpu.vector_store %arg26[%c0_177, %367, %c0_178], %366 {strides = array<i32>} : memref<1x8x64xf32, #tpu.memory_space<vmem>>, vector<1x8x64xf32>,
    %c1_i32_179 = arith.constant 1 : i32
    %c0_180 = arith.constant 0 : index
    %c0_181 = arith.constant 0 : index
    %c0_182 = arith.constant 0 : index
    %369 = vector.load %arg26[%c0_180, %c0_181, %c0_182] : memref<1x8x64xf32, #tpu.memory_space<vmem>>, vector<1x8x64xf32>
    %370 = vector.shape_cast %369 : vector<1x8x64xf32> to vector<8x64xf32>
    %c0_183 = arith.constant 0 : index
    %c0_184 = arith.constant 0 : index
    %371 = vector.load %arg10[%c0_183, %c0_184] : memref<1x64xf32, #tpu.memory_space<vmem>>, vector<1x64xf32>
    %372 = vector.broadcast %371 : vector<1x64xf32> to vector<8x64xf32>
    %373 = arith.mulf %372, %73 : vector<8x64xf32>
    %374 = arith.addf %370, %373 : vector<8x64xf32>
    %375 = arith.negf %6 : vector<8x64xf32>
    %376 = math.exp %375 : vector<8x64xf32>
    %cst_185 = arith.constant 1.000000e+00 : f32
    %377 = vector.broadcast %cst_185 : f32 to vector<8x64xf32>
    %378 = arith.addf %377, %376 : vector<8x64xf32>
    %379 = arith.divf %377, %378 : vector<8x64xf32>
    %380 = arith.mulf %6, %379 : vector<8x64xf32>
    %381 = arith.mulf %374, %380 : vector<8x64xf32>
    %382 = arith.truncf %381 : vector<8x64xf32> to vector<8x64xbf16>
    %c0_186 = arith.constant 0 : index
    %c0_187 = arith.constant 0 : index
    %383 = vector.load %arg11[%c0_186, %c0_187] : memref<64x32xbf16, #tpu.memory_space<vmem>>, vector<64x32xbf16>
    %cst_188 = arith.constant dense<0.000000e+00> : vector<8x32xf32>
    %384 = tpu.matmul %382, %383, %cst_188 {dimension_numbers = #tpu.dot_dimension_numbers<[1], [0], [0], [1], [0, 0, 1, 1], [], []>} : vector<8x64xbf16>, vector<64x32xbf16>, vector<8x32xf32> -> vector<8x32xf32>
    %385 = arith.addf %384, %0 : vector<8x32xf32>
    %c0_189 = arith.constant 0 : index
    %c0_190 = arith.constant 0 : index
    %386 = vector.load %arg12[%c0_189, %c0_190] : memref<1x32xf32, #tpu.memory_space<vmem>>, vector<1x32xf32>
    %c0_191 = arith.constant 0 : index
    %c0_192 = arith.constant 0 : index
    %387 = vector.load %arg13[%c0_191, %c0_192] : memref<1x32xf32, #tpu.memory_space<vmem>>, vector<1x32xf32>
    %cst_193 = arith.constant dense<0.000000e+00> : vector<8xf32>
    %388 = vector.multi_reduction <add>, %385, %cst_193 [1] : vector<8x32xf32> to vector<8xf32>
    %389 = vector.shape_cast %388 : vector<8xf32> to vector<8x1xf32>
    %cst_194 = arith.constant 3.200000e+01 : f32
    %390 = vector.broadcast %cst_194 : f32 to vector<8x1xf32>
    %391 = arith.divf %389, %390 : vector<8x1xf32>
    %392 = vector.broadcast %391 : vector<8x1xf32> to vector<8x32xf32>
    %393 = arith.subf %385, %392 : vector<8x32xf32>
    %394 = arith.mulf %393, %393 : vector<8x32xf32>
    %cst_195 = arith.constant dense<0.000000e+00> : vector<8xf32>
    %395 = vector.multi_reduction <add>, %394, %cst_195 [1] : vector<8x32xf32> to vector<8xf32>
    %396 = vector.shape_cast %395 : vector<8xf32> to vector<8x1xf32>
    %cst_196 = arith.constant 3.200000e+01 : f32
    %397 = vector.broadcast %cst_196 : f32 to vector<8x1xf32>
    %398 = arith.divf %396, %397 : vector<8x1xf32>
    %399 = vector.broadcast %391 : vector<8x1xf32> to vector<8x32xf32>
    %400 = arith.subf %385, %399 : vector<8x32xf32>
    %cst_197 = arith.constant 9.99999996E-13 : f32
    %401 = vector.broadcast %cst_197 : f32 to vector<8x1xf32>
    %402 = arith.addf %398, %401 : vector<8x1xf32>
    %403 = math.rsqrt %402 : vector<8x1xf32>
    %404 = vector.broadcast %403 : vector<8x1xf32> to vector<8x32xf32>
    %405 = arith.mulf %400, %404 : vector<8x32xf32>
    %406 = vector.broadcast %386 : vector<1x32xf32> to vector<8x32xf32>
    %407 = arith.mulf %405, %406 : vector<8x32xf32>
    %408 = vector.broadcast %387 : vector<1x32xf32> to vector<8x32xf32>
    %409 = arith.addf %407, %408 : vector<8x32xf32>
    %410 = arith.truncf %409 : vector<8x32xf32> to vector<8x32xbf16>
    %c0_198 = arith.constant 0 : index
    %c0_199 = arith.constant 0 : index
    %411 = vector.load %arg14[%c0_198, %c0_199] : memref<32x128xbf16, #tpu.memory_space<vmem>>, vector<32x128xbf16>
    %cst_200 = arith.constant dense<0.000000e+00> : vector<8x128xf32>
    %412 = tpu.matmul %410, %411, %cst_200 {dimension_numbers = #tpu.dot_dimension_numbers<[1], [0], [0], [1], [0, 0, 1, 1], [], []>} : vector<8x32xbf16>, vector<32x128xbf16>, vector<8x128xf32> -> vector<8x128xf32>
    %c0_201 = arith.constant 0 : index
    %c0_202 = arith.constant 0 : index
    %413 = vector.load %arg15[%c0_201, %c0_202] : memref<1x128xf32, #tpu.memory_space<vmem>>, vector<1x128xf32>
    %414 = vector.broadcast %413 : vector<1x128xf32> to vector<8x128xf32>
    %415 = arith.addf %412, %414 : vector<8x128xf32>
    %cst_203 = arith.constant 5.000000e-01 : f32
    %416 = vector.broadcast %cst_203 : f32 to vector<8x128xf32>
    %417 = arith.mulf %416, %415 : vector<8x128xf32>
    %cst_204 = arith.constant 0.707106769 : f32
    %418 = vector.broadcast %cst_204 : f32 to vector<8x128xf32>
    %419 = arith.mulf %415, %418 : vector<8x128xf32>
    %420 = math.erf %419 : vector<8x128xf32>
    %cst_205 = arith.constant 1.000000e+00 : f32
    %421 = vector.broadcast %cst_205 : f32 to vector<8x128xf32>
    %422 = arith.addf %421, %420 : vector<8x128xf32>
    %423 = arith.mulf %417, %422 : vector<8x128xf32>
    %424 = arith.truncf %423 : vector<8x128xf32> to vector<8x128xbf16>
    %c0_206 = arith.constant 0 : index
    %c0_207 = arith.constant 0 : index
    %425 = vector.load %arg16[%c0_206, %c0_207] : memref<128x32xbf16, #tpu.memory_space<vmem>>, vector<128x32xbf16>
    %cst_208 = arith.constant dense<0.000000e+00> : vector<8x32xf32>
    %426 = tpu.matmul %424, %425, %cst_208 {dimension_numbers = #tpu.dot_dimension_numbers<[1], [0], [0], [1], [0, 0, 1, 1], [], []>} : vector<8x128xbf16>, vector<128x32xbf16>, vector<8x32xf32> -> vector<8x32xf32>
    %c0_209 = arith.constant 0 : index
    %c0_210 = arith.constant 0 : index
    %427 = vector.load %arg17[%c0_209, %c0_210] : memref<1x32xf32, #tpu.memory_space<vmem>>, vector<1x32xf32>
    %428 = vector.broadcast %427 : vector<1x32xf32> to vector<8x32xf32>
    %429 = arith.addf %426, %428 : vector<8x32xf32>
    %430 = arith.addf %429, %409 : vector<8x32xf32>
    %c0_211 = arith.constant 0 : index
    %c0_212 = arith.constant 0 : index
    %431 = vector.load %arg18[%c0_211, %c0_212] : memref<1x32xf32, #tpu.memory_space<vmem>>, vector<1x32xf32>
    %c0_213 = arith.constant 0 : index
    %c0_214 = arith.constant 0 : index
    %432 = vector.load %arg19[%c0_213, %c0_214] : memref<1x32xf32, #tpu.memory_space<vmem>>, vector<1x32xf32>
    %cst_215 = arith.constant dense<0.000000e+00> : vector<8xf32>
    %433 = vector.multi_reduction <add>, %430, %cst_215 [1] : vector<8x32xf32> to vector<8xf32>
    %434 = vector.shape_cast %433 : vector<8xf32> to vector<8x1xf32>
    %cst_216 = arith.constant 3.200000e+01 : f32
    %435 = vector.broadcast %cst_216 : f32 to vector<8x1xf32>
    %436 = arith.divf %434, %435 : vector<8x1xf32>
    %437 = vector.broadcast %436 : vector<8x1xf32> to vector<8x32xf32>
    %438 = arith.subf %430, %437 : vector<8x32xf32>
    %439 = arith.mulf %438, %438 : vector<8x32xf32>
    %cst_217 = arith.constant dense<0.000000e+00> : vector<8xf32>
    %440 = vector.multi_reduction <add>, %439, %cst_217 [1] : vector<8x32xf32> to vector<8xf32>
    %441 = vector.shape_cast %440 : vector<8xf32> to vector<8x1xf32>
    %cst_218 = arith.constant 3.200000e+01 : f32
    %442 = vector.broadcast %cst_218 : f32 to vector<8x1xf32>
    %443 = arith.divf %441, %442 : vector<8x1xf32>
    %444 = vector.broadcast %436 : vector<8x1xf32> to vector<8x32xf32>
    %445 = arith.subf %430, %444 : vector<8x32xf32>
    %cst_219 = arith.constant 9.99999996E-13 : f32
    %446 = vector.broadcast %cst_219 : f32 to vector<8x1xf32>
    %447 = arith.addf %443, %446 : vector<8x1xf32>
    %448 = math.rsqrt %447 : vector<8x1xf32>
    %449 = vector.broadcast %448 : vector<8x1xf32> to vector<8x32xf32>
    %450 = arith.mulf %445, %449 : vector<8x32xf32>
    %451 = vector.broadcast %431 : vector<1x32xf32> to vector<8x32xf32>
    %452 = arith.mulf %450, %451 : vector<8x32xf32>
    %453 = vector.broadcast %432 : vector<1x32xf32> to vector<8x32xf32>
    %454 = arith.addf %452, %453 : vector<8x32xf32>
    %c0_220 = arith.constant 0 : index
    %c0_221 = arith.constant 0 : index
    %455 = vector.load %arg20[%c0_220, %c0_221] : memref<8x32xf32, #tpu.memory_space<vmem>>, vector<8x32xf32>
    tpu.vector_store %arg20[%c0_220, %c0_221], %454 {strides = array<i32>} : memref<8x32xf32, #tpu.memory_space<vmem>>, vector<8x32xf32>,
    return
  }
  func.func @transform_0(%arg0: i32) -> (i32, i32) {
    %c0_i32 = arith.constant 0 : i32
    %c0_i32_0 = arith.constant 0 : i32
    return %arg0, %c0_i32 : i32, i32
  }
  func.func @transform_1(%arg0: i32) -> (i32, i32) {
    %c0_i32 = arith.constant 0 : i32
    %c0_i32_0 = arith.constant 0 : i32
    %c0_i32_1 = arith.constant 0 : i32
    return %c0_i32, %c0_i32_0 : i32, i32
  }
  func.func @transform_2(%arg0: i32) -> (i32, i32) {
    %c0_i32 = arith.constant 0 : i32
    %c0_i32_0 = arith.constant 0 : i32
    %c0_i32_1 = arith.constant 0 : i32
    return %c0_i32, %c0_i32_0 : i32, i32
  }
  func.func @transform_3(%arg0: i32) -> (i32, i32) {
    %c0_i32 = arith.constant 0 : i32
    %c0_i32_0 = arith.constant 0 : i32
    %c0_i32_1 = arith.constant 0 : i32
    return %c0_i32, %c0_i32_0 : i32, i32
  }
  func.func @transform_4(%arg0: i32) -> (i32, i32) {
    %c0_i32 = arith.constant 0 : i32
    %c0_i32_0 = arith.constant 0 : i32
    %c0_i32_1 = arith.constant 0 : i32
    return %c0_i32, %c0_i32_0 : i32, i32
  }
  func.func @transform_5(%arg0: i32) -> (i32, i32) {
    %c0_i32 = arith.constant 0 : i32
    %c0_i32_0 = arith.constant 0 : i32
    %c0_i32_1 = arith.constant 0 : i32
    return %c0_i32, %c0_i32_0 : i32, i32
  }
  func.func @transform_6(%arg0: i32) -> (i32, i32) {
    %c0_i32 = arith.constant 0 : i32
    %c0_i32_0 = arith.constant 0 : i32
    %c0_i32_1 = arith.constant 0 : i32
    return %c0_i32, %c0_i32_0 : i32, i32
  }
  func.func @transform_7(%arg0: i32) -> (i32, i32) {
    %c0_i32 = arith.constant 0 : i32
    %c0_i32_0 = arith.constant 0 : i32
    %c0_i32_1 = arith.constant 0 : i32
    return %c0_i32, %c0_i32_0 : i32, i32
  }
  func.func @transform_8(%arg0: i32) -> (i32, i32) {
    %c0_i32 = arith.constant 0 : i32
    %c0_i32_0 = arith.constant 0 : i32
    %c0_i32_1 = arith.constant 0 : i32
    return %c0_i32, %c0_i32_0 : i32, i32
  }
  func.func @transform_9(%arg0: i32) -> (i32, i32) {
    %c0_i32 = arith.constant 0 : i32
    %c0_i32_0 = arith.constant 0 : i32
    %c0_i32_1 = arith.constant 0 : i32
    return %c0_i32, %c0_i32_0 : i32, i32
  }
  func.func @transform_10(%arg0: i32) -> (i32, i32) {
    %c0_i32 = arith.constant 0 : i32
    %c0_i32_0 = arith.constant 0 : i32
    %c0_i32_1 = arith.constant 0 : i32
    return %c0_i32, %c0_i32_0 : i32, i32
  }
  func.func @transform_11(%arg0: i32) -> (i32, i32) {
    %c0_i32 = arith.constant 0 : i32
    %c0_i32_0 = arith.constant 0 : i32
    %c0_i32_1 = arith.constant 0 : i32
    return %c0_i32, %c0_i32_0 : i32, i32
  }
  func.func @transform_12(%arg0: i32) -> (i32, i32) {
    %c0_i32 = arith.constant 0 : i32
    %c0_i32_0 = arith.constant 0 : i32
    %c0_i32_1 = arith.constant 0 : i32
    return %c0_i32, %c0_i32_0 : i32, i32
  }
  func.func @transform_13(%arg0: i32) -> (i32, i32) {
    %c0_i32 = arith.constant 0 : i32
    %c0_i32_0 = arith.constant 0 : i32
    %c0_i32_1 = arith.constant 0 : i32
    return %c0_i32, %c0_i32_0 : i32, i32
  }
  func.func @transform_14(%arg0: i32) -> (i32, i32) {
    %c0_i32 = arith.constant 0 : i32
    %c0_i32_0 = arith.constant 0 : i32
    %c0_i32_1 = arith.constant 0 : i32
    return %c0_i32, %c0_i32_0 : i32, i32
  }
  func.func @transform_15(%arg0: i32) -> (i32, i32) {
    %c0_i32 = arith.constant 0 : i32
    %c0_i32_0 = arith.constant 0 : i32
    %c0_i32_1 = arith.constant 0 : i32
    return %c0_i32, %c0_i32_0 : i32, i32
  }
  func.func @transform_16(%arg0: i32) -> (i32, i32) {
    %c0_i32 = arith.constant 0 : i32
    %c0_i32_0 = arith.constant 0 : i32
    %c0_i32_1 = arith.constant 0 : i32
    return %c0_i32, %c0_i32_0 : i32, i32
  }
  func.func @transform_17(%arg0: i32) -> (i32, i32) {
    %c0_i32 = arith.constant 0 : i32
    %c0_i32_0 = arith.constant 0 : i32
    %c0_i32_1 = arith.constant 0 : i32
    return %c0_i32, %c0_i32_0 : i32, i32
  }
  func.func @transform_18(%arg0: i32) -> (i32, i32) {
    %c0_i32 = arith.constant 0 : i32
    %c0_i32_0 = arith.constant 0 : i32
    %c0_i32_1 = arith.constant 0 : i32
    return %c0_i32, %c0_i32_0 : i32, i32
  }
  func.func @transform_19(%arg0: i32) -> (i32, i32) {
    %c0_i32 = arith.constant 0 : i32
    %c0_i32_0 = arith.constant 0 : i32
    return %arg0, %c0_i32 : i32, i32
  }
}

</mosaic_0001>

<llo_original>
// kernel: tpu_custom_call.1
$region0: #{tpu_custom_call.1}
  #allocation0 [shape = 'u32[]', space=smem, size = 0x4, offset = 0x4, fixed_abs, tag = 'smem constant byte address 0x4 - core index']
  #allocation1 [shape = 'u32[144,128]{1,0:T(1,128)}', space=vmem, size = 0x12000, scoped, tag = 'internal scratch']
  #allocation2 [shape = 'f32[11,64]{1,0:T(8,128)}', space=vmem, size = 0x2000, scoped, tag = 'scratch operand']
  #allocation3 [shape = 'f32[1,8,64]{2,1,0:T(8,128)}', space=vmem, size = 0x1000, scoped, tag = 'scratch operand']
  #allocation4 [shape = 'f32[1,8,64]{2,1,0:T(8,128)}', space=vmem, size = 0x1000, scoped, tag = 'scratch operand']
  #allocation5 [shape = 'f32[1,8,16]{2,1,0:T(8,128)}', space=vmem, size = 0x1000, scoped, tag = 'scratch operand']
  #allocation6 [shape = 'f32[1,8,16]{2,1,0:T(8,128)}', space=vmem, size = 0x1000, scoped, tag = 'scratch operand']
  #allocation7 [shape = 'f32[1,8,64]{2,1,0:T(8,128)}', space=vmem, size = 0x1000, scoped, tag = 'scratch operand']
  %s0 = inlined_call_operand.vmem [shape: f32[16,32], index: 0, kind: input, shape index: {}]
  %s1 = inlined_call_operand.vmem [shape: bf16[32,64], index: 1, kind: input, shape index: {}]
  %s2 = inlined_call_operand.vmem [shape: bf16[32,64], index: 2, kind: input, shape index: {}]
  %s3 = inlined_call_operand.hbm [shape: f32[4,64], index: 3, kind: input, shape index: {}]
  %s4 = inlined_call_operand.vmem [shape: f32[1,64], index: 4, kind: input, shape index: {}]
  %s5 = inlined_call_operand.vmem [shape: f32[64,128], index: 5, kind: input, shape index: {}]
  %s6 = inlined_call_operand.hbm [shape: f32[8,64], index: 6, kind: input, shape index: {}]
  %s7 = inlined_call_operand.vmem [shape: f32[1,64], index: 7, kind: input, shape index: {}]
  %s8 = inlined_call_operand.hbm [shape: f32[16,64], index: 8, kind: input, shape index: {}]
  %s9 = inlined_call_operand.hbm [shape: f32[1,64], index: 9, kind: input, shape index: {}]
  %s10 = inlined_call_operand.vmem [shape: bf16[64,32], index: 10, kind: input, shape index: {}]
  %s11 = inlined_call_operand.vmem [shape: f32[1,32], index: 11, kind: input, shape index: {}]
  %s12 = inlined_call_operand.vmem [shape: f32[1,32], index: 12, kind: input, shape index: {}]
  %s13 = inlined_call_operand.vmem [shape: bf16[32,128], index: 13, kind: input, shape index: {}]
  %s14 = inlined_call_operand.vmem [shape: f32[1,128], index: 14, kind: input, shape index: {}]
  %s15 = inlined_call_operand.vmem [shape: bf16[128,32], index: 15, kind: input, shape index: {}]
  %s16 = inlined_call_operand.vmem [shape: f32[1,32], index: 16, kind: input, shape index: {}]
  %s17 = inlined_call_operand.vmem [shape: f32[1,32], index: 17, kind: input, shape index: {}]
  %s18 = inlined_call_operand.vmem [shape: f32[1,32], index: 18, kind: input, shape index: {}]
  %s19 = inlined_call_operand.hbm [shape: f32[16,32], index: 19, kind: output, shape index: {}]
  %s20 = sld [smem:[#allocation0]]
  $region125: #{tpu_custom_call.1} parent=0
    _
  %s22 = ssub.s32 1, %s20
  %s23 = scalar_select 0, %s22, %s20
  $region1: #{tpu_custom_call.1} parent=0
    #allocation8 [shape = 'u8[2048]{0}', space=vmem, size = 0x800, scoped, tag = 'input window, operand 3, single buffered']
    #allocation9 [shape = 's32[2]{0}', space=sflag, size = 0x8, scoped, tag = 'scoped memory for tpu_custom_call.1']
    #allocation10 [shape = 's32[2]{0}', space=sflag, size = 0x8, scoped, tag = 'scoped memory for tpu_custom_call.1']
    #allocation11 [shape = 'u8[4096]{0}', space=vmem, size = 0x1000, scoped, tag = 'input window, operand 6, single buffered']
    #allocation12 [shape = 's32[1]{0}', space=sflag, size = 0x4, scoped, tag = 'scoped memory for tpu_custom_call.1']
    #allocation13 [shape = 'u8[8192]{0}', space=vmem, size = 0x2000, scoped, tag = 'input window, operand 8, single buffered']
    #allocation14 [shape = 'u8[512]{0}', space=vmem, size = 0x400, scoped, tag = 'input window, operand 9, single buffered']
    #allocation15 [shape = 's32[1]{0}', space=sflag, size = 0x4, scoped, tag = 'scoped memory for tpu_custom_call.1']
    #allocation16 [shape = 'u8[8192]{0}', space=vmem, size = 0x2000, scoped, tag = 'output window, operand 0']
    %24 = vsyncpa [#allocation9], 0
    %25 = vsyncpa [#allocation12], 0
    %26 = vsyncpa [#allocation15], 0
    %27 = vsyncpa [#allocation10], 0
    %s28 = scalar_lea.sflag [#allocation10], 1
    %29 = vsyncpa %s28, 0
    loop: start=0, step=1, limit=4
    $region2: #{tpu_custom_call.1} parent=1 // loop_pre_header
      _
    $region3: #{tpu_custom_call.1} parent=1 // loop_header
      %s31 = sphi 0, %s35
      %p32 = scmp.ge.s32.totalorder %s31, 4
      %s41 = sphi 0, %s43
      %s44 = sphi 0, %s41
      %s45 = sphi 0, %s44
      %s61 = sphi 0, %s45
      %s65 = sphi 0, %s65
      %s67 = sphi 0, %s65
      %s68 = sphi 0, %s67
      %s82 = sphi 0, %s68
      %s86 = sphi 0, %s86
      %s88 = sphi 0, %s86
      %s89 = sphi 0, %s88
      %s103 = sphi 0, %s89
      %s107 = sphi 0, %s107
      %s109 = sphi 0, %s107
      %s110 = sphi 0, %s109
      %s124 = sphi 0, %s110
      %s128 = sphi 0, %s128
      %s130 = sphi 0, %s128
      %s131 = sphi 0, %s130
      %s145 = sphi 0, %s131
      %s149 = sphi 0, %s149
      %s151 = sphi 0, %s149
      %s152 = sphi 0, %s151
      %s166 = sphi 0, %s152
      %s170 = sphi 0, %s170
      %s172 = sphi 0, %s170
      %s173 = sphi 0, %s172
      %s187 = sphi 0, %s173
      %s191 = sphi 0, %s191
      %s193 = sphi 0, %s191
      %s194 = sphi 0, %s193
      %s208 = sphi 0, %s194
      %s212 = sphi 0, %s212
      %s214 = sphi 0, %s212
      %s215 = sphi 0, %s214
      %s229 = sphi 0, %s215
      %s233 = sphi 0, %s233
      %s235 = sphi 0, %s233
      %s236 = sphi 0, %s235
      %s250 = sphi 0, %s236
      %s254 = sphi 0, %s254
      %s256 = sphi 0, %s254
      %s257 = sphi 0, %s256
      %s271 = sphi 0, %s257
      %s275 = sphi 0, %s275
      %s277 = sphi 0, %s275
      %s278 = sphi 0, %s277
      %s292 = sphi 0, %s278
      %s296 = sphi 0, %s296
      %s298 = sphi 0, %s296
      %s299 = sphi 0, %s298
      %s313 = sphi 0, %s299
      %s317 = sphi 0, %s317
      %s319 = sphi 0, %s317
      %s320 = sphi 0, %s319
      %s334 = sphi 0, %s320
      %s338 = sphi 0, %s338
      %s340 = sphi 0, %s338
      %s341 = sphi 0, %s340
      %s355 = sphi 0, %s341
      %s359 = sphi 0, %s359
      %s361 = sphi 0, %s359
      %s362 = sphi 0, %s361
      %s376 = sphi 0, %s362
      %s380 = sphi 0, %s380
      %s382 = sphi 0, %s380
      %s383 = sphi 0, %s382
      %s397 = sphi 0, %s383
      %s401 = sphi 0, %s401
      %s403 = sphi 0, %s401
      %s404 = sphi 0, %s403
      %s418 = sphi 0, %s404
      %s422 = sphi 0, %s422
      %s424 = sphi 0, %s422
      %s425 = sphi 0, %s424
      %s439 = sphi 0, %s425
      %s445 = sphi 0, %s447
      %s448 = sphi 0, %s445
      %s449 = sphi 0, %s448
      %s465 = sphi 0, %s449
    $region4: #{tpu_custom_call.1} parent=1 // loop_header_branch
      %34 = sbr.rel (%p32) target = $region8
    $region5: #{tpu_custom_call.1} parent=1 // loop_body
      %s36 = ssub.s32 %s31, 1
      %s37 = ssub.s32 %s31, 2
      %s38 = sadd.s32 %s31, 1
      %s39 = ssub.s32 %s31, %s38
      %p40 = scmp.eq.s32.totalorder %s39, 0
      %s42 = sadd.s32 %s41, 1
      %s43 = scalar_select %p40, %s41, %s42
      %p46 = pneg %p40
      %p47 = scmp.eq.s32.totalorder %s31, 1
      %p48 = por %p46, %p47
      %p49 = scmp.ne.s32.totalorder %s41, %s44
      %p50 = scmp.eq.s32.totalorder %s31, 0
      %p51 = por %p49, %p50
      %p52 = scmp.ne.s32.totalorder %s41, %s44
      %p53 = scmp.eq.s32.totalorder %s36, 1
      %p54 = por %p52, %p53
      %p55 = scmp.ne.s32.totalorder %s44, %s45
      %p56 = scmp.eq.s32.totalorder %s36, 0
      %p57 = por %p55, %p56
      %p58 = scmp.ne.s32.totalorder %s44, %s45
      %p59 = scmp.eq.s32.totalorder %s37, 1
      %p60 = por %p58, %p59
      %p62 = scmp.ne.s32.totalorder %s45, %s61
      %p63 = scmp.eq.s32.totalorder %s37, 0
      %p64 = por %p62, %p63
      %s66 = sadd.s32 %s65, 1
      %p69 = scmp.eq.s32.totalorder %s31, 1
      %p70 = scmp.ne.s32.totalorder %s65, %s67
      %p71 = scmp.eq.s32.totalorder %s31, 0
      %p72 = por %p70, %p71
      %p73 = scmp.ne.s32.totalorder %s65, %s67
      %p74 = scmp.eq.s32.totalorder %s36, 1
      %p75 = por %p73, %p74
      %p76 = scmp.ne.s32.totalorder %s67, %s68
      %p77 = scmp.eq.s32.totalorder %s36, 0
      %p78 = por %p76, %p77
      %p79 = scmp.ne.s32.totalorder %s67, %s68
      %p80 = scmp.eq.s32.totalorder %s37, 1
      %p81 = por %p79, %p80
      %p83 = scmp.ne.s32.totalorder %s68, %s82
      %p84 = scmp.eq.s32.totalorder %s37, 0
      %p85 = por %p83, %p84
      %s87 = sadd.s32 %s86, 1
      %p90 = scmp.eq.s32.totalorder %s31, 1
      %p91 = scmp.ne.s32.totalorder %s86, %s88
      %p92 = scmp.eq.s32.totalorder %s31, 0
      %p93 = por %p91, %p92
      %p94 = scmp.ne.s32.totalorder %s86, %s88
      %p95 = scmp.eq.s32.totalorder %s36, 1
      %p96 = por %p94, %p95
      %p97 = scmp.ne.s32.totalorder %s88, %s89
      %p98 = scmp.eq.s32.totalorder %s36, 0
      %p99 = por %p97, %p98
      %p100 = scmp.ne.s32.totalorder %s88, %s89
      %p101 = scmp.eq.s32.totalorder %s37, 1
      %p102 = por %p100, %p101
      %p104 = scmp.ne.s32.totalorder %s89, %s103
      %p105 = scmp.eq.s32.totalorder %s37, 0
      %p106 = por %p104, %p105
      %s108 = sadd.s32 %s107, 1
      %p111 = scmp.eq.s32.totalorder %s31, 1
      %p112 = scmp.ne.s32.totalorder %s107, %s109
      %p113 = scmp.eq.s32.totalorder %s31, 0
      %p114 = por %p112, %p113
      %p115 = scmp.ne.s32.totalorder %s107, %s109
      %p116 = scmp.eq.s32.totalorder %s36, 1
      %p117 = por %p115, %p116
      %p118 = scmp.ne.s32.totalorder %s109, %s110
      %p119 = scmp.eq.s32.totalorder %s36, 0
      %p120 = por %p118, %p119
      %p121 = scmp.ne.s32.totalorder %s109, %s110
      %p122 = scmp.eq.s32.totalorder %s37, 1
      %p123 = por %p121, %p122
      %p125 = scmp.ne.s32.totalorder %s110, %s124
      %p126 = scmp.eq.s32.totalorder %s37, 0
      %p127 = por %p125, %p126
      %s129 = sadd.s32 %s128, 1
      %p132 = scmp.eq.s32.totalorder %s31, 1
      %p133 = scmp.ne.s32.totalorder %s128, %s130
      %p134 = scmp.eq.s32.totalorder %s31, 0
      %p135 = por %p133, %p134
      %p136 = scmp.ne.s32.totalorder %s128, %s130
      %p137 = scmp.eq.s32.totalorder %s36, 1
      %p138 = por %p136, %p137
      %p139 = scmp.ne.s32.totalorder %s130, %s131
      %p140 = scmp.eq.s32.totalorder %s36, 0
      %p141 = por %p139, %p140
      %p142 = scmp.ne.s32.totalorder %s130, %s131
      %p143 = scmp.eq.s32.totalorder %s37, 1
      %p144 = por %p142, %p143
      %p146 = scmp.ne.s32.totalorder %s131, %s145
      %p147 = scmp.eq.s32.totalorder %s37, 0
      %p148 = por %p146, %p147
      %s150 = sadd.s32 %s149, 1
      %p153 = scmp.eq.s32.totalorder %s31, 1
      %p154 = scmp.ne.s32.totalorder %s149, %s151
      %p155 = scmp.eq.s32.totalorder %s31, 0
      %p156 = por %p154, %p155
      %p157 = scmp.ne.s32.totalorder %s149, %s151
      %p158 = scmp.eq.s32.totalorder %s36, 1
      %p159 = por %p157, %p158
      %p160 = scmp.ne.s32.totalorder %s151, %s152
      %p161 = scmp.eq.s32.totalorder %s36, 0
      %p162 = por %p160, %p161
      %p163 = scmp.ne.s32.totalorder %s151, %s152
      %p164 = scmp.eq.s32.totalorder %s37, 1
      %p165 = por %p163, %p164
      %p167 = scmp.ne.s32.totalorder %s152, %s166
      %p168 = scmp.eq.s32.totalorder %s37, 0
      %p169 = por %p167, %p168
      %s171 = sadd.s32 %s170, 1
      %p174 = scmp.eq.s32.totalorder %s31, 1
      %p175 = scmp.ne.s32.totalorder %s170, %s172
      %p176 = scmp.eq.s32.totalorder %s31, 0
      %p177 = por %p175, %p176
      %p178 = scmp.ne.s32.totalorder %s170, %s172
      %p179 = scmp.eq.s32.totalorder %s36, 1
      %p180 = por %p178, %p179
      %p181 = scmp.ne.s32.totalorder %s172, %s173
      %p182 = scmp.eq.s32.totalorder %s36, 0
      %p183 = por %p181, %p182
      %p184 = scmp.ne.s32.totalorder %s172, %s173
      %p185 = scmp.eq.s32.totalorder %s37, 1
      %p186 = por %p184, %p185
      %p188 = scmp.ne.s32.totalorder %s173, %s187
      %p189 = scmp.eq.s32.totalorder %s37, 0
      %p190 = por %p188, %p189
      %s192 = sadd.s32 %s191, 1
      %p195 = scmp.eq.s32.totalorder %s31, 1
      %p196 = scmp.ne.s32.totalorder %s191, %s193
      %p197 = scmp.eq.s32.totalorder %s31, 0
      %p198 = por %p196, %p197
      %p199 = scmp.ne.s32.totalorder %s191, %s193
      %p200 = scmp.eq.s32.totalorder %s36, 1
      %p201 = por %p199, %p200
      %p202 = scmp.ne.s32.totalorder %s193, %s194
      %p203 = scmp.eq.s32.totalorder %s36, 0
      %p204 = por %p202, %p203
      %p205 = scmp.ne.s32.totalorder %s193, %s194
      %p206 = scmp.eq.s32.totalorder %s37, 1
      %p207 = por %p205, %p206
      %p209 = scmp.ne.s32.totalorder %s194, %s208
      %p210 = scmp.eq.s32.totalorder %s37, 0
      %p211 = por %p209, %p210
      %s213 = sadd.s32 %s212, 1
      %p216 = scmp.eq.s32.totalorder %s31, 1
      %p217 = scmp.ne.s32.totalorder %s212, %s214
      %p218 = scmp.eq.s32.totalorder %s31, 0
      %p219 = por %p217, %p218
      %p220 = scmp.ne.s32.totalorder %s212, %s214
      %p221 = scmp.eq.s32.totalorder %s36, 1
      %p222 = por %p220, %p221
      %p223 = scmp.ne.s32.totalorder %s214, %s215
      %p224 = scmp.eq.s32.totalorder %s36, 0
      %p225 = por %p223, %p224
      %p226 = scmp.ne.s32.totalorder %s214, %s215
      %p227 = scmp.eq.s32.totalorder %s37, 1
      %p228 = por %p226, %p227
      %p230 = scmp.ne.s32.totalorder %s215, %s229
      %p231 = scmp.eq.s32.totalorder %s37, 0
      %p232 = por %p230, %p231
      %s234 = sadd.s32 %s233, 1
      %p237 = scmp.eq.s32.totalorder %s31, 1
      %p238 = scmp.ne.s32.totalorder %s233, %s235
      %p239 = scmp.eq.s32.totalorder %s31, 0
      %p240 = por %p238, %p239
      %p241 = scmp.ne.s32.totalorder %s233, %s235
      %p242 = scmp.eq.s32.totalorder %s36, 1
      %p243 = por %p241, %p242
      %p244 = scmp.ne.s32.totalorder %s235, %s236
      %p245 = scmp.eq.s32.totalorder %s36, 0
      %p246 = por %p244, %p245
      %p247 = scmp.ne.s32.totalorder %s235, %s236
      %p248 = scmp.eq.s32.totalorder %s37, 1
      %p249 = por %p247, %p248
      %p251 = scmp.ne.s32.totalorder %s236, %s250
      %p252 = scmp.eq.s32.totalorder %s37, 0
      %p253 = por %p251, %p252
      %s255 = sadd.s32 %s254, 1
      %p258 = scmp.eq.s32.totalorder %s31, 1
      %p259 = scmp.ne.s32.totalorder %s254, %s256
      %p260 = scmp.eq.s32.totalorder %s31, 0
      %p261 = por %p259, %p260
      %p262 = scmp.ne.s32.totalorder %s254, %s256
      %p263 = scmp.eq.s32.totalorder %s36, 1
      %p264 = por %p262, %p263
      %p265 = scmp.ne.s32.totalorder %s256, %s257
      %p266 = scmp.eq.s32.totalorder %s36, 0
      %p267 = por %p265, %p266
      %p268 = scmp.ne.s32.totalorder %s256, %s257
      %p269 = scmp.eq.s32.totalorder %s37, 1
      %p270 = por %p268, %p269
      %p272 = scmp.ne.s32.totalorder %s257, %s271
      %p273 = scmp.eq.s32.totalorder %s37, 0
      %p274 = por %p272, %p273
      %s276 = sadd.s32 %s275, 1
      %p279 = scmp.eq.s32.totalorder %s31, 1
      %p280 = scmp.ne.s32.totalorder %s275, %s277
      %p281 = scmp.eq.s32.totalorder %s31, 0
      %p282 = por %p280, %p281
      %p283 = scmp.ne.s32.totalorder %s275, %s277
      %p284 = scmp.eq.s32.totalorder %s36, 1
      %p285 = por %p283, %p284
      %p286 = scmp.ne.s32.totalorder %s277, %s278
      %p287 = scmp.eq.s32.totalorder %s36, 0
      %p288 = por %p286, %p287
      %p289 = scmp.ne.s32.totalorder %s277, %s278
      %p290 = scmp.eq.s32.totalorder %s37, 1
      %p291 = por %p289, %p290
      %p293 = scmp.ne.s32.totalorder %s278, %s292
      %p294 = scmp.eq.s32.totalorder %s37, 0
      %p295 = por %p293, %p294
      %s297 = sadd.s32 %s296, 1
      %p300 = scmp.eq.s32.totalorder %s31, 1
      %p301 = scmp.ne.s32.totalorder %s296, %s298
      %p302 = scmp.eq.s32.totalorder %s31, 0
      %p303 = por %p301, %p302
      %p304 = scmp.ne.s32.totalorder %s296, %s298
      %p305 = scmp.eq.s32.totalorder %s36, 1
      %p306 = por %p304, %p305
      %p307 = scmp.ne.s32.totalorder %s298, %s299
      %p308 = scmp.eq.s32.totalorder %s36, 0
      %p309 = por %p307, %p308
      %p310 = scmp.ne.s32.totalorder %s298, %s299
      %p311 = scmp.eq.s32.totalorder %s37, 1
      %p312 = por %p310, %p311
      %p314 = scmp.ne.s32.totalorder %s299, %s313
      %p315 = scmp.eq.s32.totalorder %s37, 0
      %p316 = por %p314, %p315
      %s318 = sadd.s32 %s317, 1
      %p321 = scmp.eq.s32.totalorder %s31, 1
      %p322 = scmp.ne.s32.totalorder %s317, %s319
      %p323 = scmp.eq.s32.totalorder %s31, 0
      %p324 = por %p322, %p323
      %p325 = scmp.ne.s32.totalorder %s317, %s319
      %p326 = scmp.eq.s32.totalorder %s36, 1
      %p327 = por %p325, %p326
      %p328 = scmp.ne.s32.totalorder %s319, %s320
      %p329 = scmp.eq.s32.totalorder %s36, 0
      %p330 = por %p328, %p329
      %p331 = scmp.ne.s32.totalorder %s319, %s320
      %p332 = scmp.eq.s32.totalorder %s37, 1
      %p333 = por %p331, %p332
      %p335 = scmp.ne.s32.totalorder %s320, %s334
      %p336 = scmp.eq.s32.totalorder %s37, 0
      %p337 = por %p335, %p336
      %s339 = sadd.s32 %s338, 1
      %p342 = scmp.eq.s32.totalorder %s31, 1
      %p343 = scmp.ne.s32.totalorder %s338, %s340
      %p344 = scmp.eq.s32.totalorder %s31, 0
      %p345 = por %p343, %p344
      %p346 = scmp.ne.s32.totalorder %s338, %s340
      %p347 = scmp.eq.s32.totalorder %s36, 1
      %p348 = por %p346, %p347
      %p349 = scmp.ne.s32.totalorder %s340, %s341
      %p350 = scmp.eq.s32.totalorder %s36, 0
      %p351 = por %p349, %p350
      %p352 = scmp.ne.s32.totalorder %s340, %s341
      %p353 = scmp.eq.s32.totalorder %s37, 1
      %p354 = por %p352, %p353
      %p356 = scmp.ne.s32.totalorder %s341, %s355
      %p357 = scmp.eq.s32.totalorder %s37, 0
      %p358 = por %p356, %p357
      %s360 = sadd.s32 %s359, 1
      %p363 = scmp.eq.s32.totalorder %s31, 1
      %p364 = scmp.ne.s32.totalorder %s359, %s361
      %p365 = scmp.eq.s32.totalorder %s31, 0
      %p366 = por %p364, %p365
      %p367 = scmp.ne.s32.totalorder %s359, %s361
      %p368 = scmp.eq.s32.totalorder %s36, 1
      %p369 = por %p367, %p368
      %p370 = scmp.ne.s32.totalorder %s361, %s362
      %p371 = scmp.eq.s32.totalorder %s36, 0
      %p372 = por %p370, %p371
      %p373 = scmp.ne.s32.totalorder %s361, %s362
      %p374 = scmp.eq.s32.totalorder %s37, 1
      %p375 = por %p373, %p374
      %p377 = scmp.ne.s32.totalorder %s362, %s376
      %p378 = scmp.eq.s32.totalorder %s37, 0
      %p379 = por %p377, %p378
      %s381 = sadd.s32 %s380, 1
      %p384 = scmp.eq.s32.totalorder %s31, 1
      %p385 = scmp.ne.s32.totalorder %s380, %s382
      %p386 = scmp.eq.s32.totalorder %s31, 0
      %p387 = por %p385, %p386
      %p388 = scmp.ne.s32.totalorder %s380, %s382
      %p389 = scmp.eq.s32.totalorder %s36, 1
      %p390 = por %p388, %p389
      %p391 = scmp.ne.s32.totalorder %s382, %s383
      %p392 = scmp.eq.s32.totalorder %s36, 0
      %p393 = por %p391, %p392
      %p394 = scmp.ne.s32.totalorder %s382, %s383
      %p395 = scmp.eq.s32.totalorder %s37, 1
      %p396 = por %p394, %p395
      %p398 = scmp.ne.s32.totalorder %s383, %s397
      %p399 = scmp.eq.s32.totalorder %s37, 0
      %p400 = por %p398, %p399
      %s402 = sadd.s32 %s401, 1
      %p405 = scmp.eq.s32.totalorder %s31, 1
      %p406 = scmp.ne.s32.totalorder %s401, %s403
      %p407 = scmp.eq.s32.totalorder %s31, 0
      %p408 = por %p406, %p407
      %p409 = scmp.ne.s32.totalorder %s401, %s403
      %p410 = scmp.eq.s32.totalorder %s36, 1
      %p411 = por %p409, %p410
      %p412 = scmp.ne.s32.totalorder %s403, %s404
      %p413 = scmp.eq.s32.totalorder %s36, 0
      %p414 = por %p412, %p413
      %p415 = scmp.ne.s32.totalorder %s403, %s404
      %p416 = scmp.eq.s32.totalorder %s37, 1
      %p417 = por %p415, %p416
      %p419 = scmp.ne.s32.totalorder %s404, %s418
      %p420 = scmp.eq.s32.totalorder %s37, 0
      %p421 = por %p419, %p420
      %s423 = sadd.s32 %s422, 1
      %p426 = scmp.eq.s32.totalorder %s31, 1
      %p427 = scmp.ne.s32.totalorder %s422, %s424
      %p428 = scmp.eq.s32.totalorder %s31, 0
      %p429 = por %p427, %p428
      %p430 = scmp.ne.s32.totalorder %s422, %s424
      %p431 = scmp.eq.s32.totalorder %s36, 1
      %p432 = por %p430, %p431
      %p433 = scmp.ne.s32.totalorder %s424, %s425
      %p434 = scmp.eq.s32.totalorder %s36, 0
      %p435 = por %p433, %p434
      %p436 = scmp.ne.s32.totalorder %s424, %s425
      %p437 = scmp.eq.s32.totalorder %s37, 1
      %p438 = por %p436, %p437
      %p440 = scmp.ne.s32.totalorder %s425, %s439
      %p441 = scmp.eq.s32.totalorder %s37, 0
      %p442 = por %p440, %p441
      %s443 = ssub.s32 %s31, %s38
      %p444 = scmp.eq.s32.totalorder %s443, 0
      %s446 = sadd.s32 %s445, 1
      %s447 = scalar_select %p444, %s445, %s446
      %p450 = pneg %p444
      %p451 = scmp.eq.s32.totalorder %s31, 1
      %p452 = por %p450, %p451
      %p453 = scmp.ne.s32.totalorder %s445, %s448
      %p454 = scmp.eq.s32.totalorder %s31, 0
      %p455 = por %p453, %p454
      %p456 = scmp.ne.s32.totalorder %s445, %s448
      %p457 = scmp.eq.s32.totalorder %s36, 1
      %p458 = por %p456, %p457
      %p459 = scmp.ne.s32.totalorder %s448, %s449
      %p460 = scmp.eq.s32.totalorder %s36, 0
      %p461 = por %p459, %p460
      %p462 = scmp.ne.s32.totalorder %s448, %s449
      %p463 = scmp.eq.s32.totalorder %s37, 1
      %p464 = por %p462, %p463
      %p466 = scmp.ne.s32.totalorder %s449, %s465
      %p467 = scmp.eq.s32.totalorder %s37, 0
      %p468 = por %p466, %p467
      %p469 = scmp.le.s32.totalorder 1, %s31
      %p470 = scmp.lt.s32.totalorder %s31, 3
      %p471 = pnand %p469, %p470
      %p472 = pneg %p471
      // Predicated region
      $region9: #{tpu_custom_call.1} parent=5 // pred_check
        _
      $region10: #{tpu_custom_call.1} parent=5 // pred_check_branch
        %474 = sbr.rel (%p471) target = $region12
      $region11: #{tpu_custom_call.1} parent=5 // pred_region
        %s475 = ssub.s32 %s31, 1
        // Predicated region
        $region13: #{tpu_custom_call.1} parent=11 // pred_check
          %p476 = pneg %p78
        $region14: #{tpu_custom_call.1} parent=11 // pred_check_branch
          %478 = sbr.rel (%p476) target = $region16
        $region15: #{tpu_custom_call.1} parent=11 // pred_region
          _
        $region16: #{tpu_custom_call.1} parent=11 // pred_fallthru
          _
        // Predicated region
        $region17: #{tpu_custom_call.1} parent=11 // pred_check
          %p479 = pneg %p99
        $region18: #{tpu_custom_call.1} parent=11 // pred_check_branch
          %481 = sbr.rel (%p479) target = $region20
        $region19: #{tpu_custom_call.1} parent=11 // pred_region
          _
        $region20: #{tpu_custom_call.1} parent=11 // pred_fallthru
          _
        // Predicated region
        $region21: #{tpu_custom_call.1} parent=11 // pred_check
          %p482 = pneg %p120
        $region22: #{tpu_custom_call.1} parent=11 // pred_check_branch
          %484 = sbr.rel (%p482) target = $region24
        $region23: #{tpu_custom_call.1} parent=11 // pred_region
          %s486 = ssub.s32 64, 64
          %487 = vsyncadd [#allocation9], %s486
          %s489 = sshll.u32 [#allocation8], 4
          %s490 = int_to_ptr.vmem [resolvable:$true] %s489
          %492 = dma.hbm_to_vmem [thread:$0]  %s3, 64, %s490, [#allocation9]
        $region24: #{tpu_custom_call.1} parent=11 // pred_fallthru
          _
        // Predicated region
        $region25: #{tpu_custom_call.1} parent=11 // pred_check
          %p493 = pneg %p141
        $region26: #{tpu_custom_call.1} parent=11 // pred_check_branch
          %495 = sbr.rel (%p493) target = $region28
        $region27: #{tpu_custom_call.1} parent=11 // pred_region
          _
        $region28: #{tpu_custom_call.1} parent=11 // pred_fallthru
          _
        // Predicated region
        $region29: #{tpu_custom_call.1} parent=11 // pred_check
          %p496 = pneg %p162
        $region30: #{tpu_custom_call.1} parent=11 // pred_check_branch
          %498 = sbr.rel (%p496) target = $region32
        $region31: #{tpu_custom_call.1} parent=11 // pred_region
          _
        $region32: #{tpu_custom_call.1} parent=11 // pred_fallthru
          _
        // Predicated region
        $region33: #{tpu_custom_call.1} parent=11 // pred_check
          %p499 = pneg %p183
        $region34: #{tpu_custom_call.1} parent=11 // pred_check_branch
          %501 = sbr.rel (%p499) target = $region36
        $region35: #{tpu_custom_call.1} parent=11 // pred_region
          %s503 = ssub.s32 128, 128
          %504 = vsyncadd [#allocation12], %s503
          %s506 = sshll.u32 [#allocation11], 4
          %s507 = int_to_ptr.vmem [resolvable:$true] %s506
          %509 = dma.hbm_to_vmem [thread:$0]  %s6, 128, %s507, [#allocation12]
        $region36: #{tpu_custom_call.1} parent=11 // pred_fallthru
          _
        // Predicated region
        $region37: #{tpu_custom_call.1} parent=11 // pred_check
          %p510 = pneg %p204
        $region38: #{tpu_custom_call.1} parent=11 // pred_check_branch
          %512 = sbr.rel (%p510) target = $region40
        $region39: #{tpu_custom_call.1} parent=11 // pred_region
          _
        $region40: #{tpu_custom_call.1} parent=11 // pred_fallthru
          _
        // Predicated region
        $region41: #{tpu_custom_call.1} parent=11 // pred_check
          %p513 = pneg %p225
        $region42: #{tpu_custom_call.1} parent=11 // pred_check_branch
          %515 = sbr.rel (%p513) target = $region44
        $region43: #{tpu_custom_call.1} parent=11 // pred_region
          %s517 = ssub.s32 256, 256
          %518 = vsyncadd [#allocation12], %s517
          %s519 = sshll.u32 [#allocation13], 4
          %s520 = int_to_ptr.vmem [resolvable:$true] %s519
          %525 = dma.hbm_to_vmem [thread:$0]  %s8, 256, %s520, [#allocation12], 128, 128, 8
        $region44: #{tpu_custom_call.1} parent=11 // pred_fallthru
          _
        // Predicated region
        $region45: #{tpu_custom_call.1} parent=11 // pred_check
          %p526 = pneg %p246
        $region46: #{tpu_custom_call.1} parent=11 // pred_check_branch
          %528 = sbr.rel (%p526) target = $region48
        $region47: #{tpu_custom_call.1} parent=11 // pred_region
          %s530 = ssub.s32 16, 16
          %531 = vsyncadd [#allocation15], %s530
          %s533 = sshll.u32 [#allocation14], 4
          %s534 = int_to_ptr.vmem [resolvable:$true] %s533
          %536 = dma.hbm_to_vmem [thread:$0]  %s9, 16, %s534, [#allocation15]
        $region48: #{tpu_custom_call.1} parent=11 // pred_fallthru
          _
        // Predicated region
        $region49: #{tpu_custom_call.1} parent=11 // pred_check
          %p537 = pneg %p267
        $region50: #{tpu_custom_call.1} parent=11 // pred_check_branch
          %539 = sbr.rel (%p537) target = $region52
        $region51: #{tpu_custom_call.1} parent=11 // pred_region
          _
        $region52: #{tpu_custom_call.1} parent=11 // pred_fallthru
          _
        // Predicated region
        $region53: #{tpu_custom_call.1} parent=11 // pred_check
          %p540 = pneg %p288
        $region54: #{tpu_custom_call.1} parent=11 // pred_check_branch
          %542 = sbr.rel (%p540) target = $region56
        $region55: #{tpu_custom_call.1} parent=11 // pred_region
          _
        $region56: #{tpu_custom_call.1} parent=11 // pred_fallthru
          _
        // Predicated region
        $region57: #{tpu_custom_call.1} parent=11 // pred_check
          %p543 = pneg %p309
        $region58: #{tpu_custom_call.1} parent=11 // pred_check_branch
          %545 = sbr.rel (%p543) target = $region60
        $region59: #{tpu_custom_call.1} parent=11 // pred_region
          _
        $region60: #{tpu_custom_call.1} parent=11 // pred_fallthru
          _
        // Predicated region
        $region61: #{tpu_custom_call.1} parent=11 // pred_check
          %p546 = pneg %p330
        $region62: #{tpu_custom_call.1} parent=11 // pred_check_branch
          %548 = sbr.rel (%p546) target = $region64
        $region63: #{tpu_custom_call.1} parent=11 // pred_region
          _
        $region64: #{tpu_custom_call.1} parent=11 // pred_fallthru
          _
        // Predicated region
        $region65: #{tpu_custom_call.1} parent=11 // pred_check
          %p549 = pneg %p351
        $region66: #{tpu_custom_call.1} parent=11 // pred_check_branch
          %551 = sbr.rel (%p549) target = $region68
        $region67: #{tpu_custom_call.1} parent=11 // pred_region
          _
        $region68: #{tpu_custom_call.1} parent=11 // pred_fallthru
          _
        // Predicated region
        $region69: #{tpu_custom_call.1} parent=11 // pred_check
          %p552 = pneg %p372
        $region70: #{tpu_custom_call.1} parent=11 // pred_check_branch
          %554 = sbr.rel (%p552) target = $region72
        $region71: #{tpu_custom_call.1} parent=11 // pred_region
          _
        $region72: #{tpu_custom_call.1} parent=11 // pred_fallthru
          _
        // Predicated region
        $region73: #{tpu_custom_call.1} parent=11 // pred_check
          %p555 = pneg %p393
        $region74: #{tpu_custom_call.1} parent=11 // pred_check_branch
          %557 = sbr.rel (%p555) target = $region76
        $region75: #{tpu_custom_call.1} parent=11 // pred_region
          _
        $region76: #{tpu_custom_call.1} parent=11 // pred_fallthru
          _
        // Predicated region
        $region77: #{tpu_custom_call.1} parent=11 // pred_check
          %p558 = pneg %p414
        $region78: #{tpu_custom_call.1} parent=11 // pred_check_branch
          %560 = sbr.rel (%p558) target = $region80
        $region79: #{tpu_custom_call.1} parent=11 // pred_region
          _
        $region80: #{tpu_custom_call.1} parent=11 // pred_fallthru
          _
        // Predicated region
        $region81: #{tpu_custom_call.1} parent=11 // pred_check
          %p561 = pneg %p435
        $region82: #{tpu_custom_call.1} parent=11 // pred_check_branch
          %563 = sbr.rel (%p561) target = $region84
        $region83: #{tpu_custom_call.1} parent=11 // pred_region
          _
        $region84: #{tpu_custom_call.1} parent=11 // pred_fallthru
          _
      $region12: #{tpu_custom_call.1} parent=5 // pred_fallthru
        _
      %p564 = scmp.lt.s32.totalorder %s31, 2
      // Predicated region
      $region85: #{tpu_custom_call.1} parent=5 // pred_check
        %p565 = pneg %p564
      $region86: #{tpu_custom_call.1} parent=5 // pred_check_branch
        %567 = sbr.rel (%p565) target = $region88
      $region87: #{tpu_custom_call.1} parent=5 // pred_region
        // Predicated region
        $region89: #{tpu_custom_call.1} parent=87 // pred_check
          %p568 = pneg %p51
        $region90: #{tpu_custom_call.1} parent=87 // pred_check_branch
          %570 = sbr.rel (%p568) target = $region92
        $region91: #{tpu_custom_call.1} parent=87 // pred_region
          %p571 = scmp.lt.s32.totalorder %s31, 1
          %s572 = scalar_select %p571, %s31, 1
          %s573 = smul.addr %s572, 8
          %s574 = scalar_lea.vmem %s0, %s573
        $region92: #{tpu_custom_call.1} parent=87 // pred_fallthru
          _
      $region88: #{tpu_custom_call.1} parent=5 // pred_fallthru
        _
      %p575 = scmp.le.s32.totalorder 1, %s31
      %p576 = scmp.lt.s32.totalorder %s31, 3
      %p577 = pnand %p575, %p576
      %p578 = pneg %p577
      // Predicated region
      $region93: #{tpu_custom_call.1} parent=5 // pred_check
        _
      $region94: #{tpu_custom_call.1} parent=5 // pred_check_branch
        %580 = sbr.rel (%p577) target = $region96
      $region95: #{tpu_custom_call.1} parent=5 // pred_region
        %s581 = ssub.s32 %s31, 1
        // Predicated region
        $region97: #{tpu_custom_call.1} parent=95 // pred_check
          %p582 = pneg %p120
        $region98: #{tpu_custom_call.1} parent=95 // pred_check_branch
          %584 = sbr.rel (%p582) target = $region100
        $region99: #{tpu_custom_call.1} parent=95 // pred_region
          %585 = dma.done [#allocation9], 64
        $region100: #{tpu_custom_call.1} parent=95 // pred_fallthru
          _
        // Predicated region
        $region101: #{tpu_custom_call.1} parent=95 // pred_check
          %p586 = pneg %p183
        $region102: #{tpu_custom_call.1} parent=95 // pred_check_branch
          %588 = sbr.rel (%p586) target = $region104
        $region103: #{tpu_custom_call.1} parent=95 // pred_region
          %589 = dma.done [#allocation12], 128
        $region104: #{tpu_custom_call.1} parent=95 // pred_fallthru
          _
        // Predicated region
        $region105: #{tpu_custom_call.1} parent=95 // pred_check
          %p590 = pneg %p225
        $region106: #{tpu_custom_call.1} parent=95 // pred_check_branch
          %592 = sbr.rel (%p590) target = $region108
        $region107: #{tpu_custom_call.1} parent=95 // pred_region
          %593 = dma.done [#allocation12], 256
        $region108: #{tpu_custom_call.1} parent=95 // pred_fallthru
          _
        // Predicated region
        $region109: #{tpu_custom_call.1} parent=95 // pred_check
          %p594 = pneg %p246
        $region110: #{tpu_custom_call.1} parent=95 // pred_check_branch
          %596 = sbr.rel (%p594) target = $region112
        $region111: #{tpu_custom_call.1} parent=95 // pred_region
          %597 = dma.done [#allocation15], 16
        $region112: #{tpu_custom_call.1} parent=95 // pred_fallthru
          _
        %p598 = scmp.lt.s32.totalorder %s36, 1
        %s599 = scalar_select %p598, %s36, 1
        %s600 = smul.addr %s599, 8
        %s601 = scalar_lea.vmem %s0, %s600
        %p602 = pneg %p57
        %p603 = pneg %p54
        %p604 = pneg %p78
        %p605 = pneg %p75
        %p606 = pneg %p99
        %p607 = pneg %p96
        %p608 = pneg %p120
        %p609 = pneg %p117
        %p610 = pneg %p141
        %p611 = pneg %p138
        %p612 = pneg %p162
        %p613 = pneg %p159
        %p614 = pneg %p183
        %p615 = pneg %p180
        %p616 = pneg %p204
        %p617 = pneg %p201
        %p618 = pneg %p225
        %p619 = pneg %p222
        %p620 = pneg %p246
        %p621 = pneg %p243
        %p622 = pneg %p267
        %p623 = pneg %p264
        %p624 = pneg %p288
        %p625 = pneg %p285
        %p626 = pneg %p309
        %p627 = pneg %p306
        %p628 = pneg %p330
        %p629 = pneg %p327
        %p630 = pneg %p351
        %p631 = pneg %p348
        %p632 = pneg %p372
        %p633 = pneg %p369
        %p634 = pneg %p393
        %p635 = pneg %p390
        %p636 = pneg %p414
        %p637 = pneg %p411
        %p638 = pneg %p435
        %p639 = pneg %p432
        %p640 = pneg %p461
        %p641 = pneg %p458
        %s642 = sand.u32 %s448, 1
        %s643 = scalar_lea.sflag [#allocation10], %s642
        %s644 = sand.u32 %s448, 1
        %s645 = smul.addr %s644, 8
        %s646 = scalar_lea.vmem [#allocation16], %s645
        %p647 = scmp.lt.s32.totalorder %s36, 1
        %s648 = scalar_select %p647, %s36, 1
        %s649 = smul.addr %s648, 8
        %s650 = scalar_lea.vmem %s0, %s649
        %v652 = vld [vmem:[%s650] sm:$0xff]
        %v653 = vpack.c.bf16 %v652, %v652
        %v654 = vld [vmem:[%s1] sm:$0xf]
        %v655 = vld [vmem:[%s1 + $0x4] sm:$0xf]
        %v656 = vld [vmem:[%s1 + $0x8] sm:$0xf]
        %v657 = vld [vmem:[%s1 + $0xc] sm:$0xf]
        %v662 = vunpack.c.l.b16 %v654
        %v663 = vunpack.c.l.b16 %v655
        %v664 = vunpack.c.l.b16 %v656
        %v665 = vunpack.c.l.b16 %v657
        %v666 = vpack.c.b16 %v663, %v662
        %v667 = vpack.c.b16 %v665, %v664
        %vm670 = vcmask 261120
        %v672 = vsel %vm670, %v653, 0
        %674 = vmatprep.subr.bf16.mxu0 0
        %675 = vmatpush1.bf16.msra.mxu0 %v666
        %676 = vmatprep.subr.bf16.mxu0 0
        %677 = vmatpush1.bf16.msra.mxu0 %v667
        %678 = vmatprep.subr.bf16.mxu0 0
        %679 = vmatpush1.bf16.msra.mxu0 0
        %680 = vmatprep.subr.bf16.mxu0 0
        %681 = vmatpush1.bf16.msra.mxu0 0
        %682 = vmatprep.subr.bf16.mxu0 0
        %683 = vmatpush1.bf16.msra.mxu0 0
        %684 = vmatprep.subr.bf16.mxu0 0
        %685 = vmatpush1.bf16.msra.mxu0 0
        %686 = vmatprep.subr.bf16.mxu0 0
        %687 = vmatpush1.bf16.msra.mxu0 0
        %688 = vmatprep.subr.bf16.mxu0 0
        %689 = vmatpush1.bf16.msra.mxu0 0
        %690 = vmatprep.subr.bf16.mxu0 0
        %691 = vmatpush1.bf16.msra.mxu0 0
        %692 = vmatprep.subr.bf16.mxu0 0
        %693 = vmatpush1.bf16.msra.mxu0 0
        %694 = vmatprep.subr.bf16.mxu0 0
        %695 = vmatpush1.bf16.msra.mxu0 0
        %696 = vmatprep.subr.bf16.mxu0 0
        %697 = vmatpush1.bf16.msra.mxu0 0
        %698 = vmatprep.subr.bf16.mxu0 0
        %699 = vmatpush1.bf16.msra.mxu0 0
        %700 = vmatprep.subr.bf16.mxu0 0
        %701 = vmatpush1.bf16.msra.mxu0 0
        %702 = vmatprep.subr.bf16.mxu0 0
        %703 = vmatpush1.bf16.msra.mxu0 0
        %704 = vmatprep.subr.bf16.mxu0 0
        %705 = vmatpush1.bf16.msra.mxu0 0
        %706 = vmatprep.mubr.bf16.mxu0 0
        %707 = vmatmul.mubr.bf16.gmra.mrb[0].mxu0 %v672
        %v708 = vpop.f32.mrb[0].mxu0
        %v709 = vadd.f32 0.0, %v708
        %v710 = vpop.f32.mrb[0].mxu0
        %v711 = vpop.f32.mrb[0].mxu0
        %v712 = vpop.f32.mrb[0].mxu0
        %713 = vdwg.mxu0
        %v714 = vld [vmem:[%s2] sm:$0xf]
        %v715 = vld [vmem:[%s2 + $0x4] sm:$0xf]
        %v716 = vld [vmem:[%s2 + $0x8] sm:$0xf]
        %v717 = vld [vmem:[%s2 + $0xc] sm:$0xf]
        %v722 = vunpack.c.l.b16 %v714
        %v723 = vunpack.c.l.b16 %v715
        %v724 = vunpack.c.l.b16 %v716
        %v725 = vunpack.c.l.b16 %v717
        %v726 = vpack.c.b16 %v723, %v722
        %v727 = vpack.c.b16 %v725, %v724
        %730 = vmatprep.subr.bf16.mxu0 0
        %731 = vmatpush1.bf16.msra.mxu0 %v726
        %732 = vmatprep.subr.bf16.mxu0 0
        %733 = vmatpush1.bf16.msra.mxu0 %v727
        %734 = vmatprep.subr.bf16.mxu0 0
        %735 = vmatpush1.bf16.msra.mxu0 0
        %736 = vmatprep.subr.bf16.mxu0 0
        %737 = vmatpush1.bf16.msra.mxu0 0
        %738 = vmatprep.subr.bf16.mxu0 0
        %739 = vmatpush1.bf16.msra.mxu0 0
        %740 = vmatprep.subr.bf16.mxu0 0
        %741 = vmatpush1.bf16.msra.mxu0 0
        %742 = vmatprep.subr.bf16.mxu0 0
        %743 = vmatpush1.bf16.msra.mxu0 0
        %744 = vmatprep.subr.bf16.mxu0 0
        %745 = vmatpush1.bf16.msra.mxu0 0
        %746 = vmatprep.subr.bf16.mxu0 0
        %747 = vmatpush1.bf16.msra.mxu0 0
        %748 = vmatprep.subr.bf16.mxu0 0
        %749 = vmatpush1.bf16.msra.mxu0 0
        %750 = vmatprep.subr.bf16.mxu0 0
        %751 = vmatpush1.bf16.msra.mxu0 0
        %752 = vmatprep.subr.bf16.mxu0 0
        %753 = vmatpush1.bf16.msra.mxu0 0
        %754 = vmatprep.subr.bf16.mxu0 0
        %755 = vmatpush1.bf16.msra.mxu0 0
        %756 = vmatprep.subr.bf16.mxu0 0
        %757 = vmatpush1.bf16.msra.mxu0 0
        %758 = vmatprep.subr.bf16.mxu0 0
        %759 = vmatpush1.bf16.msra.mxu0 0
        %760 = vmatprep.subr.bf16.mxu0 0
        %761 = vmatpush1.bf16.msra.mxu0 0
        %762 = vmatprep.mubr.bf16.mxu0 0
        %763 = vmatmul.mubr.bf16.gmra.mrb[0].mxu0 %v672
        %v764 = vpop.f32.mrb[0].mxu0
        %v765 = vadd.f32 0.0, %v764
        %v766 = vpop.f32.mrb[0].mxu0
        %v767 = vpop.f32.mrb[0].mxu0
        %v768 = vpop.f32.mrb[0].mxu0
        %769 = vdwg.mxu0
        %vm770 = vcmask 518144
        %771 = vst.msk [vmem:[#allocation2] sm:$0x7] %vm770, 0.0
        %vm772 = vcmask 523264
        %773 = vst.msk [vmem:[#allocation2 + $0x3] sm:$0xff] %vm772, %v709
        %v774 = vlaneseq
        %v775 = vshrl.u32 %v774, 7
        %vm776 = vcmp.lt.s32.totalorder %v775, 0
        %v777 = vsub.s32 0, %v775
        %v778 = vsel %vm776, %v777, %v775
        %v779 = vshrl.u32 %v778, 3
        %v780 = vand.u32 %v778, 7
        %v781 = vsub.s32 0, %v780
        %v782 = vsel %vm776, %v781, %v780
        %vm783 = vcmp.ne.s32.totalorder %v782, 0
        %vm784 = vcmp.lt.s32.totalorder %v782, 0
        %vm785 = vmand %vm784, %vm783
        %v786 = vadd.s32 %v782, 8
        %v787 = vsel %vm785, %v786, %v782
        %v788 = vld [vmem:[%s4] sm:$0x1]
        %v790 = vlaneseq
        %v791 = vshrl.u32 %v790, 7
        %v792 = vsub.s32 0, %v791
        %v793 = vrot.slane %v788, %v792
        %v795 = vld [vmem:[#allocation2] sm:$0xff]
        %vm796 = vcmp.ge.s32.totalorder %v787, 3
        %v797 = vsel %vm796, 1, 0
        %vm798 = vcmp.eq.s32.totalorder %v797, 1
        %v799 = vsel %vm798, %v795, 0.0
        %v800 = vld [vmem:[#allocation8] sm:$0x1]
        %v801 = vlaneseq
        %v802 = vshrl.u32 %v801, 7
        %v803 = vsub.s32 0, %v802
        %v804 = vrot.slane %v800, %v803
        %v805 = vmul.f32 %v804, %v799
        %v806 = vadd.f32 %v793, %v805
        %v807 = vld [vmem:[#allocation2 + $0x1] sm:$0xff]
        %vm808 = vcmp.ge.s32.totalorder %v787, 2
        %v809 = vsel %vm808, 1, 0
        %vm810 = vcmp.eq.s32.totalorder %v809, 1
        %v811 = vsel %vm810, %v807, 0.0
        %v812 = vld [vmem:[#allocation8 + $0x1] sm:$0x1]
        %v813 = vlaneseq
        %v814 = vshrl.u32 %v813, 7
        %v815 = vsub.s32 0, %v814
        %v816 = vrot.slane %v812, %v815
        %v817 = vmul.f32 %v816, %v811
        %v818 = vadd.f32 %v806, %v817
        %v819 = vld [vmem:[#allocation2 + $0x2] sm:$0xff]
        %vm820 = vcmp.ge.s32.totalorder %v787, 1
        %v821 = vsel %vm820, 1, 0
        %vm822 = vcmp.eq.s32.totalorder %v821, 1
        %v823 = vsel %vm822, %v819, 0.0
        %v824 = vld [vmem:[#allocation8 + $0x2] sm:$0x1]
        %v825 = vlaneseq
        %v826 = vshrl.u32 %v825, 7
        %v827 = vsub.s32 0, %v826
        %v828 = vrot.slane %v824, %v827
        %v829 = vmul.f32 %v828, %v823
        %v830 = vadd.f32 %v818, %v829
        %v831 = vld [vmem:[#allocation2 + $0x3] sm:$0xff]
        %v832 = vld [vmem:[#allocation8 + $0x3] sm:$0x1]
        %v833 = vlaneseq
        %v834 = vshrl.u32 %v833, 7
        %v835 = vsub.s32 0, %v834
        %v836 = vrot.slane %v832, %v835
        %v837 = vmul.f32 %v836, %v831
        %v838 = vadd.f32 %v830, %v837
        %v839 = vxor.u32 %v838, 2147483648
        %v840 = vmul.f32 %v839, 1.442695
        %v841 = vpow.pop %v840
        %v842 = vadd.f32 %v841, 1.0
        %v843 = vrcp.pop %v842
        %v844 = vmul.f32 1.0, %v843
        %v845 = vmul.f32 %v838, %v844
        %v846 = vld [vmem:[%s5] sm:$0xff]
        %v847 = vld [vmem:[%s5 + $0x8] sm:$0xff]
        %v848 = vld [vmem:[%s5 + $0x10] sm:$0xff]
        %v849 = vld [vmem:[%s5 + $0x18] sm:$0xff]
        %v850 = vld [vmem:[%s5 + $0x20] sm:$0xff]
        %v851 = vld [vmem:[%s5 + $0x28] sm:$0xff]
        %v852 = vld [vmem:[%s5 + $0x30] sm:$0xff]
        %v853 = vld [vmem:[%s5 + $0x38] sm:$0xff]
        %v855 = vsel %vm772, %v845, 0
        %857 = vmatprep.subr.mxu0 0.0
        %858 = vmatpush1.msra.mxu0 %v846
        %859 = vmatprep.subr.mxu0 0.0
        %860 = vmatpush1.msra.mxu0 %v847
        %861 = vmatprep.subr.mxu0 0.0
        %862 = vmatpush1.msra.mxu0 %v848
        %863 = vmatprep.subr.mxu0 0.0
        %864 = vmatpush1.msra.mxu0 %v849
        %865 = vmatprep.subr.mxu0 0.0
        %866 = vmatpush1.msra.mxu0 %v850
        %867 = vmatprep.subr.mxu0 0.0
        %868 = vmatpush1.msra.mxu0 %v851
        %869 = vmatprep.subr.mxu0 0.0
        %870 = vmatpush1.msra.mxu0 %v852
        %871 = vmatprep.subr.mxu0 0.0
        %872 = vmatpush1.msra.mxu0 %v853
        %873 = vmatprep.subr.mxu0 0.0
        %874 = vmatpush1.msra.mxu0 0.0
        %875 = vmatprep.subr.mxu0 0.0
        %876 = vmatpush1.msra.mxu0 0.0
        %877 = vmatprep.subr.mxu0 0.0
        %878 = vmatpush1.msra.mxu0 0.0
        %879 = vmatprep.subr.mxu0 0.0
        %880 = vmatpush1.msra.mxu0 0.0
        %881 = vmatprep.subr.mxu0 0.0
        %882 = vmatpush1.msra.mxu0 0.0
        %883 = vmatprep.subr.mxu0 0.0
        %884 = vmatpush1.msra.mxu0 0.0
        %885 = vmatprep.subr.mxu0 0.0
        %886 = vmatpush1.msra.mxu0 0.0
        %887 = vmatprep.subr.mxu0 0.0
        %888 = vmatpush1.msra.mxu0 0.0
        %889 = vmatprep.subr.mxu0 0.0
        %890 = vmatpush1.msra.mxu0 0.0
        %891 = vmatprep.subr.mxu0 0.0
        %892 = vmatpush1.msra.mxu0 0.0
        %893 = vmatprep.subr.mxu0 0.0
        %894 = vmatpush1.msra.mxu0 0.0
        %895 = vmatprep.subr.mxu0 0.0
        %896 = vmatpush1.msra.mxu0 0.0
        %897 = vmatprep.subr.mxu0 0.0
        %898 = vmatpush1.msra.mxu0 0.0
        %899 = vmatprep.subr.mxu0 0.0
        %900 = vmatpush1.msra.mxu0 0.0
        %901 = vmatprep.subr.mxu0 0.0
        %902 = vmatpush1.msra.mxu0 0.0
        %903 = vmatprep.subr.mxu0 0.0
        %904 = vmatpush1.msra.mxu0 0.0
        %905 = vmatprep.subr.mxu0 0.0
        %906 = vmatpush1.msra.mxu0 0.0
        %907 = vmatprep.subr.mxu0 0.0
        %908 = vmatpush1.msra.mxu0 0.0
        %909 = vmatprep.subr.mxu0 0.0
        %910 = vmatpush1.msra.mxu0 0.0
        %911 = vmatprep.subr.mxu0 0.0
        %912 = vmatpush1.msra.mxu0 0.0
        %913 = vmatprep.subr.mxu0 0.0
        %914 = vmatpush1.msra.mxu0 0.0
        %915 = vmatprep.subr.mxu0 0.0
        %916 = vmatpush1.msra.mxu0 0.0
        %917 = vmatprep.subr.mxu0 0.0
        %918 = vmatpush1.msra.mxu0 0.0
        %919 = vmatprep.subr.mxu0 0.0
        %920 = vmatpush1.msra.mxu0 0.0
        %921 = vmatprep.mubr.f32.mxu0 0.0
        %922 = vmatmul.mubr.f32.gmra.mrb[0].mxu0 %v855
        %v923 = vpop.f32.mrb[0].mxu0
        %v924 = vadd.f32 0.0, %v923
        %v925 = vpop.f32.mrb[0].mxu0
        %926 = vdwg.mxu0
        %v927 = vld [vmem:[#allocation11] sm:$0xff]
        %v928 = vld [vmem:[%s7] sm:$0x1]
        %v930 = vlaneseq
        %v931 = vshrl.u32 %v930, 7
        %v932 = vsub.s32 0, %v931
        %v933 = vrot.slane %v928, %v932
        %vm935 = vcmask 64512
        %v937 = vsel %vm935, %v924, 0
        %939 = vmatprep.subr.mxu0 0.0
        %940 = vmatpush1.msra.mxu0 %v927
        %941 = vmatprep.subr.mxu0 0.0
        %942 = vmatpush1.msra.mxu0 0.0
        %943 = vmatprep.subr.mxu0 0.0
        %944 = vmatpush1.msra.mxu0 0.0
        %945 = vmatprep.subr.mxu0 0.0
        %946 = vmatpush1.msra.mxu0 0.0
        %947 = vmatprep.subr.mxu0 0.0
        %948 = vmatpush1.msra.mxu0 0.0
        %949 = vmatprep.subr.mxu0 0.0
        %950 = vmatpush1.msra.mxu0 0.0
        %951 = vmatprep.subr.mxu0 0.0
        %952 = vmatpush1.msra.mxu0 0.0
        %953 = vmatprep.subr.mxu0 0.0
        %954 = vmatpush1.msra.mxu0 0.0
        %955 = vmatprep.subr.mxu0 0.0
        %956 = vmatpush1.msra.mxu0 0.0
        %957 = vmatprep.subr.mxu0 0.0
        %958 = vmatpush1.msra.mxu0 0.0
        %959 = vmatprep.subr.mxu0 0.0
        %960 = vmatpush1.msra.mxu0 0.0
        %961 = vmatprep.subr.mxu0 0.0
        %962 = vmatpush1.msra.mxu0 0.0
        %963 = vmatprep.subr.mxu0 0.0
        %964 = vmatpush1.msra.mxu0 0.0
        %965 = vmatprep.subr.mxu0 0.0
        %966 = vmatpush1.msra.mxu0 0.0
        %967 = vmatprep.subr.mxu0 0.0
        %968 = vmatpush1.msra.mxu0 0.0
        %969 = vmatprep.subr.mxu0 0.0
        %970 = vmatpush1.msra.mxu0 0.0
        %971 = vmatprep.subr.mxu0 0.0
        %972 = vmatpush1.msra.mxu0 0.0
        %973 = vmatprep.subr.mxu0 0.0
        %974 = vmatpush1.msra.mxu0 0.0
        %975 = vmatprep.subr.mxu0 0.0
        %976 = vmatpush1.msra.mxu0 0.0
        %977 = vmatprep.subr.mxu0 0.0
        %978 = vmatpush1.msra.mxu0 0.0
        %979 = vmatprep.subr.mxu0 0.0
        %980 = vmatpush1.msra.mxu0 0.0
        %981 = vmatprep.subr.mxu0 0.0
        %982 = vmatpush1.msra.mxu0 0.0
        %983 = vmatprep.subr.mxu0 0.0
        %984 = vmatpush1.msra.mxu0 0.0
        %985 = vmatprep.subr.mxu0 0.0
        %986 = vmatpush1.msra.mxu0 0.0
        %987 = vmatprep.subr.mxu0 0.0
        %988 = vmatpush1.msra.mxu0 0.0
        %989 = vmatprep.subr.mxu0 0.0
        %990 = vmatpush1.msra.mxu0 0.0
        %991 = vmatprep.subr.mxu0 0.0
        %992 = vmatpush1.msra.mxu0 0.0
        %993 = vmatprep.subr.mxu0 0.0
        %994 = vmatpush1.msra.mxu0 0.0
        %995 = vmatprep.subr.mxu0 0.0
        %996 = vmatpush1.msra.mxu0 0.0
        %997 = vmatprep.subr.mxu0 0.0
        %998 = vmatpush1.msra.mxu0 0.0
        %999 = vmatprep.subr.mxu0 0.0
        %1000 = vmatpush1.msra.mxu0 0.0
        %1001 = vmatprep.subr.mxu0 0.0
        %1002 = vmatpush1.msra.mxu0 0.0
        %1003 = vmatprep.mubr.f32.mxu0 0.0
        %1004 = vmatmul.mubr.f32.gmra.mrb[0].mxu0 %v937
        %v1005 = vpop.f32.mrb[0].mxu0
        %v1006 = vadd.f32 %v933, %v1005
        %v1007 = vpop.f32.mrb[0].mxu0
        %1008 = vdwg.mxu0
        %vm1009 = vcmp.gt.f32.partialorder %v1006, 20.0
        %v1010 = vmin.f32 %v1006, 20.0
        %v1011 = vmul.f32 %v1010, 1.442695
        %v1012 = vpow.pop %v1011
        %v1013 = vadd.f32 %v1012, 1.0
        %v1014 = vlog2.pop %v1013
        %v1015 = vmul.f32 %v1014, 0.6931472
        %v1016 = vmul.f32 -0.5, %v1012
        %v1017 = vadd.f32 %v1016, 1.0
        %v1018 = vmul.f32 %v1017, %v1012
        %v1019 = vand.u32 2147483647, %v1012
        %vm1020 = vcmp.lt.f32.partialorder %v1019, 0.0004427343
        %v1021 = vsel %vm1020, %v1018, %v1015
        %v1022 = vsel %vm1009, %v1006, %v1021
        %v1023 = vmul.f32 %v1022, %v845
        %1024 = vst.msk [vmem:[#allocation3] sm:$0xff] %vm772, %v1022
        %1025 = vst.msk [vmem:[#allocation4] sm:$0xff] %vm772, %v1023
        %1026 = vrot.lane.b32.xlu0 %v924, 120
        %v1027 = vpop.permute.xlu0 %1026
        %vm1029 = vcmask 130048
        %1030 = vst.msk [vmem:[#allocation5] sm:$0xff] %vm1029, %v1027
        %1031 = vrot.lane.b32.xlu0 %v924, 104
        %v1032 = vpop.permute.xlu0 %1031
        %1034 = vst.msk [vmem:[#allocation6] sm:$0xff] %vm1029, %v1032
        %v1035 = vld [vmem:[#allocation13] sm:$0xff]
        %v1036 = vld [vmem:[#allocation13 + $0x8] sm:$0xff]
        %v1037 = vadd.s32 %v775, 8
        %v1038 = vlaneseq
        %v1039 = vand.u32 %v1038, 127
        %vm1040 = vcmp.eq.s32.totalorder %v775, %v1039
        %vm1041 = vcmp.eq.s32.totalorder %v1037, %v1039
        %v1042 = vsel %vm1040, 1, 0
        %v1043 = vsel %vm1041, 1, 0
        %v1044 = vcvt.s32.f32 %v1042
        %v1045 = vcvt.s32.f32 %v1043
        %v1046 = vld [vmem:[#allocation3] sm:$0x1]
        %v1047 = vld [vmem:[#allocation4] sm:$0x1]
        %v1048 = vld [vmem:[#allocation5] sm:$0x1]
        %v1049 = vld [vmem:[#allocation6] sm:$0x1]
        %v1050 = vlaneseq
        %v1051 = vshrl.u32 %v1050, 7
        %v1052 = vsub.s32 0, %v1051
        %v1053 = vrot.slane %v1048, %v1052
        %v1054 = vmul.f32 %v1053, %v1044
        %v1055 = vmul.f32 %v1053, %v1045
        %v1056 = vsel %vm1029, %v1054, 0.0
        %1057 = vadd.xlane.f32.xlu0 %v1056
        %v1058 = vpop.xlane.xlu0 %1057
        %v1059 = vsel %vm1029, %v1055, 0.0
        %1060 = vadd.xlane.f32.xlu0 %v1059
        %v1061 = vpop.xlane.xlu0 %1060
        %v1062 = vlaneseq
        %v1063 = vshrl.u32 %v1062, 7
        %v1064 = vsub.s32 0, %v1063
        %v1065 = vrot.slane %v1049, %v1064
        %v1066 = vmul.f32 %v1065, %v1044
        %v1067 = vmul.f32 %v1065, %v1045
        %v1068 = vsel %vm1029, %v1066, 0.0
        %1069 = vadd.xlane.f32.xlu0 %v1068
        %v1070 = vpop.xlane.xlu0 %1069
        %v1071 = vsel %vm1029, %v1067, 0.0
        %1072 = vadd.xlane.f32.xlu0 %v1071
        %v1073 = vpop.xlane.xlu0 %1072
        %v1074 = vlaneseq
        %v1075 = vshrl.u32 %v1074, 7
        %v1076 = vsub.s32 0, %v1075
        %v1077 = vrot.slane %v1046, %v1076
        %v1078 = vmul.f32 %v1077, %v1035
        %v1079 = vmul.f32 %v1077, %v1036
        %v1080 = vmul.f32 %v1078, 1.442695
        %v1081 = vpow.pop %v1080
        %v1082 = vmul.f32 %v1079, 1.442695
        %v1083 = vpow.pop %v1082
        %v1084 = vmul.f32 %v1081, 0.0
        %v1085 = vmul.f32 %v1083, 0.0
        %v1086 = vlaneseq
        %v1087 = vshrl.u32 %v1086, 7
        %v1088 = vsub.s32 0, %v1087
        %v1089 = vrot.slane %v1047, %v1088
        %v1090 = vmul.f32 %v1058, %v1089
        %v1091 = vmul.f32 %v1061, %v1089
        %v1092 = vadd.f32 %v1084, %v1090
        %v1093 = vadd.f32 %v1085, %v1091
        %v1094 = vmul.f32 %v1070, %v1092
        %v1095 = vmul.f32 %v1073, %v1093
        %v1096 = vsel %vm772, %v1094, 0.0
        %v1097 = vsel %vm772, %v1095, 0.0
        %v1098 = vadd.f32 %v1096, %v1097
        %v1099 = vrot.slane %v1098, 4
        %v1100 = vadd.f32 %v1098, %v1099
        %v1101 = vrot.slane %v1100, 2
        %v1102 = vadd.f32 %v1100, %v1101
        %v1103 = vrot.slane %v1102, 1
        %v1104 = vadd.f32 %v1102, %v1103
        %s1105 = sadd.s32 0, 1
        %s1106 = scalar_lea.vmem [#allocation3], %s1105
        %v1107 = vld [vmem:[%s1106] sm:$0x1]
        %s1108 = scalar_lea.vmem [#allocation4], %s1105
        %v1109 = vld [vmem:[%s1108] sm:$0x1]
        %s1110 = scalar_lea.vmem [#allocation5], %s1105
        %v1111 = vld [vmem:[%s1110] sm:$0x1]
        %s1112 = scalar_lea.vmem [#allocation6], %s1105
        %v1113 = vld [vmem:[%s1112] sm:$0x1]
        %v1114 = vlaneseq
        %v1115 = vshrl.u32 %v1114, 7
        %v1116 = vsub.s32 0, %v1115
        %v1117 = vrot.slane %v1111, %v1116
        %v1118 = vmul.f32 %v1117, %v1044
        %v1119 = vmul.f32 %v1117, %v1045
        %v1120 = vsel %vm1029, %v1118, 0.0
        %1121 = vadd.xlane.f32.xlu0 %v1120
        %v1122 = vpop.xlane.xlu0 %1121
        %v1123 = vsel %vm1029, %v1119, 0.0
        %1124 = vadd.xlane.f32.xlu0 %v1123
        %v1125 = vpop.xlane.xlu0 %1124
        %v1126 = vlaneseq
        %v1127 = vshrl.u32 %v1126, 7
        %v1128 = vsub.s32 0, %v1127
        %v1129 = vrot.slane %v1113, %v1128
        %v1130 = vmul.f32 %v1129, %v1044
        %v1131 = vmul.f32 %v1129, %v1045
        %v1132 = vsel %vm1029, %v1130, 0.0
        %1133 = vadd.xlane.f32.xlu0 %v1132
        %v1134 = vpop.xlane.xlu0 %1133
        %v1135 = vsel %vm1029, %v1131, 0.0
        %1136 = vadd.xlane.f32.xlu0 %v1135
        %v1137 = vpop.xlane.xlu0 %1136
        %v1138 = vlaneseq
        %v1139 = vshrl.u32 %v1138, 7
        %v1140 = vsub.s32 0, %v1139
        %v1141 = vrot.slane %v1107, %v1140
        %v1142 = vmul.f32 %v1141, %v1035
        %v1143 = vmul.f32 %v1141, %v1036
        %v1144 = vmul.f32 %v1142, 1.442695
        %v1145 = vpow.pop %v1144
        %v1146 = vmul.f32 %v1143, 1.442695
        %v1147 = vpow.pop %v1146
        %v1148 = vmul.f32 %v1145, %v1092
        %v1149 = vmul.f32 %v1147, %v1093
        %v1150 = vlaneseq
        %v1151 = vshrl.u32 %v1150, 7
        %v1152 = vsub.s32 0, %v1151
        %v1153 = vrot.slane %v1109, %v1152
        %v1154 = vmul.f32 %v1122, %v1153
        %v1155 = vmul.f32 %v1125, %v1153
        %v1156 = vadd.f32 %v1148, %v1154
        %v1157 = vadd.f32 %v1149, %v1155
        %v1158 = vmul.f32 %v1134, %v1156
        %v1159 = vmul.f32 %v1137, %v1157
        %v1160 = vsel %vm772, %v1158, 0.0
        %v1161 = vsel %vm772, %v1159, 0.0
        %v1162 = vadd.f32 %v1160, %v1161
        %v1163 = vrot.slane %v1162, 4
        %v1164 = vadd.f32 %v1162, %v1163
        %v1165 = vrot.slane %v1164, 2
        %v1166 = vadd.f32 %v1164, %v1165
        %v1167 = vrot.slane %v1166, 1
        %v1168 = vadd.f32 %v1166, %v1167
        %s1169 = sadd.s32 0, 2
        %s1170 = scalar_lea.vmem [#allocation3], %s1169
        %v1171 = vld [vmem:[%s1170] sm:$0x1]
        %s1172 = scalar_lea.vmem [#allocation4], %s1169
        %v1173 = vld [vmem:[%s1172] sm:$0x1]
        %s1174 = scalar_lea.vmem [#allocation5], %s1169
        %v1175 = vld [vmem:[%s1174] sm:$0x1]
        %s1176 = scalar_lea.vmem [#allocation6], %s1169
        %v1177 = vld [vmem:[%s1176] sm:$0x1]
        %v1178 = vlaneseq
        %v1179 = vshrl.u32 %v1178, 7
        %v1180 = vsub.s32 0, %v1179
        %v1181 = vrot.slane %v1175, %v1180
        %v1182 = vmul.f32 %v1181, %v1044
        %v1183 = vmul.f32 %v1181, %v1045
        %v1184 = vsel %vm1029, %v1182, 0.0
        %1185 = vadd.xlane.f32.xlu0 %v1184
        %v1186 = vpop.xlane.xlu0 %1185
        %v1187 = vsel %vm1029, %v1183, 0.0
        %1188 = vadd.xlane.f32.xlu0 %v1187
        %v1189 = vpop.xlane.xlu0 %1188
        %v1190 = vlaneseq
        %v1191 = vshrl.u32 %v1190, 7
        %v1192 = vsub.s32 0, %v1191
        %v1193 = vrot.slane %v1177, %v1192
        %v1194 = vmul.f32 %v1193, %v1044
        %v1195 = vmul.f32 %v1193, %v1045
        %v1196 = vsel %vm1029, %v1194, 0.0
        %1197 = vadd.xlane.f32.xlu0 %v1196
        %v1198 = vpop.xlane.xlu0 %1197
        %v1199 = vsel %vm1029, %v1195, 0.0
        %1200 = vadd.xlane.f32.xlu0 %v1199
        %v1201 = vpop.xlane.xlu0 %1200
        %v1202 = vlaneseq
        %v1203 = vshrl.u32 %v1202, 7
        %v1204 = vsub.s32 0, %v1203
        %v1205 = vrot.slane %v1171, %v1204
        %v1206 = vmul.f32 %v1205, %v1035
        %v1207 = vmul.f32 %v1205, %v1036
        %v1208 = vmul.f32 %v1206, 1.442695
        %v1209 = vpow.pop %v1208
        %v1210 = vmul.f32 %v1207, 1.442695
        %v1211 = vpow.pop %v1210
        %v1212 = vmul.f32 %v1209, %v1156
        %v1213 = vmul.f32 %v1211, %v1157
        %v1214 = vlaneseq
        %v1215 = vshrl.u32 %v1214, 7
        %v1216 = vsub.s32 0, %v1215
        %v1217 = vrot.slane %v1173, %v1216
        %v1218 = vmul.f32 %v1186, %v1217
        %v1219 = vmul.f32 %v1189, %v1217
        %v1220 = vadd.f32 %v1212, %v1218
        %v1221 = vadd.f32 %v1213, %v1219
        %v1222 = vmul.f32 %v1198, %v1220
        %v1223 = vmul.f32 %v1201, %v1221
        %v1224 = vsel %vm772, %v1222, 0.0
        %v1225 = vsel %vm772, %v1223, 0.0
        %v1226 = vadd.f32 %v1224, %v1225
        %v1227 = vrot.slane %v1226, 4
        %v1228 = vadd.f32 %v1226, %v1227
        %v1229 = vrot.slane %v1228, 2
        %v1230 = vadd.f32 %v1228, %v1229
        %v1231 = vrot.slane %v1230, 1
        %v1232 = vadd.f32 %v1230, %v1231
        %s1233 = sadd.s32 0, 3
        %s1234 = scalar_lea.vmem [#allocation3], %s1233
        %v1235 = vld [vmem:[%s1234] sm:$0x1]
        %s1236 = scalar_lea.vmem [#allocation4], %s1233
        %v1237 = vld [vmem:[%s1236] sm:$0x1]
        %s1238 = scalar_lea.vmem [#allocation5], %s1233
        %v1239 = vld [vmem:[%s1238] sm:$0x1]
        %s1240 = scalar_lea.vmem [#allocation6], %s1233
        %v1241 = vld [vmem:[%s1240] sm:$0x1]
        %v1242 = vlaneseq
        %v1243 = vshrl.u32 %v1242, 7
        %v1244 = vsub.s32 0, %v1243
        %v1245 = vrot.slane %v1239, %v1244
        %v1246 = vmul.f32 %v1245, %v1044
        %v1247 = vmul.f32 %v1245, %v1045
        %v1248 = vsel %vm1029, %v1246, 0.0
        %1249 = vadd.xlane.f32.xlu0 %v1248
        %v1250 = vpop.xlane.xlu0 %1249
        %v1251 = vsel %vm1029, %v1247, 0.0
        %1252 = vadd.xlane.f32.xlu0 %v1251
        %v1253 = vpop.xlane.xlu0 %1252
        %v1254 = vlaneseq
        %v1255 = vshrl.u32 %v1254, 7
        %v1256 = vsub.s32 0, %v1255
        %v1257 = vrot.slane %v1241, %v1256
        %v1258 = vmul.f32 %v1257, %v1044
        %v1259 = vmul.f32 %v1257, %v1045
        %v1260 = vsel %vm1029, %v1258, 0.0
        %1261 = vadd.xlane.f32.xlu0 %v1260
        %v1262 = vpop.xlane.xlu0 %1261
        %v1263 = vsel %vm1029, %v1259, 0.0
        %1264 = vadd.xlane.f32.xlu0 %v1263
        %v1265 = vpop.xlane.xlu0 %1264
        %v1266 = vlaneseq
        %v1267 = vshrl.u32 %v1266, 7
        %v1268 = vsub.s32 0, %v1267
        %v1269 = vrot.slane %v1235, %v1268
        %v1270 = vmul.f32 %v1269, %v1035
        %v1271 = vmul.f32 %v1269, %v1036
        %v1272 = vmul.f32 %v1270, 1.442695
        %v1273 = vpow.pop %v1272
        %v1274 = vmul.f32 %v1271, 1.442695
        %v1275 = vpow.pop %v1274
        %v1276 = vmul.f32 %v1273, %v1220
        %v1277 = vmul.f32 %v1275, %v1221
        %v1278 = vlaneseq
        %v1279 = vshrl.u32 %v1278, 7
        %v1280 = vsub.s32 0, %v1279
        %v1281 = vrot.slane %v1237, %v1280
        %v1282 = vmul.f32 %v1250, %v1281
        %v1283 = vmul.f32 %v1253, %v1281
        %v1284 = vadd.f32 %v1276, %v1282
        %v1285 = vadd.f32 %v1277, %v1283
        %v1286 = vmul.f32 %v1262, %v1284
        %v1287 = vmul.f32 %v1265, %v1285
        %v1288 = vsel %vm772, %v1286, 0.0
        %v1289 = vsel %vm772, %v1287, 0.0
        %v1290 = vadd.f32 %v1288, %v1289
        %v1291 = vrot.slane %v1290, 4
        %v1292 = vadd.f32 %v1290, %v1291
        %v1293 = vrot.slane %v1292, 2
        %v1294 = vadd.f32 %v1292, %v1293
        %v1295 = vrot.slane %v1294, 1
        %v1296 = vadd.f32 %v1294, %v1295
        %s1297 = sadd.s32 0, 4
        %s1298 = scalar_lea.vmem [#allocation3], %s1297
        %v1299 = vld [vmem:[%s1298] sm:$0x1]
        %s1300 = scalar_lea.vmem [#allocation4], %s1297
        %v1301 = vld [vmem:[%s1300] sm:$0x1]
        %s1302 = scalar_lea.vmem [#allocation5], %s1297
        %v1303 = vld [vmem:[%s1302] sm:$0x1]
        %s1304 = scalar_lea.vmem [#allocation6], %s1297
        %v1305 = vld [vmem:[%s1304] sm:$0x1]
        %v1306 = vlaneseq
        %v1307 = vshrl.u32 %v1306, 7
        %v1308 = vsub.s32 0, %v1307
        %v1309 = vrot.slane %v1303, %v1308
        %v1310 = vmul.f32 %v1309, %v1044
        %v1311 = vmul.f32 %v1309, %v1045
        %v1312 = vsel %vm1029, %v1310, 0.0
        %1313 = vadd.xlane.f32.xlu0 %v1312
        %v1314 = vpop.xlane.xlu0 %1313
        %v1315 = vsel %vm1029, %v1311, 0.0
        %1316 = vadd.xlane.f32.xlu0 %v1315
        %v1317 = vpop.xlane.xlu0 %1316
        %v1318 = vlaneseq
        %v1319 = vshrl.u32 %v1318, 7
        %v1320 = vsub.s32 0, %v1319
        %v1321 = vrot.slane %v1305, %v1320
        %v1322 = vmul.f32 %v1321, %v1044
        %v1323 = vmul.f32 %v1321, %v1045
        %v1324 = vsel %vm1029, %v1322, 0.0
        %1325 = vadd.xlane.f32.xlu0 %v1324
        %v1326 = vpop.xlane.xlu0 %1325
        %v1327 = vsel %vm1029, %v1323, 0.0
        %1328 = vadd.xlane.f32.xlu0 %v1327
        %v1329 = vpop.xlane.xlu0 %1328
        %v1330 = vlaneseq
        %v1331 = vshrl.u32 %v1330, 7
        %v1332 = vsub.s32 0, %v1331
        %v1333 = vrot.slane %v1299, %v1332
        %v1334 = vmul.f32 %v1333, %v1035
        %v1335 = vmul.f32 %v1333, %v1036
        %v1336 = vmul.f32 %v1334, 1.442695
        %v1337 = vpow.pop %v1336
        %v1338 = vmul.f32 %v1335, 1.442695
        %v1339 = vpow.pop %v1338
        %v1340 = vmul.f32 %v1337, %v1284
        %v1341 = vmul.f32 %v1339, %v1285
        %v1342 = vlaneseq
        %v1343 = vshrl.u32 %v1342, 7
        %v1344 = vsub.s32 0, %v1343
        %v1345 = vrot.slane %v1301, %v1344
        %v1346 = vmul.f32 %v1314, %v1345
        %v1347 = vmul.f32 %v1317, %v1345
        %v1348 = vadd.f32 %v1340, %v1346
        %v1349 = vadd.f32 %v1341, %v1347
        %v1350 = vmul.f32 %v1326, %v1348
        %v1351 = vmul.f32 %v1329, %v1349
        %v1352 = vsel %vm772, %v1350, 0.0
        %v1353 = vsel %vm772, %v1351, 0.0
        %v1354 = vadd.f32 %v1352, %v1353
        %v1355 = vrot.slane %v1354, 4
        %v1356 = vadd.f32 %v1354, %v1355
        %v1357 = vrot.slane %v1356, 2
        %v1358 = vadd.f32 %v1356, %v1357
        %v1359 = vrot.slane %v1358, 1
        %v1360 = vadd.f32 %v1358, %v1359
        %s1361 = sadd.s32 0, 5
        %s1362 = scalar_lea.vmem [#allocation3], %s1361
        %v1363 = vld [vmem:[%s1362] sm:$0x1]
        %s1364 = scalar_lea.vmem [#allocation4], %s1361
        %v1365 = vld [vmem:[%s1364] sm:$0x1]
        %s1366 = scalar_lea.vmem [#allocation5], %s1361
        %v1367 = vld [vmem:[%s1366] sm:$0x1]
        %s1368 = scalar_lea.vmem [#allocation6], %s1361
        %v1369 = vld [vmem:[%s1368] sm:$0x1]
        %v1370 = vlaneseq
        %v1371 = vshrl.u32 %v1370, 7
        %v1372 = vsub.s32 0, %v1371
        %v1373 = vrot.slane %v1367, %v1372
        %v1374 = vmul.f32 %v1373, %v1044
        %v1375 = vmul.f32 %v1373, %v1045
        %v1376 = vsel %vm1029, %v1374, 0.0
        %1377 = vadd.xlane.f32.xlu0 %v1376
        %v1378 = vpop.xlane.xlu0 %1377
        %v1379 = vsel %vm1029, %v1375, 0.0
        %1380 = vadd.xlane.f32.xlu0 %v1379
        %v1381 = vpop.xlane.xlu0 %1380
        %v1382 = vlaneseq
        %v1383 = vshrl.u32 %v1382, 7
        %v1384 = vsub.s32 0, %v1383
        %v1385 = vrot.slane %v1369, %v1384
        %v1386 = vmul.f32 %v1385, %v1044
        %v1387 = vmul.f32 %v1385, %v1045
        %v1388 = vsel %vm1029, %v1386, 0.0
        %1389 = vadd.xlane.f32.xlu0 %v1388
        %v1390 = vpop.xlane.xlu0 %1389
        %v1391 = vsel %vm1029, %v1387, 0.0
        %1392 = vadd.xlane.f32.xlu0 %v1391
        %v1393 = vpop.xlane.xlu0 %1392
        %v1394 = vlaneseq
        %v1395 = vshrl.u32 %v1394, 7
        %v1396 = vsub.s32 0, %v1395
        %v1397 = vrot.slane %v1363, %v1396
        %v1398 = vmul.f32 %v1397, %v1035
        %v1399 = vmul.f32 %v1397, %v1036
        %v1400 = vmul.f32 %v1398, 1.442695
        %v1401 = vpow.pop %v1400
        %v1402 = vmul.f32 %v1399, 1.442695
        %v1403 = vpow.pop %v1402
        %v1404 = vmul.f32 %v1401, %v1348
        %v1405 = vmul.f32 %v1403, %v1349
        %v1406 = vlaneseq
        %v1407 = vshrl.u32 %v1406, 7
        %v1408 = vsub.s32 0, %v1407
        %v1409 = vrot.slane %v1365, %v1408
        %v1410 = vmul.f32 %v1378, %v1409
        %v1411 = vmul.f32 %v1381, %v1409
        %v1412 = vadd.f32 %v1404, %v1410
        %v1413 = vadd.f32 %v1405, %v1411
        %v1414 = vmul.f32 %v1390, %v1412
        %v1415 = vmul.f32 %v1393, %v1413
        %v1416 = vsel %vm772, %v1414, 0.0
        %v1417 = vsel %vm772, %v1415, 0.0
        %v1418 = vadd.f32 %v1416, %v1417
        %v1419 = vrot.slane %v1418, 4
        %v1420 = vadd.f32 %v1418, %v1419
        %v1421 = vrot.slane %v1420, 2
        %v1422 = vadd.f32 %v1420, %v1421
        %v1423 = vrot.slane %v1422, 1
        %v1424 = vadd.f32 %v1422, %v1423
        %s1425 = sadd.s32 0, 6
        %s1426 = scalar_lea.vmem [#allocation3], %s1425
        %v1427 = vld [vmem:[%s1426] sm:$0x1]
        %s1428 = scalar_lea.vmem [#allocation4], %s1425
        %v1429 = vld [vmem:[%s1428] sm:$0x1]
        %s1430 = scalar_lea.vmem [#allocation5], %s1425
        %v1431 = vld [vmem:[%s1430] sm:$0x1]
        %s1432 = scalar_lea.vmem [#allocation6], %s1425
        %v1433 = vld [vmem:[%s1432] sm:$0x1]
        %v1434 = vlaneseq
        %v1435 = vshrl.u32 %v1434, 7
        %v1436 = vsub.s32 0, %v1435
        %v1437 = vrot.slane %v1431, %v1436
        %v1438 = vmul.f32 %v1437, %v1044
        %v1439 = vmul.f32 %v1437, %v1045
        %v1440 = vsel %vm1029, %v1438, 0.0
        %1441 = vadd.xlane.f32.xlu0 %v1440
        %v1442 = vpop.xlane.xlu0 %1441
        %v1443 = vsel %vm1029, %v1439, 0.0
        %1444 = vadd.xlane.f32.xlu0 %v1443
        %v1445 = vpop.xlane.xlu0 %1444
        %v1446 = vlaneseq
        %v1447 = vshrl.u32 %v1446, 7
        %v1448 = vsub.s32 0, %v1447
        %v1449 = vrot.slane %v1433, %v1448
        %v1450 = vmul.f32 %v1449, %v1044
        %v1451 = vmul.f32 %v1449, %v1045
        %v1452 = vsel %vm1029, %v1450, 0.0
        %1453 = vadd.xlane.f32.xlu0 %v1452
        %v1454 = vpop.xlane.xlu0 %1453
        %v1455 = vsel %vm1029, %v1451, 0.0
        %1456 = vadd.xlane.f32.xlu0 %v1455
        %v1457 = vpop.xlane.xlu0 %1456
        %v1458 = vlaneseq
        %v1459 = vshrl.u32 %v1458, 7
        %v1460 = vsub.s32 0, %v1459
        %v1461 = vrot.slane %v1427, %v1460
        %v1462 = vmul.f32 %v1461, %v1035
        %v1463 = vmul.f32 %v1461, %v1036
        %v1464 = vmul.f32 %v1462, 1.442695
        %v1465 = vpow.pop %v1464
        %v1466 = vmul.f32 %v1463, 1.442695
        %v1467 = vpow.pop %v1466
        %v1468 = vmul.f32 %v1465, %v1412
        %v1469 = vmul.f32 %v1467, %v1413
        %v1470 = vlaneseq
        %v1471 = vshrl.u32 %v1470, 7
        %v1472 = vsub.s32 0, %v1471
        %v1473 = vrot.slane %v1429, %v1472
        %v1474 = vmul.f32 %v1442, %v1473
        %v1475 = vmul.f32 %v1445, %v1473
        %v1476 = vadd.f32 %v1468, %v1474
        %v1477 = vadd.f32 %v1469, %v1475
        %v1478 = vmul.f32 %v1454, %v1476
        %v1479 = vmul.f32 %v1457, %v1477
        %v1480 = vsel %vm772, %v1478, 0.0
        %v1481 = vsel %vm772, %v1479, 0.0
        %v1482 = vadd.f32 %v1480, %v1481
        %v1483 = vrot.slane %v1482, 4
        %v1484 = vadd.f32 %v1482, %v1483
        %v1485 = vrot.slane %v1484, 2
        %v1486 = vadd.f32 %v1484, %v1485
        %v1487 = vrot.slane %v1486, 1
        %v1488 = vadd.f32 %v1486, %v1487
        %s1489 = sadd.s32 0, 7
        %s1490 = scalar_lea.vmem [#allocation3], %s1489
        %v1491 = vld [vmem:[%s1490] sm:$0x1]
        %s1492 = scalar_lea.vmem [#allocation4], %s1489
        %v1493 = vld [vmem:[%s1492] sm:$0x1]
        %s1494 = scalar_lea.vmem [#allocation5], %s1489
        %v1495 = vld [vmem:[%s1494] sm:$0x1]
        %s1496 = scalar_lea.vmem [#allocation6], %s1489
        %v1497 = vld [vmem:[%s1496] sm:$0x1]
        %v1498 = vlaneseq
        %v1499 = vshrl.u32 %v1498, 7
        %v1500 = vsub.s32 0, %v1499
        %v1501 = vrot.slane %v1495, %v1500
        %v1502 = vmul.f32 %v1501, %v1044
        %v1503 = vmul.f32 %v1501, %v1045
        %v1504 = vsel %vm1029, %v1502, 0.0
        %1505 = vadd.xlane.f32.xlu0 %v1504
        %v1506 = vpop.xlane.xlu0 %1505
        %v1507 = vsel %vm1029, %v1503, 0.0
        %1508 = vadd.xlane.f32.xlu0 %v1507
        %v1509 = vpop.xlane.xlu0 %1508
        %v1510 = vlaneseq
        %v1511 = vshrl.u32 %v1510, 7
        %v1512 = vsub.s32 0, %v1511
        %v1513 = vrot.slane %v1497, %v1512
        %v1514 = vmul.f32 %v1513, %v1044
        %v1515 = vmul.f32 %v1513, %v1045
        %v1516 = vsel %vm1029, %v1514, 0.0
        %1517 = vadd.xlane.f32.xlu0 %v1516
        %v1518 = vpop.xlane.xlu0 %1517
        %v1519 = vsel %vm1029, %v1515, 0.0
        %1520 = vadd.xlane.f32.xlu0 %v1519
        %v1521 = vpop.xlane.xlu0 %1520
        %v1522 = vlaneseq
        %v1523 = vshrl.u32 %v1522, 7
        %v1524 = vsub.s32 0, %v1523
        %v1525 = vrot.slane %v1491, %v1524
        %v1526 = vmul.f32 %v1525, %v1035
        %v1527 = vmul.f32 %v1525, %v1036
        %v1528 = vmul.f32 %v1526, 1.442695
        %v1529 = vpow.pop %v1528
        %v1530 = vmul.f32 %v1527, 1.442695
        %v1531 = vpow.pop %v1530
        %v1532 = vmul.f32 %v1529, %v1476
        %v1533 = vmul.f32 %v1531, %v1477
        %v1534 = vlaneseq
        %v1535 = vshrl.u32 %v1534, 7
        %v1536 = vsub.s32 0, %v1535
        %v1537 = vrot.slane %v1493, %v1536
        %v1538 = vmul.f32 %v1506, %v1537
        %v1539 = vmul.f32 %v1509, %v1537
        %v1540 = vadd.f32 %v1532, %v1538
        %v1541 = vadd.f32 %v1533, %v1539
        %v1542 = vmul.f32 %v1518, %v1540
        %v1543 = vmul.f32 %v1521, %v1541
        %v1544 = vsel %vm772, %v1542, 0.0
        %v1545 = vsel %vm772, %v1543, 0.0
        %v1546 = vadd.f32 %v1544, %v1545
        %v1547 = vrot.slane %v1546, 4
        %v1548 = vadd.f32 %v1546, %v1547
        %v1549 = vrot.slane %v1548, 2
        %v1550 = vadd.f32 %v1548, %v1549
        %v1551 = vrot.slane %v1550, 1
        %v1552 = vadd.f32 %v1550, %v1551
        %vm1553 = vcmask 1040384
        %v1554 = vsel %vm1553, %v1104, %v1168
        %vm1555 = vcmask 1041408
        %v1556 = vsel %vm1555, %v1554, %v1232
        %vm1557 = vcmask 1042432
        %v1558 = vsel %vm1557, %v1556, %v1296
        %vm1559 = vcmask 1043456
        %v1560 = vsel %vm1559, %v1558, %v1360
        %vm1561 = vcmask 1044480
        %v1562 = vsel %vm1561, %v1560, %v1424
        %vm1563 = vcmask 1045504
        %v1564 = vsel %vm1563, %v1562, %v1488
        %vm1565 = vcmask 1046528
        %v1566 = vsel %vm1565, %v1564, %v1552
        %1567 = vst.msk [vmem:[#allocation7] sm:$0xff] %vm772, %v1566
        %v1568 = vld [vmem:[#allocation7] sm:$0xff]
        %v1569 = vld [vmem:[#allocation14] sm:$0x1]
        %v1571 = vlaneseq
        %v1572 = vshrl.u32 %v1571, 7
        %v1573 = vsub.s32 0, %v1572
        %v1574 = vrot.slane %v1569, %v1573
        %v1576 = vmul.f32 %v1574, %v845
        %v1577 = vadd.f32 %v1568, %v1576
        %v1578 = vxor.u32 %v765, 2147483648
        %v1579 = vmul.f32 %v1578, 1.442695
        %v1580 = vpow.pop %v1579
        %v1581 = vadd.f32 %v1580, 1.0
        %v1582 = vrcp.pop %v1581
        %v1583 = vmul.f32 1.0, %v1582
        %v1584 = vmul.f32 %v765, %v1583
        %v1585 = vmul.f32 %v1577, %v1584
        %v1586 = vpack.c.bf16 %v1585, %v1585
        %v1587 = vld [vmem:[%s10] sm:$0xf]
        %v1588 = vld [vmem:[%s10 + $0x4] sm:$0xf]
        %v1589 = vld [vmem:[%s10 + $0x8] sm:$0xf]
        %v1590 = vld [vmem:[%s10 + $0xc] sm:$0xf]
        %v1591 = vld [vmem:[%s10 + $0x10] sm:$0xf]
        %v1592 = vld [vmem:[%s10 + $0x14] sm:$0xf]
        %v1593 = vld [vmem:[%s10 + $0x18] sm:$0xf]
        %v1594 = vld [vmem:[%s10 + $0x1c] sm:$0xf]
        %v1603 = vunpack.c.l.b16 %v1587
        %v1604 = vunpack.c.l.b16 %v1588
        %v1605 = vunpack.c.l.b16 %v1589
        %v1606 = vunpack.c.l.b16 %v1590
        %v1607 = vunpack.c.l.b16 %v1591
        %v1608 = vunpack.c.l.b16 %v1592
        %v1609 = vunpack.c.l.b16 %v1593
        %v1610 = vunpack.c.l.b16 %v1594
        %v1611 = vpack.c.b16 %v1604, %v1603
        %v1612 = vpack.c.b16 %v1606, %v1605
        %v1613 = vpack.c.b16 %v1608, %v1607
        %v1614 = vpack.c.b16 %v1610, %v1609
        %v1620 = vsel %vm772, %v1586, 0
        %1622 = vmatprep.subr.bf16.mxu0 0
        %1623 = vmatpush1.bf16.msra.mxu0 %v1611
        %1624 = vmatprep.subr.bf16.mxu0 0
        %1625 = vmatpush1.bf16.msra.mxu0 %v1612
        %1626 = vmatprep.subr.bf16.mxu0 0
        %1627 = vmatpush1.bf16.msra.mxu0 %v1613
        %1628 = vmatprep.subr.bf16.mxu0 0
        %1629 = vmatpush1.bf16.msra.mxu0 %v1614
        %1630 = vmatprep.subr.bf16.mxu0 0
        %1631 = vmatpush1.bf16.msra.mxu0 0
        %1632 = vmatprep.subr.bf16.mxu0 0
        %1633 = vmatpush1.bf16.msra.mxu0 0
        %1634 = vmatprep.subr.bf16.mxu0 0
        %1635 = vmatpush1.bf16.msra.mxu0 0
        %1636 = vmatprep.subr.bf16.mxu0 0
        %1637 = vmatpush1.bf16.msra.mxu0 0
        %1638 = vmatprep.subr.bf16.mxu0 0
        %1639 = vmatpush1.bf16.msra.mxu0 0
        %1640 = vmatprep.subr.bf16.mxu0 0
        %1641 = vmatpush1.bf16.msra.mxu0 0
        %1642 = vmatprep.subr.bf16.mxu0 0
        %1643 = vmatpush1.bf16.msra.mxu0 0
        %1644 = vmatprep.subr.bf16.mxu0 0
        %1645 = vmatpush1.bf16.msra.mxu0 0
        %1646 = vmatprep.subr.bf16.mxu0 0
        %1647 = vmatpush1.bf16.msra.mxu0 0
        %1648 = vmatprep.subr.bf16.mxu0 0
        %1649 = vmatpush1.bf16.msra.mxu0 0
        %1650 = vmatprep.subr.bf16.mxu0 0
        %1651 = vmatpush1.bf16.msra.mxu0 0
        %1652 = vmatprep.subr.bf16.mxu0 0
        %1653 = vmatpush1.bf16.msra.mxu0 0
        %1654 = vmatprep.mubr.bf16.mxu0 0
        %1655 = vmatmul.mubr.bf16.gmra.mrb[0].mxu0 %v1620
        %v1656 = vpop.f32.mrb[0].mxu0
        %v1657 = vadd.f32 %v652, %v1656
        %v1658 = vpop.f32.mrb[0].mxu0
        %v1659 = vpop.f32.mrb[0].mxu0
        %v1660 = vpop.f32.mrb[0].mxu0
        %1661 = vdwg.mxu0
        %v1662 = vld [vmem:[%s11] sm:$0x1]
        %v1663 = vld [vmem:[%s12] sm:$0x1]
        %v1664 = vsel %vm670, %v1657, 0.0
        %1665 = vadd.xlane.f32.xlu0 %v1664
        %v1666 = vpop.xlane.xlu0 %1665
        %v1667 = vrcp.pop 32.0
        %v1668 = vmul.f32 %v1666, %v1667
        %v1669 = vsub.f32 %v1657, %v1668
        %v1670 = vmul.f32 %v1669, %v1669
        %v1671 = vsel %vm670, %v1670, 0.0
        %1672 = vadd.xlane.f32.xlu0 %v1671
        %v1673 = vpop.xlane.xlu0 %1672
        %v1674 = vmul.f32 %v1673, %v1667
        %v1675 = vadd.f32 %v1674, 1e-12
        %v1676 = vrsqrt.pop %v1675
        %v1677 = vmul.f32 %v1669, %v1676
        %v1679 = vlaneseq
        %v1680 = vshrl.u32 %v1679, 7
        %v1681 = vsub.s32 0, %v1680
        %v1682 = vrot.slane %v1662, %v1681
        %v1684 = vmul.f32 %v1677, %v1682
        %v1686 = vlaneseq
        %v1687 = vshrl.u32 %v1686, 7
        %v1688 = vsub.s32 0, %v1687
        %v1689 = vrot.slane %v1663, %v1688
        %v1691 = vadd.f32 %v1684, %v1689
        %v1692 = vpack.c.bf16 %v1691, %v1691
        %v1693 = vld [vmem:[%s13] sm:$0xf]
        %v1694 = vld [vmem:[%s13 + $0x4] sm:$0xf]
        %v1695 = vld [vmem:[%s13 + $0x8] sm:$0xf]
        %v1696 = vld [vmem:[%s13 + $0xc] sm:$0xf]
        %v1697 = vld [vmem:[%s14] sm:$0x1]
        %v1699 = vlaneseq
        %v1700 = vshrl.u32 %v1699, 7
        %v1701 = vsub.s32 0, %v1700
        %v1702 = vrot.slane %v1697, %v1701
        %v1708 = vunpack.c.l.b16 %v1693
        %v1709 = vunpack.c.l.b16 %v1694
        %v1710 = vunpack.c.l.b16 %v1695
        %v1711 = vunpack.c.l.b16 %v1696
        %v1712 = vpack.c.b16 %v1709, %v1708
        %v1713 = vpack.c.b16 %v1711, %v1710
        %v1717 = vsel %vm670, %v1692, 0
        %1719 = vmatprep.subr.bf16.mxu0 0
        %1720 = vmatpush1.bf16.msra.mxu0 %v1712
        %1721 = vmatprep.subr.bf16.mxu0 0
        %1722 = vmatpush1.bf16.msra.mxu0 %v1713
        %1723 = vmatprep.subr.bf16.mxu0 0
        %1724 = vmatpush1.bf16.msra.mxu0 0
        %1725 = vmatprep.subr.bf16.mxu0 0
        %1726 = vmatpush1.bf16.msra.mxu0 0
        %1727 = vmatprep.subr.bf16.mxu0 0
        %1728 = vmatpush1.bf16.msra.mxu0 0
        %1729 = vmatprep.subr.bf16.mxu0 0
        %1730 = vmatpush1.bf16.msra.mxu0 0
        %1731 = vmatprep.subr.bf16.mxu0 0
        %1732 = vmatpush1.bf16.msra.mxu0 0
        %1733 = vmatprep.subr.bf16.mxu0 0
        %1734 = vmatpush1.bf16.msra.mxu0 0
        %1735 = vmatprep.subr.bf16.mxu0 0
        %1736 = vmatpush1.bf16.msra.mxu0 0
        %1737 = vmatprep.subr.bf16.mxu0 0
        %1738 = vmatpush1.bf16.msra.mxu0 0
        %1739 = vmatprep.subr.bf16.mxu0 0
        %1740 = vmatpush1.bf16.msra.mxu0 0
        %1741 = vmatprep.subr.bf16.mxu0 0
        %1742 = vmatpush1.bf16.msra.mxu0 0
        %1743 = vmatprep.subr.bf16.mxu0 0
        %1744 = vmatpush1.bf16.msra.mxu0 0
        %1745 = vmatprep.subr.bf16.mxu0 0
        %1746 = vmatpush1.bf16.msra.mxu0 0
        %1747 = vmatprep.subr.bf16.mxu0 0
        %1748 = vmatpush1.bf16.msra.mxu0 0
        %1749 = vmatprep.subr.bf16.mxu0 0
        %1750 = vmatpush1.bf16.msra.mxu0 0
        %1751 = vmatprep.mubr.bf16.mxu0 0
        %1752 = vmatmul.mubr.bf16.gmra.mrb[0].mxu0 %v1717
        %v1753 = vpop.f32.mrb[0].mxu0
        %v1754 = vadd.f32 %v1702, %v1753
        %v1755 = vpop.f32.mrb[0].mxu0
        %v1756 = vpop.f32.mrb[0].mxu0
        %v1757 = vpop.f32.mrb[0].mxu0
        %1758 = vdwg.mxu0
        %v1759 = vmul.f32 %v1754, 0.5
        %v1760 = vmul.f32 %v1754, 0.70710677
        %v1761 = verf.f32.pop %v1760
        %v1762 = vadd.f32 %v1761, 1.0
        %v1763 = vmul.f32 %v1759, %v1762
        %v1764 = vpack.c.bf16 %v1763, %v1763
        %v1765 = vld [vmem:[%s15] sm:$0xf]
        %v1766 = vld [vmem:[%s15 + $0x4] sm:$0xf]
        %v1767 = vld [vmem:[%s15 + $0x8] sm:$0xf]
        %v1768 = vld [vmem:[%s15 + $0xc] sm:$0xf]
        %v1769 = vld [vmem:[%s15 + $0x10] sm:$0xf]
        %v1770 = vld [vmem:[%s15 + $0x14] sm:$0xf]
        %v1771 = vld [vmem:[%s15 + $0x18] sm:$0xf]
        %v1772 = vld [vmem:[%s15 + $0x1c] sm:$0xf]
        %v1773 = vld [vmem:[%s15 + $0x20] sm:$0xf]
        %v1774 = vld [vmem:[%s15 + $0x24] sm:$0xf]
        %v1775 = vld [vmem:[%s15 + $0x28] sm:$0xf]
        %v1776 = vld [vmem:[%s15 + $0x2c] sm:$0xf]
        %v1777 = vld [vmem:[%s15 + $0x30] sm:$0xf]
        %v1778 = vld [vmem:[%s15 + $0x34] sm:$0xf]
        %v1779 = vld [vmem:[%s15 + $0x38] sm:$0xf]
        %v1780 = vld [vmem:[%s15 + $0x3c] sm:$0xf]
        %v1781 = vld [vmem:[%s16] sm:$0x1]
        %v1783 = vlaneseq
        %v1784 = vshrl.u32 %v1783, 7
        %v1785 = vsub.s32 0, %v1784
        %v1786 = vrot.slane %v1781, %v1785
        %v1804 = vunpack.c.l.b16 %v1765
        %v1805 = vunpack.c.l.b16 %v1766
        %v1806 = vunpack.c.l.b16 %v1767
        %v1807 = vunpack.c.l.b16 %v1768
        %v1808 = vunpack.c.l.b16 %v1769
        %v1809 = vunpack.c.l.b16 %v1770
        %v1810 = vunpack.c.l.b16 %v1771
        %v1811 = vunpack.c.l.b16 %v1772
        %v1812 = vunpack.c.l.b16 %v1773
        %v1813 = vunpack.c.l.b16 %v1774
        %v1814 = vunpack.c.l.b16 %v1775
        %v1815 = vunpack.c.l.b16 %v1776
        %v1816 = vunpack.c.l.b16 %v1777
        %v1817 = vunpack.c.l.b16 %v1778
        %v1818 = vunpack.c.l.b16 %v1779
        %v1819 = vunpack.c.l.b16 %v1780
        %v1820 = vpack.c.b16 %v1805, %v1804
        %v1821 = vpack.c.b16 %v1807, %v1806
        %v1822 = vpack.c.b16 %v1809, %v1808
        %v1823 = vpack.c.b16 %v1811, %v1810
        %v1824 = vpack.c.b16 %v1813, %v1812
        %v1825 = vpack.c.b16 %v1815, %v1814
        %v1826 = vpack.c.b16 %v1817, %v1816
        %v1827 = vpack.c.b16 %v1819, %v1818
        %1836 = vmatprep.subr.bf16.mxu0 0
        %1837 = vmatpush1.bf16.msra.mxu0 %v1820
        %1838 = vmatprep.subr.bf16.mxu0 0
        %1839 = vmatpush1.bf16.msra.mxu0 %v1821
        %1840 = vmatprep.subr.bf16.mxu0 0
        %1841 = vmatpush1.bf16.msra.mxu0 %v1822
        %1842 = vmatprep.subr.bf16.mxu0 0
        %1843 = vmatpush1.bf16.msra.mxu0 %v1823
        %1844 = vmatprep.subr.bf16.mxu0 0
        %1845 = vmatpush1.bf16.msra.mxu0 %v1824
        %1846 = vmatprep.subr.bf16.mxu0 0
        %1847 = vmatpush1.bf16.msra.mxu0 %v1825
        %1848 = vmatprep.subr.bf16.mxu0 0
        %1849 = vmatpush1.bf16.msra.mxu0 %v1826
        %1850 = vmatprep.subr.bf16.mxu0 0
        %1851 = vmatpush1.bf16.msra.mxu0 %v1827
        %1852 = vmatprep.subr.bf16.mxu0 0
        %1853 = vmatpush1.bf16.msra.mxu0 0
        %1854 = vmatprep.subr.bf16.mxu0 0
        %1855 = vmatpush1.bf16.msra.mxu0 0
        %1856 = vmatprep.subr.bf16.mxu0 0
        %1857 = vmatpush1.bf16.msra.mxu0 0
        %1858 = vmatprep.subr.bf16.mxu0 0
        %1859 = vmatpush1.bf16.msra.mxu0 0
        %1860 = vmatprep.subr.bf16.mxu0 0
        %1861 = vmatpush1.bf16.msra.mxu0 0
        %1862 = vmatprep.subr.bf16.mxu0 0
        %1863 = vmatpush1.bf16.msra.mxu0 0
        %1864 = vmatprep.subr.bf16.mxu0 0
        %1865 = vmatpush1.bf16.msra.mxu0 0
        %1866 = vmatprep.subr.bf16.mxu0 0
        %1867 = vmatpush1.bf16.msra.mxu0 0
        %1868 = vmatprep.mubr.bf16.mxu0 0
        %1869 = vmatmul.mubr.bf16.gmra.mrb[0].mxu0 %v1764
        %v1870 = vpop.f32.mrb[0].mxu0
        %v1871 = vadd.f32 %v1786, %v1870
        %v1872 = vpop.f32.mrb[0].mxu0
        %v1873 = vpop.f32.mrb[0].mxu0
        %v1874 = vpop.f32.mrb[0].mxu0
        %1875 = vdwg.mxu0
        %v1876 = vadd.f32 %v1871, %v1691
        %v1877 = vld [vmem:[%s17] sm:$0x1]
        %v1878 = vld [vmem:[%s18] sm:$0x1]
        %v1879 = vsel %vm670, %v1876, 0.0
        %1880 = vadd.xlane.f32.xlu0 %v1879
        %v1881 = vpop.xlane.xlu0 %1880
        %v1882 = vmul.f32 %v1881, %v1667
        %v1883 = vsub.f32 %v1876, %v1882
        %v1884 = vmul.f32 %v1883, %v1883
        %v1885 = vsel %vm670, %v1884, 0.0
        %1886 = vadd.xlane.f32.xlu0 %v1885
        %v1887 = vpop.xlane.xlu0 %1886
        %v1888 = vmul.f32 %v1887, %v1667
        %v1889 = vadd.f32 %v1888, 1e-12
        %v1890 = vrsqrt.pop %v1889
        %v1891 = vmul.f32 %v1883, %v1890
        %v1893 = vlaneseq
        %v1894 = vshrl.u32 %v1893, 7
        %v1895 = vsub.s32 0, %v1894
        %v1896 = vrot.slane %v1877, %v1895
        %v1898 = vmul.f32 %v1891, %v1896
        %v1900 = vlaneseq
        %v1901 = vshrl.u32 %v1900, 7
        %v1902 = vsub.s32 0, %v1901
        %v1903 = vrot.slane %v1878, %v1902
        %v1905 = vadd.f32 %v1898, %v1903
        %1906 = vst.msk [vmem:[%s646] sm:$0xff] %vm670, %v1905
        %s1907 = sand.u32 %s448, 1
        %s1908 = scalar_lea.sflag [#allocation10], %s1907
        %s1909 = sand.u32 %s448, 1
        %s1910 = smul.addr %s1909, 8
        %s1911 = scalar_lea.vmem [#allocation16], %s1910
        // Predicated region
        $region113: #{tpu_custom_call.1} parent=95 // pred_check
          %p1912 = pneg %p458
        $region114: #{tpu_custom_call.1} parent=95 // pred_check_branch
          %1914 = sbr.rel (%p1912) target = $region116
        $region115: #{tpu_custom_call.1} parent=95 // pred_region
          %s1916 = ssub.s32 128, 128
          %1917 = vsyncadd %s1908, %s1916
          %s1918 = smul.addr %s36, 128
          %s1919 = scalar_lea.hbm %s19, %s1918
          %s1921 = sshll.u32 %s1911, 4
          %s1922 = int_to_ptr.vmem [resolvable:$true] %s1921
          %1924 = dma.vmem_to_hbm [thread:$0]  %s1922, 128, %s1919, %s1908
        $region116: #{tpu_custom_call.1} parent=95 // pred_fallthru
          _
      $region96: #{tpu_custom_call.1} parent=5 // pred_fallthru
        _
      %p1925 = scmp.le.s32.totalorder 2, %s31
      // Predicated region
      $region117: #{tpu_custom_call.1} parent=5 // pred_check
        %p1926 = pneg %p1925
      $region118: #{tpu_custom_call.1} parent=5 // pred_check_branch
        %1928 = sbr.rel (%p1926) target = $region120
      $region119: #{tpu_custom_call.1} parent=5 // pred_region
        %s1929 = ssub.s32 %s31, 2
        // Predicated region
        $region121: #{tpu_custom_call.1} parent=119 // pred_check
          %p1930 = pneg %p464
        $region122: #{tpu_custom_call.1} parent=119 // pred_check_branch
          %1932 = sbr.rel (%p1930) target = $region124
        $region123: #{tpu_custom_call.1} parent=119 // pred_region
          %s1933 = sand.u32 %s449, 1
          %s1934 = scalar_lea.sflag [#allocation10], %s1933
          %s1935 = sand.u32 %s449, 1
          %s1936 = smul.addr %s1935, 8
          %s1937 = scalar_lea.vmem [#allocation16], %s1936
          %1938 = dma.done %s1934, 128
        $region124: #{tpu_custom_call.1} parent=119 // pred_fallthru
          _
      $region120: #{tpu_custom_call.1} parent=5 // pred_fallthru
        _
    $region6: #{tpu_custom_call.1} parent=1 // loop_footer
      %s35 = sadd.s32 1, %s31
    $region7: #{tpu_custom_call.1} parent=1 // loop_footer_branch
      %30 = sbr.rel target = $region3
    $region8: #{tpu_custom_call.1} parent=1 // loop_exit
      _
    %1939 = vsyncpa [#allocation9], 1
    %s1940 = scalar_lea.sflag [#allocation9], 1
    %1941 = vsyncpa %s1940, 1
    %1942 = vsyncpa [#allocation12], 1
    %1943 = vsyncpa [#allocation15], 1
    %1944 = vsyncpa [#allocation10], 1
    %s1945 = scalar_lea.sflag [#allocation10], 1
    %1946 = vsyncpa %s1945, 1

// kernel: tpu_custom_call.1
$region0: #{tpu_custom_call.1}
  #allocation0 [shape = 'u32[]', space=smem, size = 0x4, offset = 0x4, fixed_abs, tag = 'smem constant byte address 0x4 - core index']
  #allocation1 [shape = 'u32[144,128]{1,0:T(1,128)}', space=vmem, size = 0x12000, scoped, tag = 'internal scratch']
  #allocation2 [shape = 'f32[11,64]{1,0:T(8,128)}', space=vmem, size = 0x2000, scoped, tag = 'scratch operand']
  #allocation3 [shape = 'f32[1,8,64]{2,1,0:T(8,128)}', space=vmem, size = 0x1000, scoped, tag = 'scratch operand']
  #allocation4 [shape = 'f32[1,8,64]{2,1,0:T(8,128)}', space=vmem, size = 0x1000, scoped, tag = 'scratch operand']
  #allocation5 [shape = 'f32[1,8,16]{2,1,0:T(8,128)}', space=vmem, size = 0x1000, scoped, tag = 'scratch operand']
  #allocation6 [shape = 'f32[1,8,16]{2,1,0:T(8,128)}', space=vmem, size = 0x1000, scoped, tag = 'scratch operand']
  #allocation7 [shape = 'f32[1,8,64]{2,1,0:T(8,128)}', space=vmem, size = 0x1000, scoped, tag = 'scratch operand']
  %s0 = inlined_call_operand.vmem [shape: f32[16,32], index: 0, kind: input, shape index: {}]
  %s1 = inlined_call_operand.vmem [shape: bf16[32,64], index: 1, kind: input, shape index: {}]
  %s2 = inlined_call_operand.vmem [shape: bf16[32,64], index: 2, kind: input, shape index: {}]
  %s3 = inlined_call_operand.hbm [shape: f32[4,64], index: 3, kind: input, shape index: {}]
  %s4 = inlined_call_operand.vmem [shape: f32[1,64], index: 4, kind: input, shape index: {}]
  %s5 = inlined_call_operand.vmem [shape: f32[64,128], index: 5, kind: input, shape index: {}]
  %s6 = inlined_call_operand.hbm [shape: f32[8,64], index: 6, kind: input, shape index: {}]
  %s7 = inlined_call_operand.vmem [shape: f32[1,64], index: 7, kind: input, shape index: {}]
  %s8 = inlined_call_operand.hbm [shape: f32[16,64], index: 8, kind: input, shape index: {}]
  %s9 = inlined_call_operand.hbm [shape: f32[1,64], index: 9, kind: input, shape index: {}]
  %s10 = inlined_call_operand.vmem [shape: bf16[64,32], index: 10, kind: input, shape index: {}]
  %s11 = inlined_call_operand.vmem [shape: f32[1,32], index: 11, kind: input, shape index: {}]
  %s12 = inlined_call_operand.vmem [shape: f32[1,32], index: 12, kind: input, shape index: {}]
  %s13 = inlined_call_operand.vmem [shape: bf16[32,128], index: 13, kind: input, shape index: {}]
  %s14 = inlined_call_operand.vmem [shape: f32[1,128], index: 14, kind: input, shape index: {}]
  %s15 = inlined_call_operand.vmem [shape: bf16[128,32], index: 15, kind: input, shape index: {}]
  %s16 = inlined_call_operand.vmem [shape: f32[1,32], index: 16, kind: input, shape index: {}]
  %s17 = inlined_call_operand.vmem [shape: f32[1,32], index: 17, kind: input, shape index: {}]
  %s18 = inlined_call_operand.vmem [shape: f32[1,32], index: 18, kind: input, shape index: {}]
  %s19 = inlined_call_operand.hbm [shape: f32[16,32], index: 19, kind: output, shape index: {}]
  %s20 = sld [smem:[#allocation0]]
  $region125: #{tpu_custom_call.1} parent=0
    _
  %s22 = ssub.s32 1, %s20
  %s23 = scalar_select 0, %s22, %s20
  $region1: #{tpu_custom_call.1} parent=0
    #allocation8 [shape = 'u8[2048]{0}', space=vmem, size = 0x800, scoped, tag = 'input window, operand 3, single buffered']
    #allocation9 [shape = 's32[2]{0}', space=sflag, size = 0x8, scoped, tag = 'scoped memory for tpu_custom_call.1']
    #allocation10 [shape = 's32[2]{0}', space=sflag, size = 0x8, scoped, tag = 'scoped memory for tpu_custom_call.1']
    #allocation11 [shape = 'u8[4096]{0}', space=vmem, size = 0x1000, scoped, tag = 'input window, operand 6, single buffered']
    #allocation12 [shape = 's32[1]{0}', space=sflag, size = 0x4, scoped, tag = 'scoped memory for tpu_custom_call.1']
    #allocation13 [shape = 'u8[8192]{0}', space=vmem, size = 0x2000, scoped, tag = 'input window, operand 8, single buffered']
    #allocation14 [shape = 'u8[512]{0}', space=vmem, size = 0x400, scoped, tag = 'input window, operand 9, single buffered']
    #allocation15 [shape = 's32[1]{0}', space=sflag, size = 0x4, scoped, tag = 'scoped memory for tpu_custom_call.1']
    #allocation16 [shape = 'u8[8192]{0}', space=vmem, size = 0x2000, scoped, tag = 'output window, operand 0']
    %24 = vsyncpa [#allocation9], 0
    %25 = vsyncpa [#allocation12], 0
    %26 = vsyncpa [#allocation15], 0
    %27 = vsyncpa [#allocation10], 0
    %s28 = scalar_lea.sflag [#allocation10], 1
    %29 = vsyncpa %s28, 0
    loop: start=0, step=1, limit=4
    $region2: #{tpu_custom_call.1} parent=1 // loop_pre_header
      _
    $region3: #{tpu_custom_call.1} parent=1 // loop_header
      %s31 = sphi 0, %s35
      %p32 = scmp.ge.s32.totalorder %s31, 4
      %s41 = sphi 0, %s43
      %s44 = sphi 0, %s41
      %s45 = sphi 0, %s44
      %s61 = sphi 0, %s45
      %s65 = sphi 0, %s65
      %s67 = sphi 0, %s65
      %s68 = sphi 0, %s67
      %s82 = sphi 0, %s68
      %s86 = sphi 0, %s86
      %s88 = sphi 0, %s86
      %s89 = sphi 0, %s88
      %s103 = sphi 0, %s89
      %s107 = sphi 0, %s107
      %s109 = sphi 0, %s107
      %s110 = sphi 0, %s109
      %s124 = sphi 0, %s110
      %s128 = sphi 0, %s128
      %s130 = sphi 0, %s128
      %s131 = sphi 0, %s130
      %s145 = sphi 0, %s131
      %s149 = sphi 0, %s149
      %s151 = sphi 0, %s149
      %s152 = sphi 0, %s151
      %s166 = sphi 0, %s152
      %s170 = sphi 0, %s170
      %s172 = sphi 0, %s170
      %s173 = sphi 0, %s172
      %s187 = sphi 0, %s173
      %s191 = sphi 0, %s191
      %s193 = sphi 0, %s191
      %s194 = sphi 0, %s193
      %s208 = sphi 0, %s194
      %s212 = sphi 0, %s212
      %s214 = sphi 0, %s212
      %s215 = sphi 0, %s214
      %s229 = sphi 0, %s215
      %s233 = sphi 0, %s233
      %s235 = sphi 0, %s233
      %s236 = sphi 0, %s235
      %s250 = sphi 0, %s236
      %s254 = sphi 0, %s254
      %s256 = sphi 0, %s254
      %s257 = sphi 0, %s256
      %s271 = sphi 0, %s257
      %s275 = sphi 0, %s275
      %s277 = sphi 0, %s275
      %s278 = sphi 0, %s277
      %s292 = sphi 0, %s278
      %s296 = sphi 0, %s296
      %s298 = sphi 0, %s296
      %s299 = sphi 0, %s298
      %s313 = sphi 0, %s299
      %s317 = sphi 0, %s317
      %s319 = sphi 0, %s317
      %s320 = sphi 0, %s319
      %s334 = sphi 0, %s320
      %s338 = sphi 0, %s338
      %s340 = sphi 0, %s338
      %s341 = sphi 0, %s340
      %s355 = sphi 0, %s341
      %s359 = sphi 0, %s359
      %s361 = sphi 0, %s359
      %s362 = sphi 0, %s361
      %s376 = sphi 0, %s362
      %s380 = sphi 0, %s380
      %s382 = sphi 0, %s380
      %s383 = sphi 0, %s382
      %s397 = sphi 0, %s383
      %s401 = sphi 0, %s401
      %s403 = sphi 0, %s401
      %s404 = sphi 0, %s403
      %s418 = sphi 0, %s404
      %s422 = sphi 0, %s422
      %s424 = sphi 0, %s422
      %s425 = sphi 0, %s424
      %s439 = sphi 0, %s425
      %s445 = sphi 0, %s447
      %s448 = sphi 0, %s445
      %s449 = sphi 0, %s448
      %s465 = sphi 0, %s449
    $region4: #{tpu_custom_call.1} parent=1 // loop_header_branch
      %34 = sbr.rel (%p32) target = $region8
    $region5: #{tpu_custom_call.1} parent=1 // loop_body
      %s36 = ssub.s32 %s31, 1
      %s37 = ssub.s32 %s31, 2
      %s38 = sadd.s32 %s31, 1
      %s39 = ssub.s32 %s31, %s38
      %p40 = scmp.eq.s32.totalorder %s39, 0
      %s42 = sadd.s32 %s41, 1
      %s43 = scalar_select %p40, %s41, %s42
      %p46 = pneg %p40
      %p47 = scmp.eq.s32.totalorder %s31, 1
      %p48 = por %p46, %p47
      %p49 = scmp.ne.s32.totalorder %s41, %s44
      %p50 = scmp.eq.s32.totalorder %s31, 0
      %p51 = por %p49, %p50
      %p52 = scmp.ne.s32.totalorder %s41, %s44
      %p53 = scmp.eq.s32.totalorder %s36, 1
      %p54 = por %p52, %p53
      %p55 = scmp.ne.s32.totalorder %s44, %s45
      %p56 = scmp.eq.s32.totalorder %s36, 0
      %p57 = por %p55, %p56
      %p58 = scmp.ne.s32.totalorder %s44, %s45
      %p59 = scmp.eq.s32.totalorder %s37, 1
      %p60 = por %p58, %p59
      %p62 = scmp.ne.s32.totalorder %s45, %s61
      %p63 = scmp.eq.s32.totalorder %s37, 0
      %p64 = por %p62, %p63
      %s66 = sadd.s32 %s65, 1
      %p69 = scmp.eq.s32.totalorder %s31, 1
      %p70 = scmp.ne.s32.totalorder %s65, %s67
      %p71 = scmp.eq.s32.totalorder %s31, 0
      %p72 = por %p70, %p71
      %p73 = scmp.ne.s32.totalorder %s65, %s67
      %p74 = scmp.eq.s32.totalorder %s36, 1
      %p75 = por %p73, %p74
      %p76 = scmp.ne.s32.totalorder %s67, %s68
      %p77 = scmp.eq.s32.totalorder %s36, 0
      %p78 = por %p76, %p77
      %p79 = scmp.ne.s32.totalorder %s67, %s68
      %p80 = scmp.eq.s32.totalorder %s37, 1
      %p81 = por %p79, %p80
      %p83 = scmp.ne.s32.totalorder %s68, %s82
      %p84 = scmp.eq.s32.totalorder %s37, 0
      %p85 = por %p83, %p84
      %s87 = sadd.s32 %s86, 1
      %p90 = scmp.eq.s32.totalorder %s31, 1
      %p91 = scmp.ne.s32.totalorder %s86, %s88
      %p92 = scmp.eq.s32.totalorder %s31, 0
      %p93 = por %p91, %p92
      %p94 = scmp.ne.s32.totalorder %s86, %s88
      %p95 = scmp.eq.s32.totalorder %s36, 1
      %p96 = por %p94, %p95
      %p97 = scmp.ne.s32.totalorder %s88, %s89
      %p98 = scmp.eq.s32.totalorder %s36, 0
      %p99 = por %p97, %p98
      %p100 = scmp.ne.s32.totalorder %s88, %s89
      %p101 = scmp.eq.s32.totalorder %s37, 1
      %p102 = por %p100, %p101
      %p104 = scmp.ne.s32.totalorder %s89, %s103
      %p105 = scmp.eq.s32.totalorder %s37, 0
      %p106 = por %p104, %p105
      %s108 = sadd.s32 %s107, 1
      %p111 = scmp.eq.s32.totalorder %s31, 1
      %p112 = scmp.ne.s32.totalorder %s107, %s109
      %p113 = scmp.eq.s32.totalorder %s31, 0
      %p114 = por %p112, %p113
      %p115 = scmp.ne.s32.totalorder %s107, %s109
      %p116 = scmp.eq.s32.totalorder %s36, 1
      %p117 = por %p115, %p116
      %p118 = scmp.ne.s32.totalorder %s109, %s110
      %p119 = scmp.eq.s32.totalorder %s36, 0
      %p120 = por %p118, %p119
      %p121 = scmp.ne.s32.totalorder %s109, %s110
      %p122 = scmp.eq.s32.totalorder %s37, 1
      %p123 = por %p121, %p122
      %p125 = scmp.ne.s32.totalorder %s110, %s124
      %p126 = scmp.eq.s32.totalorder %s37, 0
      %p127 = por %p125, %p126
      %s129 = sadd.s32 %s128, 1
      %p132 = scmp.eq.s32.totalorder %s31, 1
      %p133 = scmp.ne.s32.totalorder %s128, %s130
      %p134 = scmp.eq.s32.totalorder %s31, 0
      %p135 = por %p133, %p134
      %p136 = scmp.ne.s32.totalorder %s128, %s130
      %p137 = scmp.eq.s32.totalorder %s36, 1
      %p138 = por %p136, %p137
      %p139 = scmp.ne.s32.totalorder %s130, %s131
      %p140 = scmp.eq.s32.totalorder %s36, 0
      %p141 = por %p139, %p140
      %p142 = scmp.ne.s32.totalorder %s130, %s131
      %p143 = scmp.eq.s32.totalorder %s37, 1
      %p144 = por %p142, %p143
      %p146 = scmp.ne.s32.totalorder %s131, %s145
      %p147 = scmp.eq.s32.totalorder %s37, 0
      %p148 = por %p146, %p147
      %s150 = sadd.s32 %s149, 1
      %p153 = scmp.eq.s32.totalorder %s31, 1
      %p154 = scmp.ne.s32.totalorder %s149, %s151
      %p155 = scmp.eq.s32.totalorder %s31, 0
      %p156 = por %p154, %p155
      %p157 = scmp.ne.s32.totalorder %s149, %s151
      %p158 = scmp.eq.s32.totalorder %s36, 1
      %p159 = por %p157, %p158
      %p160 = scmp.ne.s32.totalorder %s151, %s152
      %p161 = scmp.eq.s32.totalorder %s36, 0
      %p162 = por %p160, %p161
      %p163 = scmp.ne.s32.totalorder %s151, %s152
      %p164 = scmp.eq.s32.totalorder %s37, 1
      %p165 = por %p163, %p164
      %p167 = scmp.ne.s32.totalorder %s152, %s166
      %p168 = scmp.eq.s32.totalorder %s37, 0
      %p169 = por %p167, %p168
      %s171 = sadd.s32 %s170, 1
      %p174 = scmp.eq.s32.totalorder %s31, 1
      %p175 = scmp.ne.s32.totalorder %s170, %s172
      %p176 = scmp.eq.s32.totalorder %s31, 0
      %p177 = por %p175, %p176
      %p178 = scmp.ne.s32.totalorder %s170, %s172
      %p179 = scmp.eq.s32.totalorder %s36, 1
      %p180 = por %p178, %p179
      %p181 = scmp.ne.s32.totalorder %s172, %s173
      %p182 = scmp.eq.s32.totalorder %s36, 0
      %p183 = por %p181, %p182
      %p184 = scmp.ne.s32.totalorder %s172, %s173
      %p185 = scmp.eq.s32.totalorder %s37, 1
      %p186 = por %p184, %p185
      %p188 = scmp.ne.s32.totalorder %s173, %s187
      %p189 = scmp.eq.s32.totalorder %s37, 0
      %p190 = por %p188, %p189
      %s192 = sadd.s32 %s191, 1
      %p195 = scmp.eq.s32.totalorder %s31, 1
      %p196 = scmp.ne.s32.totalorder %s191, %s193
      %p197 = scmp.eq.s32.totalorder %s31, 0
      %p198 = por %p196, %p197
      %p199 = scmp.ne.s32.totalorder %s191, %s193
      %p200 = scmp.eq.s32.totalorder %s36, 1
      %p201 = por %p199, %p200
      %p202 = scmp.ne.s32.totalorder %s193, %s194
      %p203 = scmp.eq.s32.totalorder %s36, 0
      %p204 = por %p202, %p203
      %p205 = scmp.ne.s32.totalorder %s193, %s194
      %p206 = scmp.eq.s32.totalorder %s37, 1
      %p207 = por %p205, %p206
      %p209 = scmp.ne.s32.totalorder %s194, %s208
      %p210 = scmp.eq.s32.totalorder %s37, 0
      %p211 = por %p209, %p210
      %s213 = sadd.s32 %s212, 1
      %p216 = scmp.eq.s32.totalorder %s31, 1
      %p217 = scmp.ne.s32.totalorder %s212, %s214
      %p218 = scmp.eq.s32.totalorder %s31, 0
      %p219 = por %p217, %p218
      %p220 = scmp.ne.s32.totalorder %s212, %s214
      %p221 = scmp.eq.s32.totalorder %s36, 1
      %p222 = por %p220, %p221
      %p223 = scmp.ne.s32.totalorder %s214, %s215
      %p224 = scmp.eq.s32.totalorder %s36, 0
      %p225 = por %p223, %p224
      %p226 = scmp.ne.s32.totalorder %s214, %s215
      %p227 = scmp.eq.s32.totalorder %s37, 1
      %p228 = por %p226, %p227
      %p230 = scmp.ne.s32.totalorder %s215, %s229
      %p231 = scmp.eq.s32.totalorder %s37, 0
      %p232 = por %p230, %p231
      %s234 = sadd.s32 %s233, 1
      %p237 = scmp.eq.s32.totalorder %s31, 1
      %p238 = scmp.ne.s32.totalorder %s233, %s235
      %p239 = scmp.eq.s32.totalorder %s31, 0
      %p240 = por %p238, %p239
      %p241 = scmp.ne.s32.totalorder %s233, %s235
      %p242 = scmp.eq.s32.totalorder %s36, 1
      %p243 = por %p241, %p242
      %p244 = scmp.ne.s32.totalorder %s235, %s236
      %p245 = scmp.eq.s32.totalorder %s36, 0
      %p246 = por %p244, %p245
      %p247 = scmp.ne.s32.totalorder %s235, %s236
      %p248 = scmp.eq.s32.totalorder %s37, 1
      %p249 = por %p247, %p248
      %p251 = scmp.ne.s32.totalorder %s236, %s250
      %p252 = scmp.eq.s32.totalorder %s37, 0
      %p253 = por %p251, %p252
      %s255 = sadd.s32 %s254, 1
      %p258 = scmp.eq.s32.totalorder %s31, 1
      %p259 = scmp.ne.s32.totalorder %s254, %s256
      %p260 = scmp.eq.s32.totalorder %s31, 0
      %p261 = por %p259, %p260
      %p262 = scmp.ne.s32.totalorder %s254, %s256
      %p263 = scmp.eq.s32.totalorder %s36, 1
      %p264 = por %p262, %p263
      %p265 = scmp.ne.s32.totalorder %s256, %s257
      %p266 = scmp.eq.s32.totalorder %s36, 0
      %p267 = por %p265, %p266
      %p268 = scmp.ne.s32.totalorder %s256, %s257
      %p269 = scmp.eq.s32.totalorder %s37, 1
      %p270 = por %p268, %p269
      %p272 = scmp.ne.s32.totalorder %s257, %s271
      %p273 = scmp.eq.s32.totalorder %s37, 0
      %p274 = por %p272, %p273
      %s276 = sadd.s32 %s275, 1
      %p279 = scmp.eq.s32.totalorder %s31, 1
      %p280 = scmp.ne.s32.totalorder %s275, %s277
      %p281 = scmp.eq.s32.totalorder %s31, 0
      %p282 = por %p280, %p281
      %p283 = scmp.ne.s32.totalorder %s275, %s277
      %p284 = scmp.eq.s32.totalorder %s36, 1
      %p285 = por %p283, %p284
      %p286 = scmp.ne.s32.totalorder %s277, %s278
      %p287 = scmp.eq.s32.totalorder %s36, 0
      %p288 = por %p286, %p287
      %p289 = scmp.ne.s32.totalorder %s277, %s278
      %p290 = scmp.eq.s32.totalorder %s37, 1
      %p291 = por %p289, %p290
      %p293 = scmp.ne.s32.totalorder %s278, %s292
      %p294 = scmp.eq.s32.totalorder %s37, 0
      %p295 = por %p293, %p294
      %s297 = sadd.s32 %s296, 1
      %p300 = scmp.eq.s32.totalorder %s31, 1
      %p301 = scmp.ne.s32.totalorder %s296, %s298
      %p302 = scmp.eq.s32.totalorder %s31, 0
      %p303 = por %p301, %p302
      %p304 = scmp.ne.s32.totalorder %s296, %s298
      %p305 = scmp.eq.s32.totalorder %s36, 1
      %p306 = por %p304, %p305
      %p307 = scmp.ne.s32.totalorder %s298, %s299
      %p308 = scmp.eq.s32.totalorder %s36, 0
      %p309 = por %p307, %p308
      %p310 = scmp.ne.s32.totalorder %s298, %s299
      %p311 = scmp.eq.s32.totalorder %s37, 1
      %p312 = por %p310, %p311
      %p314 = scmp.ne.s32.totalorder %s299, %s313
      %p315 = scmp.eq.s32.totalorder %s37, 0
      %p316 = por %p314, %p315
      %s318 = sadd.s32 %s317, 1
      %p321 = scmp.eq.s32.totalorder %s31, 1
      %p322 = scmp.ne.s32.totalorder %s317, %s319
      %p323 = scmp.eq.s32.totalorder %s31, 0
      %p324 = por %p322, %p323
      %p325 = scmp.ne.s32.totalorder %s317, %s319
      %p326 = scmp.eq.s32.totalorder %s36, 1
      %p327 = por %p325, %p326
      %p328 = scmp.ne.s32.totalorder %s319, %s320
      %p329 = scmp.eq.s32.totalorder %s36, 0
      %p330 = por %p328, %p329
      %p331 = scmp.ne.s32.totalorder %s319, %s320
      %p332 = scmp.eq.s32.totalorder %s37, 1
      %p333 = por %p331, %p332
      %p335 = scmp.ne.s32.totalorder %s320, %s334
      %p336 = scmp.eq.s32.totalorder %s37, 0
      %p337 = por %p335, %p336
      %s339 = sadd.s32 %s338, 1
      %p342 = scmp.eq.s32.totalorder %s31, 1
      %p343 = scmp.ne.s32.totalorder %s338, %s340
      %p344 = scmp.eq.s32.totalorder %s31, 0
      %p345 = por %p343, %p344
      %p346 = scmp.ne.s32.totalorder %s338, %s340
      %p347 = scmp.eq.s32.totalorder %s36, 1
      %p348 = por %p346, %p347
      %p349 = scmp.ne.s32.totalorder %s340, %s341
      %p350 = scmp.eq.s32.totalorder %s36, 0
      %p351 = por %p349, %p350
      %p352 = scmp.ne.s32.totalorder %s340, %s341
      %p353 = scmp.eq.s32.totalorder %s37, 1
      %p354 = por %p352, %p353
      %p356 = scmp.ne.s32.totalorder %s341, %s355
      %p357 = scmp.eq.s32.totalorder %s37, 0
      %p358 = por %p356, %p357
      %s360 = sadd.s32 %s359, 1
      %p363 = scmp.eq.s32.totalorder %s31, 1
      %p364 = scmp.ne.s32.totalorder %s359, %s361
      %p365 = scmp.eq.s32.totalorder %s31, 0
      %p366 = por %p364, %p365
      %p367 = scmp.ne.s32.totalorder %s359, %s361
      %p368 = scmp.eq.s32.totalorder %s36, 1
      %p369 = por %p367, %p368
      %p370 = scmp.ne.s32.totalorder %s361, %s362
      %p371 = scmp.eq.s32.totalorder %s36, 0
      %p372 = por %p370, %p371
      %p373 = scmp.ne.s32.totalorder %s361, %s362
      %p374 = scmp.eq.s32.totalorder %s37, 1
      %p375 = por %p373, %p374
      %p377 = scmp.ne.s32.totalorder %s362, %s376
      %p378 = scmp.eq.s32.totalorder %s37, 0
      %p379 = por %p377, %p378
      %s381 = sadd.s32 %s380, 1
      %p384 = scmp.eq.s32.totalorder %s31, 1
      %p385 = scmp.ne.s32.totalorder %s380, %s382
      %p386 = scmp.eq.s32.totalorder %s31, 0
      %p387 = por %p385, %p386
      %p388 = scmp.ne.s32.totalorder %s380, %s382
      %p389 = scmp.eq.s32.totalorder %s36, 1
      %p390 = por %p388, %p389
      %p391 = scmp.ne.s32.totalorder %s382, %s383
      %p392 = scmp.eq.s32.totalorder %s36, 0
      %p393 = por %p391, %p392
      %p394 = scmp.ne.s32.totalorder %s382, %s383
      %p395 = scmp.eq.s32.totalorder %s37, 1
      %p396 = por %p394, %p395
      %p398 = scmp.ne.s32.totalorder %s383, %s397
      %p399 = scmp.eq.s32.totalorder %s37, 0
      %p400 = por %p398, %p399
      %s402 = sadd.s32 %s401, 1
      %p405 = scmp.eq.s32.totalorder %s31, 1
      %p406 = scmp.ne.s32.totalorder %s401, %s403
      %p407 = scmp.eq.s32.totalorder %s31, 0
      %p408 = por %p406, %p407
      %p409 = scmp.ne.s32.totalorder %s401, %s403
      %p410 = scmp.eq.s32.totalorder %s36, 1
      %p411 = por %p409, %p410
      %p412 = scmp.ne.s32.totalorder %s403, %s404
      %p413 = scmp.eq.s32.totalorder %s36, 0
      %p414 = por %p412, %p413
      %p415 = scmp.ne.s32.totalorder %s403, %s404
      %p416 = scmp.eq.s32.totalorder %s37, 1
      %p417 = por %p415, %p416
      %p419 = scmp.ne.s32.totalorder %s404, %s418
      %p420 = scmp.eq.s32.totalorder %s37, 0
      %p421 = por %p419, %p420
      %s423 = sadd.s32 %s422, 1
      %p426 = scmp.eq.s32.totalorder %s31, 1
      %p427 = scmp.ne.s32.totalorder %s422, %s424
      %p428 = scmp.eq.s32.totalorder %s31, 0
      %p429 = por %p427, %p428
      %p430 = scmp.ne.s32.totalorder %s422, %s424
      %p431 = scmp.eq.s32.totalorder %s36, 1
      %p432 = por %p430, %p431
      %p433 = scmp.ne.s32.totalorder %s424, %s425
      %p434 = scmp.eq.s32.totalorder %s36, 0
      %p435 = por %p433, %p434
      %p436 = scmp.ne.s32.totalorder %s424, %s425
      %p437 = scmp.eq.s32.totalorder %s37, 1
      %p438 = por %p436, %p437
      %p440 = scmp.ne.s32.totalorder %s425, %s439
      %p441 = scmp.eq.s32.totalorder %s37, 0
      %p442 = por %p440, %p441
      %s443 = ssub.s32 %s31, %s38
      %p444 = scmp.eq.s32.totalorder %s443, 0
      %s446 = sadd.s32 %s445, 1
      %s447 = scalar_select %p444, %s445, %s446
      %p450 = pneg %p444
      %p451 = scmp.eq.s32.totalorder %s31, 1
      %p452 = por %p450, %p451
      %p453 = scmp.ne.s32.totalorder %s445, %s448
      %p454 = scmp.eq.s32.totalorder %s31, 0
      %p455 = por %p453, %p454
      %p456 = scmp.ne.s32.totalorder %s445, %s448
      %p457 = scmp.eq.s32.totalorder %s36, 1
      %p458 = por %p456, %p457
      %p459 = scmp.ne.s32.totalorder %s448, %s449
      %p460 = scmp.eq.s32.totalorder %s36, 0
      %p461 = por %p459, %p460
      %p462 = scmp.ne.s32.totalorder %s448, %s449
      %p463 = scmp.eq.s32.totalorder %s37, 1
      %p464 = por %p462, %p463
      %p466 = scmp.ne.s32.totalorder %s449, %s465
      %p467 = scmp.eq.s32.totalorder %s37, 0
      %p468 = por %p466, %p467
      %p469 = scmp.le.s32.totalorder 1, %s31
      %p470 = scmp.lt.s32.totalorder %s31, 3
      %p471 = pnand %p469, %p470
      %p472 = pneg %p471
      // Predicated region
      $region9: #{tpu_custom_call.1} parent=5 // pred_check
        _
      $region10: #{tpu_custom_call.1} parent=5 // pred_check_branch
        %474 = sbr.rel (%p471) target = $region12
      $region11: #{tpu_custom_call.1} parent=5 // pred_region
        %s475 = ssub.s32 %s31, 1
        // Predicated region
        $region13: #{tpu_custom_call.1} parent=11 // pred_check
          %p476 = pneg %p78
        $region14: #{tpu_custom_call.1} parent=11 // pred_check_branch
          %478 = sbr.rel (%p476) target = $region16
        $region15: #{tpu_custom_call.1} parent=11 // pred_region
          _
        $region16: #{tpu_custom_call.1} parent=11 // pred_fallthru
          _
        // Predicated region
        $region17: #{tpu_custom_call.1} parent=11 // pred_check
          %p479 = pneg %p99
        $region18: #{tpu_custom_call.1} parent=11 // pred_check_branch
          %481 = sbr.rel (%p479) target = $region20
        $region19: #{tpu_custom_call.1} parent=11 // pred_region
          _
        $region20: #{tpu_custom_call.1} parent=11 // pred_fallthru
          _
        // Predicated region
        $region21: #{tpu_custom_call.1} parent=11 // pred_check
          %p482 = pneg %p120
        $region22: #{tpu_custom_call.1} parent=11 // pred_check_branch
          %484 = sbr.rel (%p482) target = $region24
        $region23: #{tpu_custom_call.1} parent=11 // pred_region
          %s486 = ssub.s32 64, 64
          %487 = vsyncadd [#allocation9], %s486
          %s489 = sshll.u32 [#allocation8], 4
          %s490 = int_to_ptr.vmem [resolvable:$true] %s489
          %492 = dma.hbm_to_vmem [thread:$0]  %s3, 64, %s490, [#allocation9]
        $region24: #{tpu_custom_call.1} parent=11 // pred_fallthru
          _
        // Predicated region
        $region25: #{tpu_custom_call.1} parent=11 // pred_check
          %p493 = pneg %p141
        $region26: #{tpu_custom_call.1} parent=11 // pred_check_branch
          %495 = sbr.rel (%p493) target = $region28
        $region27: #{tpu_custom_call.1} parent=11 // pred_region
          _
        $region28: #{tpu_custom_call.1} parent=11 // pred_fallthru
          _
        // Predicated region
        $region29: #{tpu_custom_call.1} parent=11 // pred_check
          %p496 = pneg %p162
        $region30: #{tpu_custom_call.1} parent=11 // pred_check_branch
          %498 = sbr.rel (%p496) target = $region32
        $region31: #{tpu_custom_call.1} parent=11 // pred_region
          _
        $region32: #{tpu_custom_call.1} parent=11 // pred_fallthru
          _
        // Predicated region
        $region33: #{tpu_custom_call.1} parent=11 // pred_check
          %p499 = pneg %p183
        $region34: #{tpu_custom_call.1} parent=11 // pred_check_branch
          %501 = sbr.rel (%p499) target = $region36
        $region35: #{tpu_custom_call.1} parent=11 // pred_region
          %s503 = ssub.s32 128, 128
          %504 = vsyncadd [#allocation12], %s503
          %s506 = sshll.u32 [#allocation11], 4
          %s507 = int_to_ptr.vmem [resolvable:$true] %s506
          %509 = dma.hbm_to_vmem [thread:$0]  %s6, 128, %s507, [#allocation12]
        $region36: #{tpu_custom_call.1} parent=11 // pred_fallthru
          _
        // Predicated region
        $region37: #{tpu_custom_call.1} parent=11 // pred_check
          %p510 = pneg %p204
        $region38: #{tpu_custom_call.1} parent=11 // pred_check_branch
          %512 = sbr.rel (%p510) target = $region40
        $region39: #{tpu_custom_call.1} parent=11 // pred_region
          _
        $region40: #{tpu_custom_call.1} parent=11 // pred_fallthru
          _
        // Predicated region
        $region41: #{tpu_custom_call.1} parent=11 // pred_check
          %p513 = pneg %p225
        $region42: #{tpu_custom_call.1} parent=11 // pred_check_branch
          %515 = sbr.rel (%p513) target = $region44
        $region43: #{tpu_custom_call.1} parent=11 // pred_region
          %s517 = ssub.s32 256, 256
          %518 = vsyncadd [#allocation12], %s517
          %s519 = sshll.u32 [#allocation13], 4
          %s520 = int_to_ptr.vmem [resolvable:$true] %s519
          %525 = dma.hbm_to_vmem [thread:$0]  %s8, 256, %s520, [#allocation12], 128, 128, 8
        $region44: #{tpu_custom_call.1} parent=11 // pred_fallthru
          _
        // Predicated region
        $region45: #{tpu_custom_call.1} parent=11 // pred_check
          %p526 = pneg %p246
        $region46: #{tpu_custom_call.1} parent=11 // pred_check_branch
          %528 = sbr.rel (%p526) target = $region48
        $region47: #{tpu_custom_call.1} parent=11 // pred_region
          %s530 = ssub.s32 16, 16
          %531 = vsyncadd [#allocation15], %s530
          %s533 = sshll.u32 [#allocation14], 4
          %s534 = int_to_ptr.vmem [resolvable:$true] %s533
          %536 = dma.hbm_to_vmem [thread:$0]  %s9, 16, %s534, [#allocation15]
        $region48: #{tpu_custom_call.1} parent=11 // pred_fallthru
          _
        // Predicated region
        $region49: #{tpu_custom_call.1} parent=11 // pred_check
          %p537 = pneg %p267
        $region50: #{tpu_custom_call.1} parent=11 // pred_check_branch
          %539 = sbr.rel (%p537) target = $region52
        $region51: #{tpu_custom_call.1} parent=11 // pred_region
          _
        $region52: #{tpu_custom_call.1} parent=11 // pred_fallthru
          _
        // Predicated region
        $region53: #{tpu_custom_call.1} parent=11 // pred_check
          %p540 = pneg %p288
        $region54: #{tpu_custom_call.1} parent=11 // pred_check_branch
          %542 = sbr.rel (%p540) target = $region56
        $region55: #{tpu_custom_call.1} parent=11 // pred_region
          _
        $region56: #{tpu_custom_call.1} parent=11 // pred_fallthru
          _
        // Predicated region
        $region57: #{tpu_custom_call.1} parent=11 // pred_check
          %p543 = pneg %p309
        $region58: #{tpu_custom_call.1} parent=11 // pred_check_branch
          %545 = sbr.rel (%p543) target = $region60
        $region59: #{tpu_custom_call.1} parent=11 // pred_region
          _
        $region60: #{tpu_custom_call.1} parent=11 // pred_fallthru
          _
        // Predicated region
        $region61: #{tpu_custom_call.1} parent=11 // pred_check
          %p546 = pneg %p330
        $region62: #{tpu_custom_call.1} parent=11 // pred_check_branch
          %548 = sbr.rel (%p546) target = $region64
        $region63: #{tpu_custom_call.1} parent=11 // pred_region
          _
        $region64: #{tpu_custom_call.1} parent=11 // pred_fallthru
          _
        // Predicated region
        $region65: #{tpu_custom_call.1} parent=11 // pred_check
          %p549 = pneg %p351
        $region66: #{tpu_custom_call.1} parent=11 // pred_check_branch
          %551 = sbr.rel (%p549) target = $region68
        $region67: #{tpu_custom_call.1} parent=11 // pred_region
          _
        $region68: #{tpu_custom_call.1} parent=11 // pred_fallthru
          _
        // Predicated region
        $region69: #{tpu_custom_call.1} parent=11 // pred_check
          %p552 = pneg %p372
        $region70: #{tpu_custom_call.1} parent=11 // pred_check_branch
          %554 = sbr.rel (%p552) target = $region72
        $region71: #{tpu_custom_call.1} parent=11 // pred_region
          _
        $region72: #{tpu_custom_call.1} parent=11 // pred_fallthru
          _
        // Predicated region
        $region73: #{tpu_custom_call.1} parent=11 // pred_check
          %p555 = pneg %p393
        $region74: #{tpu_custom_call.1} parent=11 // pred_check_branch
          %557 = sbr.rel (%p555) target = $region76
        $region75: #{tpu_custom_call.1} parent=11 // pred_region
          _
        $region76: #{tpu_custom_call.1} parent=11 // pred_fallthru
          _
        // Predicated region
        $region77: #{tpu_custom_call.1} parent=11 // pred_check
          %p558 = pneg %p414
        $region78: #{tpu_custom_call.1} parent=11 // pred_check_branch
          %560 = sbr.rel (%p558) target = $region80
        $region79: #{tpu_custom_call.1} parent=11 // pred_region
          _
        $region80: #{tpu_custom_call.1} parent=11 // pred_fallthru
          _
        // Predicated region
        $region81: #{tpu_custom_call.1} parent=11 // pred_check
          %p561 = pneg %p435
        $region82: #{tpu_custom_call.1} parent=11 // pred_check_branch
          %563 = sbr.rel (%p561) target = $region84
        $region83: #{tpu_custom_call.1} parent=11 // pred_region
          _
        $region84: #{tpu_custom_call.1} parent=11 // pred_fallthru
          _
      $region12: #{tpu_custom_call.1} parent=5 // pred_fallthru
        _
      %p564 = scmp.lt.s32.totalorder %s31, 2
      // Predicated region
      $region85: #{tpu_custom_call.1} parent=5 // pred_check
        %p565 = pneg %p564
      $region86: #{tpu_custom_call.1} parent=5 // pred_check_branch
        %567 = sbr.rel (%p565) target = $region88
      $region87: #{tpu_custom_call.1} parent=5 // pred_region
        // Predicated region
        $region89: #{tpu_custom_call.1} parent=87 // pred_check
          %p568 = pneg %p51
        $region90: #{tpu_custom_call.1} parent=87 // pred_check_branch
          %570 = sbr.rel (%p568) target = $region92
        $region91: #{tpu_custom_call.1} parent=87 // pred_region
          %p571 = scmp.lt.s32.totalorder %s31, 1
          %s572 = scalar_select %p571, %s31, 1
          %s573 = smul.addr %s572, 8
          %s574 = scalar_lea.vmem %s0, %s573
        $region92: #{tpu_custom_call.1} parent=87 // pred_fallthru
          _
      $region88: #{tpu_custom_call.1} parent=5 // pred_fallthru
        _
      %p575 = scmp.le.s32.totalorder 1, %s31
      %p576 = scmp.lt.s32.totalorder %s31, 3
      %p577 = pnand %p575, %p576
      %p578 = pneg %p577
      // Predicated region
      $region93: #{tpu_custom_call.1} parent=5 // pred_check
        _
      $region94: #{tpu_custom_call.1} parent=5 // pred_check_branch
        %580 = sbr.rel (%p577) target = $region96
      $region95: #{tpu_custom_call.1} parent=5 // pred_region
        %s581 = ssub.s32 %s31, 1
        // Predicated region
        $region97: #{tpu_custom_call.1} parent=95 // pred_check
          %p582 = pneg %p120
        $region98: #{tpu_custom_call.1} parent=95 // pred_check_branch
          %584 = sbr.rel (%p582) target = $region100
        $region99: #{tpu_custom_call.1} parent=95 // pred_region
          %585 = dma.done [#allocation9], 64
        $region100: #{tpu_custom_call.1} parent=95 // pred_fallthru
          _
        // Predicated region
        $region101: #{tpu_custom_call.1} parent=95 // pred_check
          %p586 = pneg %p183
        $region102: #{tpu_custom_call.1} parent=95 // pred_check_branch
          %588 = sbr.rel (%p586) target = $region104
        $region103: #{tpu_custom_call.1} parent=95 // pred_region
          %589 = dma.done [#allocation12], 128
        $region104: #{tpu_custom_call.1} parent=95 // pred_fallthru
          _
        // Predicated region
        $region105: #{tpu_custom_call.1} parent=95 // pred_check
          %p590 = pneg %p225
        $region106: #{tpu_custom_call.1} parent=95 // pred_check_branch
          %592 = sbr.rel (%p590) target = $region108
        $region107: #{tpu_custom_call.1} parent=95 // pred_region
          %593 = dma.done [#allocation12], 256
        $region108: #{tpu_custom_call.1} parent=95 // pred_fallthru
          _
        // Predicated region
        $region109: #{tpu_custom_call.1} parent=95 // pred_check
          %p594 = pneg %p246
        $region110: #{tpu_custom_call.1} parent=95 // pred_check_branch
          %596 = sbr.rel (%p594) target = $region112
        $region111: #{tpu_custom_call.1} parent=95 // pred_region
          %597 = dma.done [#allocation15], 16
        $region112: #{tpu_custom_call.1} parent=95 // pred_fallthru
          _
        %p598 = scmp.lt.s32.totalorder %s36, 1
        %s599 = scalar_select %p598, %s36, 1
        %s600 = smul.addr %s599, 8
        %s601 = scalar_lea.vmem %s0, %s600
        %p602 = pneg %p57
        %p603 = pneg %p54
        %p604 = pneg %p78
        %p605 = pneg %p75
        %p606 = pneg %p99
        %p607 = pneg %p96
        %p608 = pneg %p120
        %p609 = pneg %p117
        %p610 = pneg %p141
        %p611 = pneg %p138
        %p612 = pneg %p162
        %p613 = pneg %p159
        %p614 = pneg %p183
        %p615 = pneg %p180
        %p616 = pneg %p204
        %p617 = pneg %p201
        %p618 = pneg %p225
        %p619 = pneg %p222
        %p620 = pneg %p246
        %p621 = pneg %p243
        %p622 = pneg %p267
        %p623 = pneg %p264
        %p624 = pneg %p288
        %p625 = pneg %p285
        %p626 = pneg %p309
        %p627 = pneg %p306
        %p628 = pneg %p330
        %p629 = pneg %p327
        %p630 = pneg %p351
        %p631 = pneg %p348
        %p632 = pneg %p372
        %p633 = pneg %p369
        %p634 = pneg %p393
        %p635 = pneg %p390
        %p636 = pneg %p414
        %p637 = pneg %p411
        %p638 = pneg %p435
        %p639 = pneg %p432
        %p640 = pneg %p461
        %p641 = pneg %p458
        %s642 = sand.u32 %s448, 1
        %s643 = scalar_lea.sflag [#allocation10], %s642
        %s644 = sand.u32 %s448, 1
        %s645 = smul.addr %s644, 8
        %s646 = scalar_lea.vmem [#allocation16], %s645
        %p647 = scmp.lt.s32.totalorder %s36, 1
        %s648 = scalar_select %p647, %s36, 1
        %s649 = smul.addr %s648, 8
        %s650 = scalar_lea.vmem %s0, %s649
        %v652 = vld [vmem:[%s650] sm:$0xff]
        %v653 = vpack.c.bf16 %v652, %v652
        %v654 = vld [vmem:[%s1] sm:$0xf]
        %v655 = vld [vmem:[%s1 + $0x4] sm:$0xf]
        %v656 = vld [vmem:[%s1 + $0x8] sm:$0xf]
        %v657 = vld [vmem:[%s1 + $0xc] sm:$0xf]
        %v662 = vunpack.c.l.b16 %v654
        %v663 = vunpack.c.l.b16 %v655
        %v664 = vunpack.c.l.b16 %v656
        %v665 = vunpack.c.l.b16 %v657
        %v666 = vpack.c.b16 %v663, %v662
        %v667 = vpack.c.b16 %v665, %v664
        %vm670 = vcmask 261120
        %v672 = vsel %vm670, %v653, 0
        %674 = vmatprep.subr.bf16.mxu0 0
        %675 = vmatpush1.bf16.msra.mxu0 %v666
        %676 = vmatprep.subr.bf16.mxu0 0
        %677 = vmatpush1.bf16.msra.mxu0 %v667
        %678 = vmatprep.subr.bf16.mxu0 0
        %679 = vmatpush1.bf16.msra.mxu0 0
        %680 = vmatprep.subr.bf16.mxu0 0
        %681 = vmatpush1.bf16.msra.mxu0 0
        %682 = vmatprep.subr.bf16.mxu0 0
        %683 = vmatpush1.bf16.msra.mxu0 0
        %684 = vmatprep.subr.bf16.mxu0 0
        %685 = vmatpush1.bf16.msra.mxu0 0
        %686 = vmatprep.subr.bf16.mxu0 0
        %687 = vmatpush1.bf16.msra.mxu0 0
        %688 = vmatprep.subr.bf16.mxu0 0
        %689 = vmatpush1.bf16.msra.mxu0 0
        %690 = vmatprep.subr.bf16.mxu0 0
        %691 = vmatpush1.bf16.msra.mxu0 0
        %692 = vmatprep.subr.bf16.mxu0 0
        %693 = vmatpush1.bf16.msra.mxu0 0
        %694 = vmatprep.subr.bf16.mxu0 0
        %695 = vmatpush1.bf16.msra.mxu0 0
        %696 = vmatprep.subr.bf16.mxu0 0
        %697 = vmatpush1.bf16.msra.mxu0 0
        %698 = vmatprep.subr.bf16.mxu0 0
        %699 = vmatpush1.bf16.msra.mxu0 0
        %700 = vmatprep.subr.bf16.mxu0 0
        %701 = vmatpush1.bf16.msra.mxu0 0
        %702 = vmatprep.subr.bf16.mxu0 0
        %703 = vmatpush1.bf16.msra.mxu0 0
        %704 = vmatprep.subr.bf16.mxu0 0
        %705 = vmatpush1.bf16.msra.mxu0 0
        %706 = vmatprep.mubr.bf16.mxu0 0
        %707 = vmatmul.mubr.bf16.gmra.mrb[0].mxu0 %v672
        %v708 = vpop.f32.mrb[0].mxu0
        %v709 = vadd.f32 0.0, %v708
        %v710 = vpop.f32.mrb[0].mxu0
        %v711 = vpop.f32.mrb[0].mxu0
        %v712 = vpop.f32.mrb[0].mxu0
        %713 = vdwg.mxu0
        %v714 = vld [vmem:[%s2] sm:$0xf]
        %v715 = vld [vmem:[%s2 + $0x4] sm:$0xf]
        %v716 = vld [vmem:[%s2 + $0x8] sm:$0xf]
        %v717 = vld [vmem:[%s2 + $0xc] sm:$0xf]
        %v722 = vunpack.c.l.b16 %v714
        %v723 = vunpack.c.l.b16 %v715
        %v724 = vunpack.c.l.b16 %v716
        %v725 = vunpack.c.l.b16 %v717
        %v726 = vpack.c.b16 %v723, %v722
        %v727 = vpack.c.b16 %v725, %v724
        %730 = vmatprep.subr.bf16.mxu0 0
        %731 = vmatpush1.bf16.msra.mxu0 %v726
        %732 = vmatprep.subr.bf16.mxu0 0
        %733 = vmatpush1.bf16.msra.mxu0 %v727
        %734 = vmatprep.subr.bf16.mxu0 0
        %735 = vmatpush1.bf16.msra.mxu0 0
        %736 = vmatprep.subr.bf16.mxu0 0
        %737 = vmatpush1.bf16.msra.mxu0 0
        %738 = vmatprep.subr.bf16.mxu0 0
        %739 = vmatpush1.bf16.msra.mxu0 0
        %740 = vmatprep.subr.bf16.mxu0 0
        %741 = vmatpush1.bf16.msra.mxu0 0
        %742 = vmatprep.subr.bf16.mxu0 0
        %743 = vmatpush1.bf16.msra.mxu0 0
        %744 = vmatprep.subr.bf16.mxu0 0
        %745 = vmatpush1.bf16.msra.mxu0 0
        %746 = vmatprep.subr.bf16.mxu0 0
        %747 = vmatpush1.bf16.msra.mxu0 0
        %748 = vmatprep.subr.bf16.mxu0 0
        %749 = vmatpush1.bf16.msra.mxu0 0
        %750 = vmatprep.subr.bf16.mxu0 0
        %751 = vmatpush1.bf16.msra.mxu0 0
        %752 = vmatprep.subr.bf16.mxu0 0
        %753 = vmatpush1.bf16.msra.mxu0 0
        %754 = vmatprep.subr.bf16.mxu0 0
        %755 = vmatpush1.bf16.msra.mxu0 0
        %756 = vmatprep.subr.bf16.mxu0 0
        %757 = vmatpush1.bf16.msra.mxu0 0
        %758 = vmatprep.subr.bf16.mxu0 0
        %759 = vmatpush1.bf16.msra.mxu0 0
        %760 = vmatprep.subr.bf16.mxu0 0
        %761 = vmatpush1.bf16.msra.mxu0 0
        %762 = vmatprep.mubr.bf16.mxu0 0
        %763 = vmatmul.mubr.bf16.gmra.mrb[0].mxu0 %v672
        %v764 = vpop.f32.mrb[0].mxu0
        %v765 = vadd.f32 0.0, %v764
        %v766 = vpop.f32.mrb[0].mxu0
        %v767 = vpop.f32.mrb[0].mxu0
        %v768 = vpop.f32.mrb[0].mxu0
        %769 = vdwg.mxu0
        %vm770 = vcmask 518144
        %771 = vst.msk [vmem:[#allocation2] sm:$0x7] %vm770, 0.0
        %vm772 = vcmask 523264
        %773 = vst.msk [vmem:[#allocation2 + $0x3] sm:$0xff] %vm772, %v709
        %v774 = vlaneseq
        %v775 = vshrl.u32 %v774, 7
        %vm776 = vcmp.lt.s32.totalorder %v775, 0
        %v777 = vsub.s32 0, %v775
        %v778 = vsel %vm776, %v777, %v775
        %v779 = vshrl.u32 %v778, 3
        %v780 = vand.u32 %v778, 7
        %v781 = vsub.s32 0, %v780
        %v782 = vsel %vm776, %v781, %v780
        %vm783 = vcmp.ne.s32.totalorder %v782, 0
        %vm784 = vcmp.lt.s32.totalorder %v782, 0
        %vm785 = vmand %vm784, %vm783
        %v786 = vadd.s32 %v782, 8
        %v787 = vsel %vm785, %v786, %v782
        %v788 = vld [vmem:[%s4] sm:$0x1]
        %v790 = vlaneseq
        %v791 = vshrl.u32 %v790, 7
        %v792 = vsub.s32 0, %v791
        %v793 = vrot.slane %v788, %v792
        %v795 = vld [vmem:[#allocation2] sm:$0xff]
        %vm796 = vcmp.ge.s32.totalorder %v787, 3
        %v797 = vsel %vm796, 1, 0
        %vm798 = vcmp.eq.s32.totalorder %v797, 1
        %v799 = vsel %vm798, %v795, 0.0
        %v800 = vld [vmem:[#allocation8] sm:$0x1]
        %v801 = vlaneseq
        %v802 = vshrl.u32 %v801, 7
        %v803 = vsub.s32 0, %v802
        %v804 = vrot.slane %v800, %v803
        %v805 = vmul.f32 %v804, %v799
        %v806 = vadd.f32 %v793, %v805
        %v807 = vld [vmem:[#allocation2 + $0x1] sm:$0xff]
        %vm808 = vcmp.ge.s32.totalorder %v787, 2
        %v809 = vsel %vm808, 1, 0
        %vm810 = vcmp.eq.s32.totalorder %v809, 1
        %v811 = vsel %vm810, %v807, 0.0
        %v812 = vld [vmem:[#allocation8 + $0x1] sm:$0x1]
        %v813 = vlaneseq
        %v814 = vshrl.u32 %v813, 7
        %v815 = vsub.s32 0, %v814
        %v816 = vrot.slane %v812, %v815
        %v817 = vmul.f32 %v816, %v811
        %v818 = vadd.f32 %v806, %v817
        %v819 = vld [vmem:[#allocation2 + $0x2] sm:$0xff]
        %vm820 = vcmp.ge.s32.totalorder %v787, 1
        %v821 = vsel %vm820, 1, 0
        %vm822 = vcmp.eq.s32.totalorder %v821, 1
        %v823 = vsel %vm822, %v819, 0.0
        %v824 = vld [vmem:[#allocation8 + $0x2] sm:$0x1]
        %v825 = vlaneseq
        %v826 = vshrl.u32 %v825, 7
        %v827 = vsub.s32 0, %v826
        %v828 = vrot.slane %v824, %v827
        %v829 = vmul.f32 %v828, %v823
        %v830 = vadd.f32 %v818, %v829
        %v831 = vld [vmem:[#allocation2 + $0x3] sm:$0xff]
        %v832 = vld [vmem:[#allocation8 + $0x3] sm:$0x1]
        %v833 = vlaneseq
        %v834 = vshrl.u32 %v833, 7
        %v835 = vsub.s32 0, %v834
        %v836 = vrot.slane %v832, %v835
        %v837 = vmul.f32 %v836, %v831
        %v838 = vadd.f32 %v830, %v837
        %v839 = vxor.u32 %v838, 2147483648
        %v840 = vmul.f32 %v839, 1.442695
        %v841 = vpow.pop %v840
        %v842 = vadd.f32 %v841, 1.0
        %v843 = vrcp.pop %v842
        %v844 = vmul.f32 1.0, %v843
        %v845 = vmul.f32 %v838, %v844
        %v846 = vld [vmem:[%s5] sm:$0xff]
        %v847 = vld [vmem:[%s5 + $0x8] sm:$0xff]
        %v848 = vld [vmem:[%s5 + $0x10] sm:$0xff]
        %v849 = vld [vmem:[%s5 + $0x18] sm:$0xff]
        %v850 = vld [vmem:[%s5 + $0x20] sm:$0xff]
        %v851 = vld [vmem:[%s5 + $0x28] sm:$0xff]
        %v852 = vld [vmem:[%s5 + $0x30] sm:$0xff]
        %v853 = vld [vmem:[%s5 + $0x38] sm:$0xff]
        %v855 = vsel %vm772, %v845, 0
        %857 = vmatprep.subr.mxu0 0.0
        %858 = vmatpush1.msra.mxu0 %v846
        %859 = vmatprep.subr.mxu0 0.0
        %860 = vmatpush1.msra.mxu0 %v847
        %861 = vmatprep.subr.mxu0 0.0
        %862 = vmatpush1.msra.mxu0 %v848
        %863 = vmatprep.subr.mxu0 0.0
        %864 = vmatpush1.msra.mxu0 %v849
        %865 = vmatprep.subr.mxu0 0.0
        %866 = vmatpush1.msra.mxu0 %v850
        %867 = vmatprep.subr.mxu0 0.0
        %868 = vmatpush1.msra.mxu0 %v851
        %869 = vmatprep.subr.mxu0 0.0
        %870 = vmatpush1.msra.mxu0 %v852
        %871 = vmatprep.subr.mxu0 0.0
        %872 = vmatpush1.msra.mxu0 %v853
        %873 = vmatprep.subr.mxu0 0.0
        %874 = vmatpush1.msra.mxu0 0.0
        %875 = vmatprep.subr.mxu0 0.0
        %876 = vmatpush1.msra.mxu0 0.0
        %877 = vmatprep.subr.mxu0 0.0
        %878 = vmatpush1.msra.mxu0 0.0
        %879 = vmatprep.subr.mxu0 0.0
        %880 = vmatpush1.msra.mxu0 0.0
        %881 = vmatprep.subr.mxu0 0.0
        %882 = vmatpush1.msra.mxu0 0.0
        %883 = vmatprep.subr.mxu0 0.0
        %884 = vmatpush1.msra.mxu0 0.0
        %885 = vmatprep.subr.mxu0 0.0
        %886 = vmatpush1.msra.mxu0 0.0
        %887 = vmatprep.subr.mxu0 0.0
        %888 = vmatpush1.msra.mxu0 0.0
        %889 = vmatprep.subr.mxu0 0.0
        %890 = vmatpush1.msra.mxu0 0.0
        %891 = vmatprep.subr.mxu0 0.0
        %892 = vmatpush1.msra.mxu0 0.0
        %893 = vmatprep.subr.mxu0 0.0
        %894 = vmatpush1.msra.mxu0 0.0
        %895 = vmatprep.subr.mxu0 0.0
        %896 = vmatpush1.msra.mxu0 0.0
        %897 = vmatprep.subr.mxu0 0.0
        %898 = vmatpush1.msra.mxu0 0.0
        %899 = vmatprep.subr.mxu0 0.0
        %900 = vmatpush1.msra.mxu0 0.0
        %901 = vmatprep.subr.mxu0 0.0
        %902 = vmatpush1.msra.mxu0 0.0
        %903 = vmatprep.subr.mxu0 0.0
        %904 = vmatpush1.msra.mxu0 0.0
        %905 = vmatprep.subr.mxu0 0.0
        %906 = vmatpush1.msra.mxu0 0.0
        %907 = vmatprep.subr.mxu0 0.0
        %908 = vmatpush1.msra.mxu0 0.0
        %909 = vmatprep.subr.mxu0 0.0
        %910 = vmatpush1.msra.mxu0 0.0
        %911 = vmatprep.subr.mxu0 0.0
        %912 = vmatpush1.msra.mxu0 0.0
        %913 = vmatprep.subr.mxu0 0.0
        %914 = vmatpush1.msra.mxu0 0.0
        %915 = vmatprep.subr.mxu0 0.0
        %916 = vmatpush1.msra.mxu0 0.0
        %917 = vmatprep.subr.mxu0 0.0
        %918 = vmatpush1.msra.mxu0 0.0
        %919 = vmatprep.subr.mxu0 0.0
        %920 = vmatpush1.msra.mxu0 0.0
        %921 = vmatprep.mubr.f32.mxu0 0.0
        %922 = vmatmul.mubr.f32.gmra.mrb[0].mxu0 %v855
        %v923 = vpop.f32.mrb[0].mxu0
        %v924 = vadd.f32 0.0, %v923
        %v925 = vpop.f32.mrb[0].mxu0
        %926 = vdwg.mxu0
        %v927 = vld [vmem:[#allocation11] sm:$0xff]
        %v928 = vld [vmem:[%s7] sm:$0x1]
        %v930 = vlaneseq
        %v931 = vshrl.u32 %v930, 7
        %v932 = vsub.s32 0, %v931
        %v933 = vrot.slane %v928, %v932
        %vm935 = vcmask 64512
        %v937 = vsel %vm935, %v924, 0
        %939 = vmatprep.subr.mxu0 0.0
        %940 = vmatpush1.msra.mxu0 %v927
        %941 = vmatprep.subr.mxu0 0.0
        %942 = vmatpush1.msra.mxu0 0.0
        %943 = vmatprep.subr.mxu0 0.0
        %944 = vmatpush1.msra.mxu0 0.0
        %945 = vmatprep.subr.mxu0 0.0
        %946 = vmatpush1.msra.mxu0 0.0
        %947 = vmatprep.subr.mxu0 0.0
        %948 = vmatpush1.msra.mxu0 0.0
        %949 = vmatprep.subr.mxu0 0.0
        %950 = vmatpush1.msra.mxu0 0.0
        %951 = vmatprep.subr.mxu0 0.0
        %952 = vmatpush1.msra.mxu0 0.0
        %953 = vmatprep.subr.mxu0 0.0
        %954 = vmatpush1.msra.mxu0 0.0
        %955 = vmatprep.subr.mxu0 0.0
        %956 = vmatpush1.msra.mxu0 0.0
        %957 = vmatprep.subr.mxu0 0.0
        %958 = vmatpush1.msra.mxu0 0.0
        %959 = vmatprep.subr.mxu0 0.0
        %960 = vmatpush1.msra.mxu0 0.0
        %961 = vmatprep.subr.mxu0 0.0
        %962 = vmatpush1.msra.mxu0 0.0
        %963 = vmatprep.subr.mxu0 0.0
        %964 = vmatpush1.msra.mxu0 0.0
        %965 = vmatprep.subr.mxu0 0.0
        %966 = vmatpush1.msra.mxu0 0.0
        %967 = vmatprep.subr.mxu0 0.0
        %968 = vmatpush1.msra.mxu0 0.0
        %969 = vmatprep.subr.mxu0 0.0
        %970 = vmatpush1.msra.mxu0 0.0
        %971 = vmatprep.subr.mxu0 0.0
        %972 = vmatpush1.msra.mxu0 0.0
        %973 = vmatprep.subr.mxu0 0.0
        %974 = vmatpush1.msra.mxu0 0.0
        %975 = vmatprep.subr.mxu0 0.0
        %976 = vmatpush1.msra.mxu0 0.0
        %977 = vmatprep.subr.mxu0 0.0
        %978 = vmatpush1.msra.mxu0 0.0
        %979 = vmatprep.subr.mxu0 0.0
        %980 = vmatpush1.msra.mxu0 0.0
        %981 = vmatprep.subr.mxu0 0.0
        %982 = vmatpush1.msra.mxu0 0.0
        %983 = vmatprep.subr.mxu0 0.0
        %984 = vmatpush1.msra.mxu0 0.0
        %985 = vmatprep.subr.mxu0 0.0
        %986 = vmatpush1.msra.mxu0 0.0
        %987 = vmatprep.subr.mxu0 0.0
        %988 = vmatpush1.msra.mxu0 0.0
        %989 = vmatprep.subr.mxu0 0.0
        %990 = vmatpush1.msra.mxu0 0.0
        %991 = vmatprep.subr.mxu0 0.0
        %992 = vmatpush1.msra.mxu0 0.0
        %993 = vmatprep.subr.mxu0 0.0
        %994 = vmatpush1.msra.mxu0 0.0
        %995 = vmatprep.subr.mxu0 0.0
        %996 = vmatpush1.msra.mxu0 0.0
        %997 = vmatprep.subr.mxu0 0.0
        %998 = vmatpush1.msra.mxu0 0.0
        %999 = vmatprep.subr.mxu0 0.0
        %1000 = vmatpush1.msra.mxu0 0.0
        %1001 = vmatprep.subr.mxu0 0.0
        %1002 = vmatpush1.msra.mxu0 0.0
        %1003 = vmatprep.mubr.f32.mxu0 0.0
        %1004 = vmatmul.mubr.f32.gmra.mrb[0].mxu0 %v937
        %v1005 = vpop.f32.mrb[0].mxu0
        %v1006 = vadd.f32 %v933, %v1005
        %v1007 = vpop.f32.mrb[0].mxu0
        %1008 = vdwg.mxu0
        %vm1009 = vcmp.gt.f32.partialorder %v1006, 20.0
        %v1010 = vmin.f32 %v1006, 20.0
        %v1011 = vmul.f32 %v1010, 1.442695
        %v1012 = vpow.pop %v1011
        %v1013 = vadd.f32 %v1012, 1.0
        %v1014 = vlog2.pop %v1013
        %v1015 = vmul.f32 %v1014, 0.6931472
        %v1016 = vmul.f32 -0.5, %v1012
        %v1017 = vadd.f32 %v1016, 1.0
        %v1018 = vmul.f32 %v1017, %v1012
        %v1019 = vand.u32 2147483647, %v1012
        %vm1020 = vcmp.lt.f32.partialorder %v1019, 0.0004427343
        %v1021 = vsel %vm1020, %v1018, %v1015
        %v1022 = vsel %vm1009, %v1006, %v1021
        %v1023 = vmul.f32 %v1022, %v845
        %1024 = vst.msk [vmem:[#allocation3] sm:$0xff] %vm772, %v1022
        %1025 = vst.msk [vmem:[#allocation4] sm:$0xff] %vm772, %v1023
        %1026 = vrot.lane.b32.xlu0 %v924, 120
        %v1027 = vpop.permute.xlu0 %1026
        %vm1029 = vcmask 130048
        %1030 = vst.msk [vmem:[#allocation5] sm:$0xff] %vm1029, %v1027
        %1031 = vrot.lane.b32.xlu0 %v924, 104
        %v1032 = vpop.permute.xlu0 %1031
        %1034 = vst.msk [vmem:[#allocation6] sm:$0xff] %vm1029, %v1032
        %v1035 = vld [vmem:[#allocation13] sm:$0xff]
        %v1036 = vld [vmem:[#allocation13 + $0x8] sm:$0xff]
        %v1037 = vadd.s32 %v775, 8
        %v1038 = vlaneseq
        %v1039 = vand.u32 %v1038, 127
        %vm1040 = vcmp.eq.s32.totalorder %v775, %v1039
        %vm1041 = vcmp.eq.s32.totalorder %v1037, %v1039
        %v1042 = vsel %vm1040, 1, 0
        %v1043 = vsel %vm1041, 1, 0
        %v1044 = vcvt.s32.f32 %v1042
        %v1045 = vcvt.s32.f32 %v1043
        %v1046 = vld [vmem:[#allocation3] sm:$0x1]
        %v1047 = vld [vmem:[#allocation4] sm:$0x1]
        %v1048 = vld [vmem:[#allocation5] sm:$0x1]
        %v1049 = vld [vmem:[#allocation6] sm:$0x1]
        %v1050 = vlaneseq
        %v1051 = vshrl.u32 %v1050, 7
        %v1052 = vsub.s32 0, %v1051
        %v1053 = vrot.slane %v1048, %v1052
        %v1054 = vmul.f32 %v1053, %v1044
        %v1055 = vmul.f32 %v1053, %v1045
        %v1056 = vsel %vm1029, %v1054, 0.0
        %1057 = vadd.xlane.f32.xlu0 %v1056
        %v1058 = vpop.xlane.xlu0 %1057
        %v1059 = vsel %vm1029, %v1055, 0.0
        %1060 = vadd.xlane.f32.xlu0 %v1059
        %v1061 = vpop.xlane.xlu0 %1060
        %v1062 = vlaneseq
        %v1063 = vshrl.u32 %v1062, 7
        %v1064 = vsub.s32 0, %v1063
        %v1065 = vrot.slane %v1049, %v1064
        %v1066 = vmul.f32 %v1065, %v1044
        %v1067 = vmul.f32 %v1065, %v1045
        %v1068 = vsel %vm1029, %v1066, 0.0
        %1069 = vadd.xlane.f32.xlu0 %v1068
        %v1070 = vpop.xlane.xlu0 %1069
        %v1071 = vsel %vm1029, %v1067, 0.0
        %1072 = vadd.xlane.f32.xlu0 %v1071
        %v1073 = vpop.xlane.xlu0 %1072
        %v1074 = vlaneseq
        %v1075 = vshrl.u32 %v1074, 7
        %v1076 = vsub.s32 0, %v1075
        %v1077 = vrot.slane %v1046, %v1076
        %v1078 = vmul.f32 %v1077, %v1035
        %v1079 = vmul.f32 %v1077, %v1036
        %v1080 = vmul.f32 %v1078, 1.442695
        %v1081 = vpow.pop %v1080
        %v1082 = vmul.f32 %v1079, 1.442695
        %v1083 = vpow.pop %v1082
        %v1084 = vmul.f32 %v1081, 0.0
        %v1085 = vmul.f32 %v1083, 0.0
        %v1086 = vlaneseq
        %v1087 = vshrl.u32 %v1086, 7
        %v1088 = vsub.s32 0, %v1087
        %v1089 = vrot.slane %v1047, %v1088
        %v1090 = vmul.f32 %v1058, %v1089
        %v1091 = vmul.f32 %v1061, %v1089
        %v1092 = vadd.f32 %v1084, %v1090
        %v1093 = vadd.f32 %v1085, %v1091
        %v1094 = vmul.f32 %v1070, %v1092
        %v1095 = vmul.f32 %v1073, %v1093
        %v1096 = vsel %vm772, %v1094, 0.0
        %v1097 = vsel %vm772, %v1095, 0.0
        %v1098 = vadd.f32 %v1096, %v1097
        %v1099 = vrot.slane %v1098, 4
        %v1100 = vadd.f32 %v1098, %v1099
        %v1101 = vrot.slane %v1100, 2
        %v1102 = vadd.f32 %v1100, %v1101
        %v1103 = vrot.slane %v1102, 1
        %v1104 = vadd.f32 %v1102, %v1103
        %s1105 = sadd.s32 0, 1
        %s1106 = scalar_lea.vmem [#allocation3], %s1105
        %v1107 = vld [vmem:[%s1106] sm:$0x1]
        %s1108 = scalar_lea.vmem [#allocation4], %s1105
        %v1109 = vld [vmem:[%s1108] sm:$0x1]
        %s1110 = scalar_lea.vmem [#allocation5], %s1105
        %v1111 = vld [vmem:[%s1110] sm:$0x1]
        %s1112 = scalar_lea.vmem [#allocation6], %s1105
        %v1113 = vld [vmem:[%s1112] sm:$0x1]
        %v1114 = vlaneseq
        %v1115 = vshrl.u32 %v1114, 7
        %v1116 = vsub.s32 0, %v1115
        %v1117 = vrot.slane %v1111, %v1116
        %v1118 = vmul.f32 %v1117, %v1044
        %v1119 = vmul.f32 %v1117, %v1045
        %v1120 = vsel %vm1029, %v1118, 0.0
        %1121 = vadd.xlane.f32.xlu0 %v1120
        %v1122 = vpop.xlane.xlu0 %1121
        %v1123 = vsel %vm1029, %v1119, 0.0
        %1124 = vadd.xlane.f32.xlu0 %v1123
        %v1125 = vpop.xlane.xlu0 %1124
        %v1126 = vlaneseq
        %v1127 = vshrl.u32 %v1126, 7
        %v1128 = vsub.s32 0, %v1127
        %v1129 = vrot.slane %v1113, %v1128
        %v1130 = vmul.f32 %v1129, %v1044
        %v1131 = vmul.f32 %v1129, %v1045
        %v1132 = vsel %vm1029, %v1130, 0.0
        %1133 = vadd.xlane.f32.xlu0 %v1132
        %v1134 = vpop.xlane.xlu0 %1133
        %v1135 = vsel %vm1029, %v1131, 0.0
        %1136 = vadd.xlane.f32.xlu0 %v1135
        %v1137 = vpop.xlane.xlu0 %1136
        %v1138 = vlaneseq
        %v1139 = vshrl.u32 %v1138, 7
        %v1140 = vsub.s32 0, %v1139
        %v1141 = vrot.slane %v1107, %v1140
        %v1142 = vmul.f32 %v1141, %v1035
        %v1143 = vmul.f32 %v1141, %v1036
        %v1144 = vmul.f32 %v1142, 1.442695
        %v1145 = vpow.pop %v1144
        %v1146 = vmul.f32 %v1143, 1.442695
        %v1147 = vpow.pop %v1146
        %v1148 = vmul.f32 %v1145, %v1092
        %v1149 = vmul.f32 %v1147, %v1093
        %v1150 = vlaneseq
        %v1151 = vshrl.u32 %v1150, 7
        %v1152 = vsub.s32 0, %v1151
        %v1153 = vrot.slane %v1109, %v1152
        %v1154 = vmul.f32 %v1122, %v1153
        %v1155 = vmul.f32 %v1125, %v1153
        %v1156 = vadd.f32 %v1148, %v1154
        %v1157 = vadd.f32 %v1149, %v1155
        %v1158 = vmul.f32 %v1134, %v1156
        %v1159 = vmul.f32 %v1137, %v1157
        %v1160 = vsel %vm772, %v1158, 0.0
        %v1161 = vsel %vm772, %v1159, 0.0
        %v1162 = vadd.f32 %v1160, %v1161
        %v1163 = vrot.slane %v1162, 4
        %v1164 = vadd.f32 %v1162, %v1163
        %v1165 = vrot.slane %v1164, 2
        %v1166 = vadd.f32 %v1164, %v1165
        %v1167 = vrot.slane %v1166, 1
        %v1168 = vadd.f32 %v1166, %v1167
        %s1169 = sadd.s32 0, 2
        %s1170 = scalar_lea.vmem [#allocation3], %s1169
        %v1171 = vld [vmem:[%s1170] sm:$0x1]
        %s1172 = scalar_lea.vmem [#allocation4], %s1169
        %v1173 = vld [vmem:[%s1172] sm:$0x1]
        %s1174 = scalar_lea.vmem [#allocation5], %s1169
        %v1175 = vld [vmem:[%s1174] sm:$0x1]
        %s1176 = scalar_lea.vmem [#allocation6], %s1169
        %v1177 = vld [vmem:[%s1176] sm:$0x1]
        %v1178 = vlaneseq
        %v1179 = vshrl.u32 %v1178, 7
        %v1180 = vsub.s32 0, %v1179
        %v1181 = vrot.slane %v1175, %v1180
        %v1182 = vmul.f32 %v1181, %v1044
        %v1183 = vmul.f32 %v1181, %v1045
        %v1184 = vsel %vm1029, %v1182, 0.0
        %1185 = vadd.xlane.f32.xlu0 %v1184
        %v1186 = vpop.xlane.xlu0 %1185
        %v1187 = vsel %vm1029, %v1183, 0.0
        %1188 = vadd.xlane.f32.xlu0 %v1187
        %v1189 = vpop.xlane.xlu0 %1188
        %v1190 = vlaneseq
        %v1191 = vshrl.u32 %v1190, 7
        %v1192 = vsub.s32 0, %v1191
        %v1193 = vrot.slane %v1177, %v1192
        %v1194 = vmul.f32 %v1193, %v1044
        %v1195 = vmul.f32 %v1193, %v1045
        %v1196 = vsel %vm1029, %v1194, 0.0
        %1197 = vadd.xlane.f32.xlu0 %v1196
        %v1198 = vpop.xlane.xlu0 %1197
        %v1199 = vsel %vm1029, %v1195, 0.0
        %1200 = vadd.xlane.f32.xlu0 %v1199
        %v1201 = vpop.xlane.xlu0 %1200
        %v1202 = vlaneseq
        %v1203 = vshrl.u32 %v1202, 7
        %v1204 = vsub.s32 0, %v1203
        %v1205 = vrot.slane %v1171, %v1204
        %v1206 = vmul.f32 %v1205, %v1035
        %v1207 = vmul.f32 %v1205, %v1036
        %v1208 = vmul.f32 %v1206, 1.442695
        %v1209 = vpow.pop %v1208
        %v1210 = vmul.f32 %v1207, 1.442695
        %v1211 = vpow.pop %v1210
        %v1212 = vmul.f32 %v1209, %v1156
        %v1213 = vmul.f32 %v1211, %v1157
        %v1214 = vlaneseq
        %v1215 = vshrl.u32 %v1214, 7
        %v1216 = vsub.s32 0, %v1215
        %v1217 = vrot.slane %v1173, %v1216
        %v1218 = vmul.f32 %v1186, %v1217
        %v1219 = vmul.f32 %v1189, %v1217
        %v1220 = vadd.f32 %v1212, %v1218
        %v1221 = vadd.f32 %v1213, %v1219
        %v1222 = vmul.f32 %v1198, %v1220
        %v1223 = vmul.f32 %v1201, %v1221
        %v1224 = vsel %vm772, %v1222, 0.0
        %v1225 = vsel %vm772, %v1223, 0.0
        %v1226 = vadd.f32 %v1224, %v1225
        %v1227 = vrot.slane %v1226, 4
        %v1228 = vadd.f32 %v1226, %v1227
        %v1229 = vrot.slane %v1228, 2
        %v1230 = vadd.f32 %v1228, %v1229
        %v1231 = vrot.slane %v1230, 1
        %v1232 = vadd.f32 %v1230, %v1231
        %s1233 = sadd.s32 0, 3
        %s1234 = scalar_lea.vmem [#allocation3], %s1233
        %v1235 = vld [vmem:[%s1234] sm:$0x1]
        %s1236 = scalar_lea.vmem [#allocation4], %s1233
        %v1237 = vld [vmem:[%s1236] sm:$0x1]
        %s1238 = scalar_lea.vmem [#allocation5], %s1233
        %v1239 = vld [vmem:[%s1238] sm:$0x1]
        %s1240 = scalar_lea.vmem [#allocation6], %s1233
        %v1241 = vld [vmem:[%s1240] sm:$0x1]
        %v1242 = vlaneseq
        %v1243 = vshrl.u32 %v1242, 7
        %v1244 = vsub.s32 0, %v1243
        %v1245 = vrot.slane %v1239, %v1244
        %v1246 = vmul.f32 %v1245, %v1044
        %v1247 = vmul.f32 %v1245, %v1045
        %v1248 = vsel %vm1029, %v1246, 0.0
        %1249 = vadd.xlane.f32.xlu0 %v1248
        %v1250 = vpop.xlane.xlu0 %1249
        %v1251 = vsel %vm1029, %v1247, 0.0
        %1252 = vadd.xlane.f32.xlu0 %v1251
        %v1253 = vpop.xlane.xlu0 %1252
        %v1254 = vlaneseq
        %v1255 = vshrl.u32 %v1254, 7
        %v1256 = vsub.s32 0, %v1255
        %v1257 = vrot.slane %v1241, %v1256
        %v1258 = vmul.f32 %v1257, %v1044
        %v1259 = vmul.f32 %v1257, %v1045
        %v1260 = vsel %vm1029, %v1258, 0.0
        %1261 = vadd.xlane.f32.xlu0 %v1260
        %v1262 = vpop.xlane.xlu0 %1261
        %v1263 = vsel %vm1029, %v1259, 0.0
        %1264 = vadd.xlane.f32.xlu0 %v1263
        %v1265 = vpop.xlane.xlu0 %1264
        %v1266 = vlaneseq
        %v1267 = vshrl.u32 %v1266, 7
        %v1268 = vsub.s32 0, %v1267
        %v1269 = vrot.slane %v1235, %v1268
        %v1270 = vmul.f32 %v1269, %v1035
        %v1271 = vmul.f32 %v1269, %v1036
        %v1272 = vmul.f32 %v1270, 1.442695
        %v1273 = vpow.pop %v1272
        %v1274 = vmul.f32 %v1271, 1.442695
        %v1275 = vpow.pop %v1274
        %v1276 = vmul.f32 %v1273, %v1220
        %v1277 = vmul.f32 %v1275, %v1221
        %v1278 = vlaneseq
        %v1279 = vshrl.u32 %v1278, 7
        %v1280 = vsub.s32 0, %v1279
        %v1281 = vrot.slane %v1237, %v1280
        %v1282 = vmul.f32 %v1250, %v1281
        %v1283 = vmul.f32 %v1253, %v1281
        %v1284 = vadd.f32 %v1276, %v1282
        %v1285 = vadd.f32 %v1277, %v1283
        %v1286 = vmul.f32 %v1262, %v1284
        %v1287 = vmul.f32 %v1265, %v1285
        %v1288 = vsel %vm772, %v1286, 0.0
        %v1289 = vsel %vm772, %v1287, 0.0
        %v1290 = vadd.f32 %v1288, %v1289
        %v1291 = vrot.slane %v1290, 4
        %v1292 = vadd.f32 %v1290, %v1291
        %v1293 = vrot.slane %v1292, 2
        %v1294 = vadd.f32 %v1292, %v1293
        %v1295 = vrot.slane %v1294, 1
        %v1296 = vadd.f32 %v1294, %v1295
        %s1297 = sadd.s32 0, 4
        %s1298 = scalar_lea.vmem [#allocation3], %s1297
        %v1299 = vld [vmem:[%s1298] sm:$0x1]
        %s1300 = scalar_lea.vmem [#allocation4], %s1297
        %v1301 = vld [vmem:[%s1300] sm:$0x1]
        %s1302 = scalar_lea.vmem [#allocation5], %s1297
        %v1303 = vld [vmem:[%s1302] sm:$0x1]
        %s1304 = scalar_lea.vmem [#allocation6], %s1297
        %v1305 = vld [vmem:[%s1304] sm:$0x1]
        %v1306 = vlaneseq
        %v1307 = vshrl.u32 %v1306, 7
        %v1308 = vsub.s32 0, %v1307
        %v1309 = vrot.slane %v1303, %v1308
        %v1310 = vmul.f32 %v1309, %v1044
        %v1311 = vmul.f32 %v1309, %v1045
        %v1312 = vsel %vm1029, %v1310, 0.0
        %1313 = vadd.xlane.f32.xlu0 %v1312
        %v1314 = vpop.xlane.xlu0 %1313
        %v1315 = vsel %vm1029, %v1311, 0.0
        %1316 = vadd.xlane.f32.xlu0 %v1315
        %v1317 = vpop.xlane.xlu0 %1316
        %v1318 = vlaneseq
        %v1319 = vshrl.u32 %v1318, 7
        %v1320 = vsub.s32 0, %v1319
        %v1321 = vrot.slane %v1305, %v1320
        %v1322 = vmul.f32 %v1321, %v1044
        %v1323 = vmul.f32 %v1321, %v1045
        %v1324 = vsel %vm1029, %v1322, 0.0
        %1325 = vadd.xlane.f32.xlu0 %v1324
        %v1326 = vpop.xlane.xlu0 %1325
        %v1327 = vsel %vm1029, %v1323, 0.0
        %1328 = vadd.xlane.f32.xlu0 %v1327
        %v1329 = vpop.xlane.xlu0 %1328
        %v1330 = vlaneseq
        %v1331 = vshrl.u32 %v1330, 7
        %v1332 = vsub.s32 0, %v1331
        %v1333 = vrot.slane %v1299, %v1332
        %v1334 = vmul.f32 %v1333, %v1035
        %v1335 = vmul.f32 %v1333, %v1036
        %v1336 = vmul.f32 %v1334, 1.442695
        %v1337 = vpow.pop %v1336
        %v1338 = vmul.f32 %v1335, 1.442695
        %v1339 = vpow.pop %v1338
        %v1340 = vmul.f32 %v1337, %v1284
        %v1341 = vmul.f32 %v1339, %v1285
        %v1342 = vlaneseq
        %v1343 = vshrl.u32 %v1342, 7
        %v1344 = vsub.s32 0, %v1343
        %v1345 = vrot.slane %v1301, %v1344
        %v1346 = vmul.f32 %v1314, %v1345
        %v1347 = vmul.f32 %v1317, %v1345
        %v1348 = vadd.f32 %v1340, %v1346
        %v1349 = vadd.f32 %v1341, %v1347
        %v1350 = vmul.f32 %v1326, %v1348
        %v1351 = vmul.f32 %v1329, %v1349
        %v1352 = vsel %vm772, %v1350, 0.0
        %v1353 = vsel %vm772, %v1351, 0.0
        %v1354 = vadd.f32 %v1352, %v1353
        %v1355 = vrot.slane %v1354, 4
        %v1356 = vadd.f32 %v1354, %v1355
        %v1357 = vrot.slane %v1356, 2
        %v1358 = vadd.f32 %v1356, %v1357
        %v1359 = vrot.slane %v1358, 1
        %v1360 = vadd.f32 %v1358, %v1359
        %s1361 = sadd.s32 0, 5
        %s1362 = scalar_lea.vmem [#allocation3], %s1361
        %v1363 = vld [vmem:[%s1362] sm:$0x1]
        %s1364 = scalar_lea.vmem [#allocation4], %s1361
        %v1365 = vld [vmem:[%s1364] sm:$0x1]
        %s1366 = scalar_lea.vmem [#allocation5], %s1361
        %v1367 = vld [vmem:[%s1366] sm:$0x1]
        %s1368 = scalar_lea.vmem [#allocation6], %s1361
        %v1369 = vld [vmem:[%s1368] sm:$0x1]
        %v1370 = vlaneseq
        %v1371 = vshrl.u32 %v1370, 7
        %v1372 = vsub.s32 0, %v1371
        %v1373 = vrot.slane %v1367, %v1372
        %v1374 = vmul.f32 %v1373, %v1044
        %v1375 = vmul.f32 %v1373, %v1045
        %v1376 = vsel %vm1029, %v1374, 0.0
        %1377 = vadd.xlane.f32.xlu0 %v1376
        %v1378 = vpop.xlane.xlu0 %1377
        %v1379 = vsel %vm1029, %v1375, 0.0
        %1380 = vadd.xlane.f32.xlu0 %v1379
        %v1381 = vpop.xlane.xlu0 %1380
        %v1382 = vlaneseq
        %v1383 = vshrl.u32 %v1382, 7
        %v1384 = vsub.s32 0, %v1383
        %v1385 = vrot.slane %v1369, %v1384
        %v1386 = vmul.f32 %v1385, %v1044
        %v1387 = vmul.f32 %v1385, %v1045
        %v1388 = vsel %vm1029, %v1386, 0.0
        %1389 = vadd.xlane.f32.xlu0 %v1388
        %v1390 = vpop.xlane.xlu0 %1389
        %v1391 = vsel %vm1029, %v1387, 0.0
        %1392 = vadd.xlane.f32.xlu0 %v1391
        %v1393 = vpop.xlane.xlu0 %1392
        %v1394 = vlaneseq
        %v1395 = vshrl.u32 %v1394, 7
        %v1396 = vsub.s32 0, %v1395
        %v1397 = vrot.slane %v1363, %v1396
        %v1398 = vmul.f32 %v1397, %v1035
        %v1399 = vmul.f32 %v1397, %v1036
        %v1400 = vmul.f32 %v1398, 1.442695
        %v1401 = vpow.pop %v1400
        %v1402 = vmul.f32 %v1399, 1.442695
        %v1403 = vpow.pop %v1402
        %v1404 = vmul.f32 %v1401, %v1348
        %v1405 = vmul.f32 %v1403, %v1349
        %v1406 = vlaneseq
        %v1407 = vshrl.u32 %v1406, 7
        %v1408 = vsub.s32 0, %v1407
        %v1409 = vrot.slane %v1365, %v1408
        %v1410 = vmul.f32 %v1378, %v1409
        %v1411 = vmul.f32 %v1381, %v1409
        %v1412 = vadd.f32 %v1404, %v1410
        %v1413 = vadd.f32 %v1405, %v1411
        %v1414 = vmul.f32 %v1390, %v1412
        %v1415 = vmul.f32 %v1393, %v1413
        %v1416 = vsel %vm772, %v1414, 0.0
        %v1417 = vsel %vm772, %v1415, 0.0
        %v1418 = vadd.f32 %v1416, %v1417
        %v1419 = vrot.slane %v1418, 4
        %v1420 = vadd.f32 %v1418, %v1419
        %v1421 = vrot.slane %v1420, 2
        %v1422 = vadd.f32 %v1420, %v1421
        %v1423 = vrot.slane %v1422, 1
        %v1424 = vadd.f32 %v1422, %v1423
        %s1425 = sadd.s32 0, 6
        %s1426 = scalar_lea.vmem [#allocation3], %s1425
        %v1427 = vld [vmem:[%s1426] sm:$0x1]
        %s1428 = scalar_lea.vmem [#allocation4], %s1425
        %v1429 = vld [vmem:[%s1428] sm:$0x1]
        %s1430 = scalar_lea.vmem [#allocation5], %s1425
        %v1431 = vld [vmem:[%s1430] sm:$0x1]
        %s1432 = scalar_lea.vmem [#allocation6], %s1425
        %v1433 = vld [vmem:[%s1432] sm:$0x1]
        %v1434 = vlaneseq
        %v1435 = vshrl.u32 %v1434, 7
        %v1436 = vsub.s32 0, %v1435
        %v1437 = vrot.slane %v1431, %v1436
        %v1438 = vmul.f32 %v1437, %v1044
        %v1439 = vmul.f32 %v1437, %v1045
        %v1440 = vsel %vm1029, %v1438, 0.0
        %1441 = vadd.xlane.f32.xlu0 %v1440
        %v1442 = vpop.xlane.xlu0 %1441
        %v1443 = vsel %vm1029, %v1439, 0.0
        %1444 = vadd.xlane.f32.xlu0 %v1443
        %v1445 = vpop.xlane.xlu0 %1444
        %v1446 = vlaneseq
        %v1447 = vshrl.u32 %v1446, 7
        %v1448 = vsub.s32 0, %v1447
        %v1449 = vrot.slane %v1433, %v1448
        %v1450 = vmul.f32 %v1449, %v1044
        %v1451 = vmul.f32 %v1449, %v1045
        %v1452 = vsel %vm1029, %v1450, 0.0
        %1453 = vadd.xlane.f32.xlu0 %v1452
        %v1454 = vpop.xlane.xlu0 %1453
        %v1455 = vsel %vm1029, %v1451, 0.0
        %1456 = vadd.xlane.f32.xlu0 %v1455
        %v1457 = vpop.xlane.xlu0 %1456
        %v1458 = vlaneseq
        %v1459 = vshrl.u32 %v1458, 7
        %v1460 = vsub.s32 0, %v1459
        %v1461 = vrot.slane %v1427, %v1460
        %v1462 = vmul.f32 %v1461, %v1035
        %v1463 = vmul.f32 %v1461, %v1036
        %v1464 = vmul.f32 %v1462, 1.442695
        %v1465 = vpow.pop %v1464
        %v1466 = vmul.f32 %v1463, 1.442695
        %v1467 = vpow.pop %v1466
        %v1468 = vmul.f32 %v1465, %v1412
        %v1469 = vmul.f32 %v1467, %v1413
        %v1470 = vlaneseq
        %v1471 = vshrl.u32 %v1470, 7
        %v1472 = vsub.s32 0, %v1471
        %v1473 = vrot.slane %v1429, %v1472
        %v1474 = vmul.f32 %v1442, %v1473
        %v1475 = vmul.f32 %v1445, %v1473
        %v1476 = vadd.f32 %v1468, %v1474
        %v1477 = vadd.f32 %v1469, %v1475
        %v1478 = vmul.f32 %v1454, %v1476
        %v1479 = vmul.f32 %v1457, %v1477
        %v1480 = vsel %vm772, %v1478, 0.0
        %v1481 = vsel %vm772, %v1479, 0.0
        %v1482 = vadd.f32 %v1480, %v1481
        %v1483 = vrot.slane %v1482, 4
        %v1484 = vadd.f32 %v1482, %v1483
        %v1485 = vrot.slane %v1484, 2
        %v1486 = vadd.f32 %v1484, %v1485
        %v1487 = vrot.slane %v1486, 1
        %v1488 = vadd.f32 %v1486, %v1487
        %s1489 = sadd.s32 0, 7
        %s1490 = scalar_lea.vmem [#allocation3], %s1489
        %v1491 = vld [vmem:[%s1490] sm:$0x1]
        %s1492 = scalar_lea.vmem [#allocation4], %s1489
        %v1493 = vld [vmem:[%s1492] sm:$0x1]
        %s1494 = scalar_lea.vmem [#allocation5], %s1489
        %v1495 = vld [vmem:[%s1494] sm:$0x1]
        %s1496 = scalar_lea.vmem [#allocation6], %s1489
        %v1497 = vld [vmem:[%s1496] sm:$0x1]
        %v1498 = vlaneseq
        %v1499 = vshrl.u32 %v1498, 7
        %v1500 = vsub.s32 0, %v1499
        %v1501 = vrot.slane %v1495, %v1500
        %v1502 = vmul.f32 %v1501, %v1044
        %v1503 = vmul.f32 %v1501, %v1045
        %v1504 = vsel %vm1029, %v1502, 0.0
        %1505 = vadd.xlane.f32.xlu0 %v1504
        %v1506 = vpop.xlane.xlu0 %1505
        %v1507 = vsel %vm1029, %v1503, 0.0
        %1508 = vadd.xlane.f32.xlu0 %v1507
        %v1509 = vpop.xlane.xlu0 %1508
        %v1510 = vlaneseq
        %v1511 = vshrl.u32 %v1510, 7
        %v1512 = vsub.s32 0, %v1511
        %v1513 = vrot.slane %v1497, %v1512
        %v1514 = vmul.f32 %v1513, %v1044
        %v1515 = vmul.f32 %v1513, %v1045
        %v1516 = vsel %vm1029, %v1514, 0.0
        %1517 = vadd.xlane.f32.xlu0 %v1516
        %v1518 = vpop.xlane.xlu0 %1517
        %v1519 = vsel %vm1029, %v1515, 0.0
        %1520 = vadd.xlane.f32.xlu0 %v1519
        %v1521 = vpop.xlane.xlu0 %1520
        %v1522 = vlaneseq
        %v1523 = vshrl.u32 %v1522, 7
        %v1524 = vsub.s32 0, %v1523
        %v1525 = vrot.slane %v1491, %v1524
        %v1526 = vmul.f32 %v1525, %v1035
        %v1527 = vmul.f32 %v1525, %v1036
        %v1528 = vmul.f32 %v1526, 1.442695
        %v1529 = vpow.pop %v1528
        %v1530 = vmul.f32 %v1527, 1.442695
        %v1531 = vpow.pop %v1530
        %v1532 = vmul.f32 %v1529, %v1476
        %v1533 = vmul.f32 %v1531, %v1477
        %v1534 = vlaneseq
        %v1535 = vshrl.u32 %v1534, 7
        %v1536 = vsub.s32 0, %v1535
        %v1537 = vrot.slane %v1493, %v1536
        %v1538 = vmul.f32 %v1506, %v1537
        %v1539 = vmul.f32 %v1509, %v1537
        %v1540 = vadd.f32 %v1532, %v1538
        %v1541 = vadd.f32 %v1533, %v1539
        %v1542 = vmul.f32 %v1518, %v1540
        %v1543 = vmul.f32 %v1521, %v1541
        %v1544 = vsel %vm772, %v1542, 0.0
        %v1545 = vsel %vm772, %v1543, 0.0
        %v1546 = vadd.f32 %v1544, %v1545
        %v1547 = vrot.slane %v1546, 4
        %v1548 = vadd.f32 %v1546, %v1547
        %v1549 = vrot.slane %v1548, 2
        %v1550 = vadd.f32 %v1548, %v1549
        %v1551 = vrot.slane %v1550, 1
        %v1552 = vadd.f32 %v1550, %v1551
        %vm1553 = vcmask 1040384
        %v1554 = vsel %vm1553, %v1104, %v1168
        %vm1555 = vcmask 1041408
        %v1556 = vsel %vm1555, %v1554, %v1232
        %vm1557 = vcmask 1042432
        %v1558 = vsel %vm1557, %v1556, %v1296
        %vm1559 = vcmask 1043456
        %v1560 = vsel %vm1559, %v1558, %v1360
        %vm1561 = vcmask 1044480
        %v1562 = vsel %vm1561, %v1560, %v1424
        %vm1563 = vcmask 1045504
        %v1564 = vsel %vm1563, %v1562, %v1488
        %vm1565 = vcmask 1046528
        %v1566 = vsel %vm1565, %v1564, %v1552
        %1567 = vst.msk [vmem:[#allocation7] sm:$0xff] %vm772, %v1566
        %v1568 = vld [vmem:[#allocation7] sm:$0xff]
        %v1569 = vld [vmem:[#allocation14] sm:$0x1]
        %v1571 = vlaneseq
        %v1572 = vshrl.u32 %v1571, 7
        %v1573 = vsub.s32 0, %v1572
        %v1574 = vrot.slane %v1569, %v1573
        %v1576 = vmul.f32 %v1574, %v845
        %v1577 = vadd.f32 %v1568, %v1576
        %v1578 = vxor.u32 %v765, 2147483648
        %v1579 = vmul.f32 %v1578, 1.442695
        %v1580 = vpow.pop %v1579
        %v1581 = vadd.f32 %v1580, 1.0
        %v1582 = vrcp.pop %v1581
        %v1583 = vmul.f32 1.0, %v1582
        %v1584 = vmul.f32 %v765, %v1583
        %v1585 = vmul.f32 %v1577, %v1584
        %v1586 = vpack.c.bf16 %v1585, %v1585
        %v1587 = vld [vmem:[%s10] sm:$0xf]
        %v1588 = vld [vmem:[%s10 + $0x4] sm:$0xf]
        %v1589 = vld [vmem:[%s10 + $0x8] sm:$0xf]
        %v1590 = vld [vmem:[%s10 + $0xc] sm:$0xf]
        %v1591 = vld [vmem:[%s10 + $0x10] sm:$0xf]
        %v1592 = vld [vmem:[%s10 + $0x14] sm:$0xf]
        %v1593 = vld [vmem:[%s10 + $0x18] sm:$0xf]
        %v1594 = vld [vmem:[%s10 + $0x1c] sm:$0xf]
        %v1603 = vunpack.c.l.b16 %v1587
        %v1604 = vunpack.c.l.b16 %v1588
        %v1605 = vunpack.c.l.b16 %v1589
        %v1606 = vunpack.c.l.b16 %v1590
        %v1607 = vunpack.c.l.b16 %v1591
        %v1608 = vunpack.c.l.b16 %v1592
        %v1609 = vunpack.c.l.b16 %v1593
        %v1610 = vunpack.c.l.b16 %v1594
        %v1611 = vpack.c.b16 %v1604, %v1603
        %v1612 = vpack.c.b16 %v1606, %v1605
        %v1613 = vpack.c.b16 %v1608, %v1607
        %v1614 = vpack.c.b16 %v1610, %v1609
        %v1620 = vsel %vm772, %v1586, 0
        %1622 = vmatprep.subr.bf16.mxu0 0
        %1623 = vmatpush1.bf16.msra.mxu0 %v1611
        %1624 = vmatprep.subr.bf16.mxu0 0
        %1625 = vmatpush1.bf16.msra.mxu0 %v1612
        %1626 = vmatprep.subr.bf16.mxu0 0
        %1627 = vmatpush1.bf16.msra.mxu0 %v1613
        %1628 = vmatprep.subr.bf16.mxu0 0
        %1629 = vmatpush1.bf16.msra.mxu0 %v1614
        %1630 = vmatprep.subr.bf16.mxu0 0
        %1631 = vmatpush1.bf16.msra.mxu0 0
        %1632 = vmatprep.subr.bf16.mxu0 0
        %1633 = vmatpush1.bf16.msra.mxu0 0
        %1634 = vmatprep.subr.bf16.mxu0 0
        %1635 = vmatpush1.bf16.msra.mxu0 0
        %1636 = vmatprep.subr.bf16.mxu0 0
        %1637 = vmatpush1.bf16.msra.mxu0 0
        %1638 = vmatprep.subr.bf16.mxu0 0
        %1639 = vmatpush1.bf16.msra.mxu0 0
        %1640 = vmatprep.subr.bf16.mxu0 0
        %1641 = vmatpush1.bf16.msra.mxu0 0
        %1642 = vmatprep.subr.bf16.mxu0 0
        %1643 = vmatpush1.bf16.msra.mxu0 0
        %1644 = vmatprep.subr.bf16.mxu0 0
        %1645 = vmatpush1.bf16.msra.mxu0 0
        %1646 = vmatprep.subr.bf16.mxu0 0
        %1647 = vmatpush1.bf16.msra.mxu0 0
        %1648 = vmatprep.subr.bf16.mxu0 0
        %1649 = vmatpush1.bf16.msra.mxu0 0
        %1650 = vmatprep.subr.bf16.mxu0 0
        %1651 = vmatpush1.bf16.msra.mxu0 0
        %1652 = vmatprep.subr.bf16.mxu0 0
        %1653 = vmatpush1.bf16.msra.mxu0 0
        %1654 = vmatprep.mubr.bf16.mxu0 0
        %1655 = vmatmul.mubr.bf16.gmra.mrb[0].mxu0 %v1620
        %v1656 = vpop.f32.mrb[0].mxu0
        %v1657 = vadd.f32 %v652, %v1656
        %v1658 = vpop.f32.mrb[0].mxu0
        %v1659 = vpop.f32.mrb[0].mxu0
        %v1660 = vpop.f32.mrb[0].mxu0
        %1661 = vdwg.mxu0
        %v1662 = vld [vmem:[%s11] sm:$0x1]
        %v1663 = vld [vmem:[%s12] sm:$0x1]
        %v1664 = vsel %vm670, %v1657, 0.0
        %1665 = vadd.xlane.f32.xlu0 %v1664
        %v1666 = vpop.xlane.xlu0 %1665
        %v1667 = vrcp.pop 32.0
        %v1668 = vmul.f32 %v1666, %v1667
        %v1669 = vsub.f32 %v1657, %v1668
        %v1670 = vmul.f32 %v1669, %v1669
        %v1671 = vsel %vm670, %v1670, 0.0
        %1672 = vadd.xlane.f32.xlu0 %v1671
        %v1673 = vpop.xlane.xlu0 %1672
        %v1674 = vmul.f32 %v1673, %v1667
        %v1675 = vadd.f32 %v1674, 1e-12
        %v1676 = vrsqrt.pop %v1675
        %v1677 = vmul.f32 %v1669, %v1676
        %v1679 = vlaneseq
        %v1680 = vshrl.u32 %v1679, 7
        %v1681 = vsub.s32 0, %v1680
        %v1682 = vrot.slane %v1662, %v1681
        %v1684 = vmul.f32 %v1677, %v1682
        %v1686 = vlaneseq
        %v1687 = vshrl.u32 %v1686, 7
        %v1688 = vsub.s32 0, %v1687
        %v1689 = vrot.slane %v1663, %v1688
        %v1691 = vadd.f32 %v1684, %v1689
        %v1692 = vpack.c.bf16 %v1691, %v1691
        %v1693 = vld [vmem:[%s13] sm:$0xf]
        %v1694 = vld [vmem:[%s13 + $0x4] sm:$0xf]
        %v1695 = vld [vmem:[%s13 + $0x8] sm:$0xf]
        %v1696 = vld [vmem:[%s13 + $0xc] sm:$0xf]
        %v1697 = vld [vmem:[%s14] sm:$0x1]
        %v1699 = vlaneseq
        %v1700 = vshrl.u32 %v1699, 7
        %v1701 = vsub.s32 0, %v1700
        %v1702 = vrot.slane %v1697, %v1701
        %v1708 = vunpack.c.l.b16 %v1693
        %v1709 = vunpack.c.l.b16 %v1694
        %v1710 = vunpack.c.l.b16 %v1695
        %v1711 = vunpack.c.l.b16 %v1696
        %v1712 = vpack.c.b16 %v1709, %v1708
        %v1713 = vpack.c.b16 %v1711, %v1710
        %v1717 = vsel %vm670, %v1692, 0
        %1719 = vmatprep.subr.bf16.mxu0 0
        %1720 = vmatpush1.bf16.msra.mxu0 %v1712
        %1721 = vmatprep.subr.bf16.mxu0 0
        %1722 = vmatpush1.bf16.msra.mxu0 %v1713
        %1723 = vmatprep.subr.bf16.mxu0 0
        %1724 = vmatpush1.bf16.msra.mxu0 0
        %1725 = vmatprep.subr.bf16.mxu0 0
        %1726 = vmatpush1.bf16.msra.mxu0 0
        %1727 = vmatprep.subr.bf16.mxu0 0
        %1728 = vmatpush1.bf16.msra.mxu0 0
        %1729 = vmatprep.subr.bf16.mxu0 0
        %1730 = vmatpush1.bf16.msra.mxu0 0
        %1731 = vmatprep.subr.bf16.mxu0 0
        %1732 = vmatpush1.bf16.msra.mxu0 0
        %1733 = vmatprep.subr.bf16.mxu0 0
        %1734 = vmatpush1.bf16.msra.mxu0 0
        %1735 = vmatprep.subr.bf16.mxu0 0
        %1736 = vmatpush1.bf16.msra.mxu0 0
        %1737 = vmatprep.subr.bf16.mxu0 0
        %1738 = vmatpush1.bf16.msra.mxu0 0
        %1739 = vmatprep.subr.bf16.mxu0 0
        %1740 = vmatpush1.bf16.msra.mxu0 0
        %1741 = vmatprep.subr.bf16.mxu0 0
        %1742 = vmatpush1.bf16.msra.mxu0 0
        %1743 = vmatprep.subr.bf16.mxu0 0
        %1744 = vmatpush1.bf16.msra.mxu0 0
        %1745 = vmatprep.subr.bf16.mxu0 0
        %1746 = vmatpush1.bf16.msra.mxu0 0
        %1747 = vmatprep.subr.bf16.mxu0 0
        %1748 = vmatpush1.bf16.msra.mxu0 0
        %1749 = vmatprep.subr.bf16.mxu0 0
        %1750 = vmatpush1.bf16.msra.mxu0 0
        %1751 = vmatprep.mubr.bf16.mxu0 0
        %1752 = vmatmul.mubr.bf16.gmra.mrb[0].mxu0 %v1717
        %v1753 = vpop.f32.mrb[0].mxu0
        %v1754 = vadd.f32 %v1702, %v1753
        %v1755 = vpop.f32.mrb[0].mxu0
        %v1756 = vpop.f32.mrb[0].mxu0
        %v1757 = vpop.f32.mrb[0].mxu0
        %1758 = vdwg.mxu0
        %v1759 = vmul.f32 %v1754, 0.5
        %v1760 = vmul.f32 %v1754, 0.70710677
        %v1761 = verf.f32.pop %v1760
        %v1762 = vadd.f32 %v1761, 1.0
        %v1763 = vmul.f32 %v1759, %v1762
        %v1764 = vpack.c.bf16 %v1763, %v1763
        %v1765 = vld [vmem:[%s15] sm:$0xf]
        %v1766 = vld [vmem:[%s15 + $0x4] sm:$0xf]
        %v1767 = vld [vmem:[%s15 + $0x8] sm:$0xf]
        %v1768 = vld [vmem:[%s15 + $0xc] sm:$0xf]
        %v1769 = vld [vmem:[%s15 + $0x10] sm:$0xf]
        %v1770 = vld [vmem:[%s15 + $0x14] sm:$0xf]
        %v1771 = vld [vmem:[%s15 + $0x18] sm:$0xf]
        %v1772 = vld [vmem:[%s15 + $0x1c] sm:$0xf]
        %v1773 = vld [vmem:[%s15 + $0x20] sm:$0xf]
        %v1774 = vld [vmem:[%s15 + $0x24] sm:$0xf]
        %v1775 = vld [vmem:[%s15 + $0x28] sm:$0xf]
        %v1776 = vld [vmem:[%s15 + $0x2c] sm:$0xf]
        %v1777 = vld [vmem:[%s15 + $0x30] sm:$0xf]
        %v1778 = vld [vmem:[%s15 + $0x34] sm:$0xf]
        %v1779 = vld [vmem:[%s15 + $0x38] sm:$0xf]
        %v1780 = vld [vmem:[%s15 + $0x3c] sm:$0xf]
        %v1781 = vld [vmem:[%s16] sm:$0x1]
        %v1783 = vlaneseq
        %v1784 = vshrl.u32 %v1783, 7
        %v1785 = vsub.s32 0, %v1784
        %v1786 = vrot.slane %v1781, %v1785
        %v1804 = vunpack.c.l.b16 %v1765
        %v1805 = vunpack.c.l.b16 %v1766
        %v1806 = vunpack.c.l.b16 %v1767
        %v1807 = vunpack.c.l.b16 %v1768
        %v1808 = vunpack.c.l.b16 %v1769
        %v1809 = vunpack.c.l.b16 %v1770
        %v1810 = vunpack.c.l.b16 %v1771
        %v1811 = vunpack.c.l.b16 %v1772
        %v1812 = vunpack.c.l.b16 %v1773
        %v1813 = vunpack.c.l.b16 %v1774
        %v1814 = vunpack.c.l.b16 %v1775
        %v1815 = vunpack.c.l.b16 %v1776
        %v1816 = vunpack.c.l.b16 %v1777
        %v1817 = vunpack.c.l.b16 %v1778
        %v1818 = vunpack.c.l.b16 %v1779
        %v1819 = vunpack.c.l.b16 %v1780
        %v1820 = vpack.c.b16 %v1805, %v1804
        %v1821 = vpack.c.b16 %v1807, %v1806
        %v1822 = vpack.c.b16 %v1809, %v1808
        %v1823 = vpack.c.b16 %v1811, %v1810
        %v1824 = vpack.c.b16 %v1813, %v1812
        %v1825 = vpack.c.b16 %v1815, %v1814
        %v1826 = vpack.c.b16 %v1817, %v1816
        %v1827 = vpack.c.b16 %v1819, %v1818
        %1836 = vmatprep.subr.bf16.mxu0 0
        %1837 = vmatpush1.bf16.msra.mxu0 %v1820
        %1838 = vmatprep.subr.bf16.mxu0 0
        %1839 = vmatpush1.bf16.msra.mxu0 %v1821
        %1840 = vmatprep.subr.bf16.mxu0 0
        %1841 = vmatpush1.bf16.msra.mxu0 %v1822
        %1842 = vmatprep.subr.bf16.mxu0 0
        %1843 = vmatpush1.bf16.msra.mxu0 %v1823
        %1844 = vmatprep.subr.bf16.mxu0 0
        %1845 = vmatpush1.bf16.msra.mxu0 %v1824
        %1846 = vmatprep.subr.bf16.mxu0 0
        %1847 = vmatpush1.bf16.msra.mxu0 %v1825
        %1848 = vmatprep.subr.bf16.mxu0 0
        %1849 = vmatpush1.bf16.msra.mxu0 %v1826
        %1850 = vmatprep.subr.bf16.mxu0 0
        %1851 = vmatpush1.bf16.msra.mxu0 %v1827
        %1852 = vmatprep.subr.bf16.mxu0 0
        %1853 = vmatpush1.bf16.msra.mxu0 0
        %1854 = vmatprep.subr.bf16.mxu0 0
        %1855 = vmatpush1.bf16.msra.mxu0 0
        %1856 = vmatprep.subr.bf16.mxu0 0
        %1857 = vmatpush1.bf16.msra.mxu0 0
        %1858 = vmatprep.subr.bf16.mxu0 0
        %1859 = vmatpush1.bf16.msra.mxu0 0
        %1860 = vmatprep.subr.bf16.mxu0 0
        %1861 = vmatpush1.bf16.msra.mxu0 0
        %1862 = vmatprep.subr.bf16.mxu0 0
        %1863 = vmatpush1.bf16.msra.mxu0 0
        %1864 = vmatprep.subr.bf16.mxu0 0
        %1865 = vmatpush1.bf16.msra.mxu0 0
        %1866 = vmatprep.subr.bf16.mxu0 0
        %1867 = vmatpush1.bf16.msra.mxu0 0
        %1868 = vmatprep.mubr.bf16.mxu0 0
        %1869 = vmatmul.mubr.bf16.gmra.mrb[0].mxu0 %v1764
        %v1870 = vpop.f32.mrb[0].mxu0
        %v1871 = vadd.f32 %v1786, %v1870
        %v1872 = vpop.f32.mrb[0].mxu0
        %v1873 = vpop.f32.mrb[0].mxu0
        %v1874 = vpop.f32.mrb[0].mxu0
        %1875 = vdwg.mxu0
        %v1876 = vadd.f32 %v1871, %v1691
        %v1877 = vld [vmem:[%s17] sm:$0x1]
        %v1878 = vld [vmem:[%s18] sm:$0x1]
        %v1879 = vsel %vm670, %v1876, 0.0
        %1880 = vadd.xlane.f32.xlu0 %v1879
        %v1881 = vpop.xlane.xlu0 %1880
        %v1882 = vmul.f32 %v1881, %v1667
        %v1883 = vsub.f32 %v1876, %v1882
        %v1884 = vmul.f32 %v1883, %v1883
        %v1885 = vsel %vm670, %v1884, 0.0
        %1886 = vadd.xlane.f32.xlu0 %v1885
        %v1887 = vpop.xlane.xlu0 %1886
        %v1888 = vmul.f32 %v1887, %v1667
        %v1889 = vadd.f32 %v1888, 1e-12
        %v1890 = vrsqrt.pop %v1889
        %v1891 = vmul.f32 %v1883, %v1890
        %v1893 = vlaneseq
        %v1894 = vshrl.u32 %v1893, 7
        %v1895 = vsub.s32 0, %v1894
        %v1896 = vrot.slane %v1877, %v1895
        %v1898 = vmul.f32 %v1891, %v1896
        %v1900 = vlaneseq
        %v1901 = vshrl.u32 %v1900, 7
        %v1902 = vsub.s32 0, %v1901
        %v1903 = vrot.slane %v1878, %v1902
        %v1905 = vadd.f32 %v1898, %v1903
        %1906 = vst.msk [vmem:[%s646] sm:$0xff] %vm670, %v1905
        %s1907 = sand.u32 %s448, 1
        %s1908 = scalar_lea.sflag [#allocation10], %s1907
        %s1909 = sand.u32 %s448, 1
        %s1910 = smul.addr %s1909, 8
        %s1911 = scalar_lea.vmem [#allocation16], %s1910
        // Predicated region
        $region113: #{tpu_custom_call.1} parent=95 // pred_check
          %p1912 = pneg %p458
        $region114: #{tpu_custom_call.1} parent=95 // pred_check_branch
          %1914 = sbr.rel (%p1912) target = $region116
        $region115: #{tpu_custom_call.1} parent=95 // pred_region
          %s1916 = ssub.s32 128, 128
          %1917 = vsyncadd %s1908, %s1916
          %s1918 = smul.addr %s36, 128
          %s1919 = scalar_lea.hbm %s19, %s1918
          %s1921 = sshll.u32 %s1911, 4
          %s1922 = int_to_ptr.vmem [resolvable:$true] %s1921
          %1924 = dma.vmem_to_hbm [thread:$0]  %s1922, 128, %s1919, %s1908
        $region116: #{tpu_custom_call.1} parent=95 // pred_fallthru
          _
      $region96: #{tpu_custom_call.1} parent=5 // pred_fallthru
        _
      %p1925 = scmp.le.s32.totalorder 2, %s31
      // Predicated region
      $region117: #{tpu_custom_call.1} parent=5 // pred_check
        %p1926 = pneg %p1925
      $region118: #{tpu_custom_call.1} parent=5 // pred_check_branch
        %1928 = sbr.rel (%p1926) target = $region120
      $region119: #{tpu_custom_call.1} parent=5 // pred_region
        %s1929 = ssub.s32 %s31, 2
        // Predicated region
        $region121: #{tpu_custom_call.1} parent=119 // pred_check
          %p1930 = pneg %p464
        $region122: #{tpu_custom_call.1} parent=119 // pred_check_branch
          %1932 = sbr.rel (%p1930) target = $region124
        $region123: #{tpu_custom_call.1} parent=119 // pred_region
          %s1933 = sand.u32 %s449, 1
          %s1934 = scalar_lea.sflag [#allocation10], %s1933
          %s1935 = sand.u32 %s449, 1
          %s1936 = smul.addr %s1935, 8
          %s1937 = scalar_lea.vmem [#allocation16], %s1936
          %1938 = dma.done %s1934, 128
        $region124: #{tpu_custom_call.1} parent=119 // pred_fallthru
          _
      $region120: #{tpu_custom_call.1} parent=5 // pred_fallthru
        _
    $region6: #{tpu_custom_call.1} parent=1 // loop_footer
      %s35 = sadd.s32 1, %s31
    $region7: #{tpu_custom_call.1} parent=1 // loop_footer_branch
      %30 = sbr.rel target = $region3
    $region8: #{tpu_custom_call.1} parent=1 // loop_exit
      _
    %1939 = vsyncpa [#allocation9], 1
    %s1940 = scalar_lea.sflag [#allocation9], 1
    %1941 = vsyncpa %s1940, 1
    %1942 = vsyncpa [#allocation12], 1
    %1943 = vsyncpa [#allocation15], 1
    %1944 = vsyncpa [#allocation10], 1
    %s1945 = scalar_lea.sflag [#allocation10], 1
    %1946 = vsyncpa %s1945, 1

</llo_original>
